<compile_context>
chip_gen: v7x
topology: tpu7x:2x2x1
jax: 0.10.0
libtpu: 0.0.40
codegen_flags: <defaults>
</compile_context>

<pallas_src>
import functools

import jax
import jax.numpy as jnp
import numpy as np
from jax import lax
from jax.experimental import pallas as pl
from jax.experimental.pallas import tpu as pltpu

EPS = 1e-5       # torch.nn.LayerNorm default eps
LANE = 128       # lane tile width
ROW_TILE = 16    # sublane tile for bf16 blocks (covers f32's 8 too)


def _round_up(x, m):
    return ((x + m - 1) // m) * m


def _choose_time_block(seq_len, batch, *, target_rows=512, max_t=128):
    """Pick T (timesteps per grid step) so T*B rows fill the MXU / HBM pipe.

    T*B targets ~512 rows, is a multiple of 16 (bf16 sublane tile) for interior
    blocks, T is capped to bound the unrolled recurrence, and S is padded up to
    a multiple of T (never a tiny-divisor fallback).
    """
    t = max(1, -(-target_rows // batch))          # cdiv
    t = min(t, max_t)
    while (t * batch) % ROW_TILE:
        t += 1
    if t >= seq_len:
        t = seq_len                               # grid == 1, block == full array
    s_pad = _round_up(seq_len, t)
    return t, s_pad


def _vmem_limit_bytes(base_bytes):
    # Explicit scoped-VMEM budget: above v5e's 16 MiB default, never above the
    # v7x physical 64 MiB; 2x headroom over the estimated footprint.
    return int(min(64 * 2 ** 20, max(32 * 2 ** 20, 2 * int(base_bytes))))


# ----------------------------------------------------------------------------
# Kernel 1: input projection (Linear, bf16 MXU) + LayerNorm, tiled over rows.
# Output is stored in bf16 (its only consumer casts to bf16 for the MXU).
# ----------------------------------------------------------------------------
def _input_proj_ln_kernel(x_ref, w_ref, b_ref, gamma_ref, beta_ref, o_ref, *,
                          inv_p):
    x = x_ref[...].astype(jnp.bfloat16)
    y = jnp.dot(x, w_ref[...], preferred_element_type=jnp.float32) + b_ref[...]
    # LayerNorm over the real P features.  Padded columns of w/b are zero, so
    # y is exactly 0 there and one-pass sums over the padded width are exact.
    mu = jnp.sum(y, axis=-1, keepdims=True) * inv_p
    var = jnp.sum(y * y, axis=-1, keepdims=True) * inv_p - mu * mu
    o_ref[...] = (gamma_ref[...] * (y - mu) * lax.rsqrt(var + EPS)
                  + beta_ref[...]).astype(o_ref.dtype)


def input_proj_layernorm(x2d, prep, *, block_rows, p_real):
    rows, din = x2d.shape
    pp = prep["in_w"].shape[1]
    grid = rows // block_rows

    flops = 2 * rows * din * pp
    bytes_acc = (rows * din * x2d.dtype.itemsize + rows * pp * 2
                 + din * pp * 2 + 3 * pp * 4)
    base = (2 * block_rows * din * 4 + 2 * block_rows * pp * 2
            + 2 * (din * pp * 2 + 3 * pp * 4)
            + 2 * block_rows * pp * 4)            # f32 temporaries headroom

    return pl.pallas_call(
        functools.partial(_input_proj_ln_kernel, inv_p=1.0 / p_real),
        grid=(grid,),
        in_specs=[
            pl.BlockSpec((block_rows, din), lambda i: (i, 0)),
            pl.BlockSpec((din, pp), lambda i: (0, 0)),
            pl.BlockSpec((1, pp), lambda i: (0, 0)),
            pl.BlockSpec((1, pp), lambda i: (0, 0)),
            pl.BlockSpec((1, pp), lambda i: (0, 0)),
        ],
        out_specs=pl.BlockSpec((block_rows, pp), lambda i: (i, 0)),
        out_shape=jax.ShapeDtypeStruct((rows, pp), jnp.bfloat16),
        compiler_params=pltpu.CompilerParams(
            dimension_semantics=("parallel",),
            vmem_limit_bytes=_vmem_limit_bytes(base)),
        cost_estimate=pl.CostEstimate(flops=int(flops),
                                      transcendentals=int(rows),
                                      bytes_accessed=int(bytes_acc)),
    )(x2d, prep["in_w"], prep["in_b"], prep["in_ln_g"], prep["in_ln_b"])


# ----------------------------------------------------------------------------
# Kernel 2: one full QRNN layer (QRNN-fo) with T timesteps per grid step.
#   - fused gate matmul: (T*B, Dp) @ (Dp, 3*Hp)   [z|f|o, 128-aligned, bf16]
#   - sequential forget-mult recurrence over T (static row slices, VMEM carry)
#   - output gate -> clip -> Wp projection -> clip -> LayerNorm (batched)
# ----------------------------------------------------------------------------
def _qrnn_layer_kernel(x_ref, wzfo_ref, bzfo_ref, wp_ref, gamma_ref, beta_ref,
                       out_ref, hn_ref, c_ref, cbuf_ref, *,
                       batch, tsteps, hidden_p, inv_p, clip_value,
                       hn_block, hn_local):
    hp = hidden_p
    t = pl.program_id(0)

    @pl.when(t == 0)
    def _():
        c_ref[...] = jnp.zeros_like(c_ref)        # hidden=None -> zero init

    # One MXU push for all three gates over T*B rows (bf16 operands, f32 acc).
    # Gate column groups are 128-aligned, so the slices below stay on lane
    # tile boundaries (no cross-lane shuffles).
    x = x_ref[...].astype(jnp.bfloat16)
    g = jnp.dot(x, wzfo_ref[...], preferred_element_type=jnp.float32) + bzfo_ref[...]
    z = jnp.tanh(g[:, :hp])
    f = jax.nn.sigmoid(g[:, hp:2 * hp])
    o = jax.nn.sigmoid(g[:, 2 * hp:])

    # ForgetMult recurrence: c_t = f_t * z_t + (1 - f_t) * c_{t-1}.
    # Static row slices on the flat (T*B, Hp) layout; unrolled (T is static).
    c = c_ref[...]
    hn_val = c
    for i in range(tsteps):
        r0 = i * batch
        f_i = f[r0:r0 + batch]
        c = f_i * z[r0:r0 + batch] + (1.0 - f_i) * c
        cbuf_ref[r0:r0 + batch, :] = c
        if i == hn_local:
            hn_val = c                            # c at global step S-1
    c_ref[...] = c                                # carry to next grid step

    @pl.when(t == hn_block)                       # block containing step S-1
    def _():
        hn_ref[...] = hn_val

    # Output gate, clip, per-layer projection (no bias), clip, LayerNorm —
    # batched over T*B rows so the second matmul also fills the MXU.
    h = o * cbuf_ref[...]
    if clip_value != -1:
        h = jnp.clip(h, -clip_value, clip_value)
    p = jnp.dot(h.astype(jnp.bfloat16), wp_ref[...],
                preferred_element_type=jnp.float32)
    if clip_value != -1:
        p = jnp.clip(p, -clip_value, clip_value)
    mu = jnp.sum(p, axis=-1, keepdims=True) * inv_p
    var = jnp.sum(p * p, axis=-1, keepdims=True) * inv_p - mu * mu
    y = gamma_ref[...] * (p - mu) * lax.rsqrt(var + EPS) + beta_ref[...]
    out_ref[...] = y.astype(out_ref.dtype)


def qrnn_layer_forward(x2d, lp, *, clip_value, batch, tsteps, seq_len, p_real,
                       out_dtype):
    rows, dp = x2d.shape
    hp = lp["w_zfo"].shape[1] // 3
    pp = lp["wp"].shape[1]
    block_rows = tsteps * batch
    grid = rows // block_rows
    hn_block = (seq_len - 1) // tsteps
    hn_local = (seq_len - 1) % tsteps
    out_isz = jnp.dtype(out_dtype).itemsize

    flops = 2 * rows * dp * 3 * hp + 2 * rows * hp * pp
    trans = 3 * rows * hp + rows
    bytes_acc = (rows * dp * x2d.dtype.itemsize + rows * pp * out_isz
                 + batch * hp * 4
                 + dp * 3 * hp * 2 + hp * pp * 2 + (3 * hp + 2 * pp) * 4)
    base = (2 * block_rows * dp * x2d.dtype.itemsize
            + 2 * block_rows * pp * out_isz
            + 2 * (dp * 3 * hp * 2 + hp * pp * 2 + (3 * hp + 2 * pp) * 4)
            + batch * hp * 4 + block_rows * hp * 4
            + 3 * block_rows * 3 * hp * 4 + 2 * block_rows * pp * 4)

    kernel = functools.partial(
        _qrnn_layer_kernel, batch=batch, tsteps=tsteps, hidden_p=hp,
        inv_p=1.0 / p_real, clip_value=float(clip_value),
        hn_block=hn_block, hn_local=hn_local)

    out, hn = pl.pallas_call(
        kernel,
        grid=(grid,),
        in_specs=[
            pl.BlockSpec((block_rows, dp), lambda t: (t, 0)),
            pl.BlockSpec((dp, 3 * hp), lambda t: (0, 0)),
            pl.BlockSpec((1, 3 * hp), lambda t: (0, 0)),
            pl.BlockSpec((hp, pp), lambda t: (0, 0)),
            pl.BlockSpec((1, pp), lambda t: (0, 0)),
            pl.BlockSpec((1, pp), lambda t: (0, 0)),
        ],
        out_specs=[
            pl.BlockSpec((block_rows, pp), lambda t: (t, 0)),
            pl.BlockSpec((batch, hp), lambda t: (0, 0)),
        ],
        out_shape=[
            jax.ShapeDtypeStruct((rows, pp), out_dtype),
            jax.ShapeDtypeStruct((batch, hp), jnp.float32),
        ],
        scratch_shapes=[
            pltpu.VMEM((batch, hp), jnp.float32),        # recurrent c carry
            pltpu.VMEM((block_rows, hp), jnp.float32),   # C for the whole block
        ],
        compiler_params=pltpu.CompilerParams(
            dimension_semantics=("arbitrary",),          # sequential recurrence
            vmem_limit_bytes=_vmem_limit_bytes(base)),
        cost_estimate=pl.CostEstimate(flops=int(flops),
                                      transcendentals=int(trans),
                                      bytes_accessed=int(bytes_acc)),
    )(x2d, lp["w_zfo"], lp["b_zfo"], lp["wp"], lp["ln_g"], lp["ln_b"])
    return out, hn


# ----------------------------------------------------------------------------
# Full module forward (glue in plain JAX, hot paths in Pallas).
# ----------------------------------------------------------------------------
def qrnn_projection_forward(x, prep, *, clip_value, hidden_size, projection_size):
    S, B, Din = x.shape
    nl = len(prep["layers"])
    T, S_pad = _choose_time_block(S, B)

    x2 = x.reshape(S * B, Din)
    if S_pad != S:
        x2 = jnp.pad(x2, ((0, (S_pad - S) * B), (0, 0)))   # padded timesteps at end

    h = input_proj_layernorm(x2, prep, block_rows=T * B, p_real=projection_size)

    hns = []
    for li, lp in enumerate(prep["layers"]):
        out_dtype = jnp.float32 if li == nl - 1 else jnp.bfloat16
        h, hn = qrnn_layer_forward(h, lp, clip_value=clip_value, batch=B,
                                   tsteps=T, seq_len=S, p_real=projection_size,
                                   out_dtype=out_dtype)
        hns.append(hn[:, :hidden_size])

    out = h[:S * B, :projection_size].reshape(S, B, projection_size)
    return out, jnp.stack(hns, 0)


# ----------------------------------------------------------------------------
# One-time parameter prep: pad features to lane multiples (128), concatenate
# the three gate weights, zero-pad LN/bias params, cast MXU weights to bf16.
# ----------------------------------------------------------------------------
def prepare_params(params):
    in_w = params["in_w"]
    din, p = in_w.shape
    h = params["layers"][0]["wz"].shape[1]
    pp = _round_up(p, LANE)
    hp = _round_up(h, LANE)

    def pad_cols(a, width):
        return jnp.pad(a, ((0, 0), (0, width - a.shape[1])))

    prep = {
        "in_w": pad_cols(in_w, pp).astype(jnp.bfloat16),
        "in_b": pad_cols(params["in_b"], pp),
        "in_ln_g": pad_cols(params["in_ln_g"], pp),   # zero pad -> padded cols stay 0
        "in_ln_b": pad_cols(params["in_ln_b"], pp),
        "layers": [],
    }
    for lp in params["layers"]:
        w_zfo = jnp.zeros((pp, 3 * hp), jnp.float32)
        b_zfo = jnp.zeros((1, 3 * hp), jnp.float32)
        for gi, (wk, bk) in enumerate((("wz", "bz"), ("wf", "bf"), ("wo", "bo"))):
            w_zfo = w_zfo.at[:p, gi * hp:gi * hp + h].set(lp[wk])
            b_zfo = b_zfo.at[:, gi * hp:gi * hp + h].set(lp[bk])
        wp = jnp.zeros((hp, pp), jnp.float32).at[:h, :p].set(lp["wp"])
        prep["layers"].append({
            "w_zfo": w_zfo.astype(jnp.bfloat16),
            "b_zfo": b_zfo,
            "wp": wp.astype(jnp.bfloat16),
            "ln_g": pad_cols(lp["ln_g"], pp),
            "ln_b": pad_cols(lp["ln_b"], pp),
        })
    return prep


# ----------------------------------------------------------------------------
# Pure-JAX reference (mirrors the PyTorch forward; matmuls use the same
# bf16-operand / f32-accumulate precision and one-pass LayerNorm moments).
# ----------------------------------------------------------------------------
def _mm_bf16(a, w):
    res = lax.dot_general(
        a.reshape(-1, a.shape[-1]).astype(jnp.bfloat16), w.astype(jnp.bfloat16),
        dimension_numbers=(((1,), (0,)), ((), ())),
        preferred_element_type=jnp.float32)
    return res.reshape(a.shape[:-1] + (w.shape[-1],))


def _layer_norm_ref(y, g, b):
    mu = jnp.mean(y, -1, keepdims=True)
    var = jnp.mean(y * y, -1, keepdims=True) - mu * mu
    return g * (y - mu) * lax.rsqrt(var + EPS) + b


def reference_forward(x, params, clip_value):
    S, B, _ = x.shape
    y = _mm_bf16(x, params["in_w"]) + params["in_b"]
    h = _layer_norm_ref(y, params["in_ln_g"], params["in_ln_b"])
    hns = []
    for lp in params["layers"]:
        H = lp["wz"].shape[1]
        w_zfo = jnp.concatenate([lp["wz"], lp["wf"], lp["wo"]], axis=1)
        b_zfo = jnp.concatenate([lp["bz"], lp["bf"], lp["bo"]], axis=1)
        g = _mm_bf16(h, w_zfo) + b_zfo
        z = jnp.tanh(g[..., :H])
        f = jax.nn.sigmoid(g[..., H:2 * H])
        o = jax.nn.sigmoid(g[..., 2 * H:])

        def step(c, zf):
            z_t, f_t = zf
            c = f_t * z_t + (1.0 - f_t) * c
            return c, c

        c0 = jnp.zeros((B, H), jnp.float32)
        _, C = lax.scan(step, c0, (z, f))
        hns.append(C[-1])
        hh = o * C
        if clip_value != -1:
            hh = jnp.clip(hh, -clip_value, clip_value)
        p = _mm_bf16(hh, lp["wp"])
        if clip_value != -1:
            p = jnp.clip(p, -clip_value, clip_value)
        h = _layer_norm_ref(p, lp["ln_g"], lp["ln_b"])
    return h, jnp.stack(hns, 0)


# ----------------------------------------------------------------------------
# Deterministic parameter init (mimics nn.Linear / nn.LayerNorm shapes).
# ----------------------------------------------------------------------------
def init_params(key, input_size, hidden_size, projection_size, num_layers):
    def uniform(k, shape, fan_in):
        bound = 1.0 / np.sqrt(fan_in)
        return jax.random.uniform(k, shape, jnp.float32, -bound, bound)

    keys = jax.random.split(key, 4 + num_layers)
    params = {
        "in_w": uniform(keys[0], (input_size, projection_size), input_size),
        "in_b": uniform(keys[1], (1, projection_size), input_size),
        "in_ln_g": 1.0 + 0.1 * jax.random.normal(keys[2], (1, projection_size), jnp.float32),
        "in_ln_b": 0.1 * jax.random.normal(keys[3], (1, projection_size), jnp.float32),
        "layers": [],
    }
    for l in range(num_layers):
        lk = jax.random.split(keys[4 + l], 10)
        din = projection_size
        lp = {
            "wz": uniform(lk[0], (din, hidden_size), din),
            "wf": uniform(lk[1], (din, hidden_size), din),
            "wo": uniform(lk[2], (din, hidden_size), din),
            "bz": uniform(lk[3], (1, hidden_size), din),
            "bf": uniform(lk[4], (1, hidden_size), din),
            "bo": uniform(lk[5], (1, hidden_size), din),
            "wp": uniform(lk[6], (hidden_size, projection_size), hidden_size),
            "ln_g": 1.0 + 0.1 * jax.random.normal(lk[7], (1, projection_size), jnp.float32),
            "ln_b": 0.1 * jax.random.normal(lk[8], (1, projection_size), jnp.float32),
        }
        params["layers"].append(lp)
    return params


if __name__ == "__main__":
    # Small shapes consistent with the module: S=32 timesteps, batch=4.
    S, B = 32, 4
    input_size, hidden_size, projection_size, num_layers = 16, 32, 24, 2
    clip_value = 5.0

    key = jax.random.PRNGKey(0)
    kx, kp = jax.random.split(key)
    x = jax.random.normal(kx, (S, B, input_size), jnp.float32)
    params = init_params(kp, input_size, hidden_size, projection_size, num_layers)
    prep = prepare_params(params)

    fwd = jax.jit(functools.partial(qrnn_projection_forward,
                                    clip_value=clip_value,
                                    hidden_size=hidden_size,
                                    projection_size=projection_size))
    out, h_n = fwd(x, prep)
    out = jax.block_until_ready(out)
    h_n = jax.block_until_ready(h_n)

    ref_out, ref_hn = reference_forward(x, params, clip_value)
    np.testing.assert_allclose(np.asarray(out), np.asarray(ref_out), rtol=3e-3, atol=3e-3)
    np.testing.assert_allclose(np.asarray(h_n), np.asarray(ref_hn), rtol=3e-3, atol=3e-3)
    assert out.shape == (S, B, projection_size)
    assert h_n.shape == (num_layers, B, hidden_size)

    print("KERNEL_OK")
</pallas_src>

<mosaic_0001>
module attributes {stable_mosaic.version = 11 : i64} {
  func.func @_qrnn_layer_kernel(%arg0: i32, %arg1: memref<128x128xbf16, #tpu.memory_space<vmem>>, %arg2: memref<128x384xbf16, #tpu.memory_space<vmem>>, %arg3: memref<1x384xf32, #tpu.memory_space<vmem>>, %arg4: memref<128x128xbf16, #tpu.memory_space<vmem>>, %arg5: memref<1x128xf32, #tpu.memory_space<vmem>>, %arg6: memref<1x128xf32, #tpu.memory_space<vmem>>, %arg7: memref<128x128xf32, #tpu.memory_space<vmem>>, %arg8: memref<4x128xf32, #tpu.memory_space<vmem>>, %arg9: memref<4x128xf32, #tpu.memory_space<vmem>>, %arg10: memref<128x128xf32, #tpu.memory_space<vmem>>) attributes {dimension_semantics = [#tpu.dimension_semantics<arbitrary>], iteration_bounds = array<i64: 1>, scalar_prefetch = 0 : i64, scratch_operands = 2 : i64, tpu.core_type = #tpu.core_type<tc>, window_params = [{transform_indices = @transform_0, window_bounds = array<i64: 128, 128>}, {pipeline_mode = #tpu.pipeline_mode<synchronous>, transform_indices = @transform_1, window_bounds = array<i64: 128, 384>}, {pipeline_mode = #tpu.pipeline_mode<synchronous>, transform_indices = @transform_2, window_bounds = array<i64: 1, 384>}, {pipeline_mode = #tpu.pipeline_mode<synchronous>, transform_indices = @transform_3, window_bounds = array<i64: 128, 128>}, {pipeline_mode = #tpu.pipeline_mode<synchronous>, transform_indices = @transform_4, window_bounds = array<i64: 1, 128>}, {pipeline_mode = #tpu.pipeline_mode<synchronous>, transform_indices = @transform_5, window_bounds = array<i64: 1, 128>}, {transform_indices = @transform_6, window_bounds = array<i64: 128, 128>}, {pipeline_mode = #tpu.pipeline_mode<synchronous>, transform_indices = @transform_7, window_bounds = array<i64: 4, 128>}]} {
    %c0_i32 = arith.constant 0 : i32
    %0 = arith.cmpi eq, %arg0, %c0_i32 : i32
    %1 = arith.extui %0 : i1 to i32
    %c0_i32_0 = arith.constant 0 : i32
    %2 = arith.cmpi ne, %1, %c0_i32_0 : i32
    scf.if %2 {
      %cst_99 = arith.constant 0.000000e+00 : f32
      %322 = vector.broadcast %cst_99 : f32 to vector<4x128xf32>
      %c0_100 = arith.constant 0 : index
      %c0_101 = arith.constant 0 : index
      %323 = vector.load %arg9[%c0_100, %c0_101] : memref<4x128xf32, #tpu.memory_space<vmem>>, vector<4x128xf32>
      tpu.vector_store %arg9[%c0_100, %c0_101], %322 {strides = array<i32>} : memref<4x128xf32, #tpu.memory_space<vmem>>, vector<4x128xf32>,
    } else {
    }
    %c0 = arith.constant 0 : index
    %c0_1 = arith.constant 0 : index
    %3 = vector.load %arg1[%c0, %c0_1] : memref<128x128xbf16, #tpu.memory_space<vmem>>, vector<128x128xbf16>
    %c0_2 = arith.constant 0 : index
    %c0_3 = arith.constant 0 : index
    %4 = vector.load %arg2[%c0_2, %c0_3] : memref<128x384xbf16, #tpu.memory_space<vmem>>, vector<128x384xbf16>
    %cst = arith.constant dense<0.000000e+00> : vector<128x384xf32>
    %5 = tpu.matmul %3, %4, %cst {dimension_numbers = #tpu.dot_dimension_numbers<[1], [0], [0], [1], [0, 0, 1, 1], [], []>} : vector<128x128xbf16>, vector<128x384xbf16>, vector<128x384xf32> -> vector<128x384xf32>
    %c0_4 = arith.constant 0 : index
    %c0_5 = arith.constant 0 : index
    %6 = vector.load %arg3[%c0_4, %c0_5] : memref<1x384xf32, #tpu.memory_space<vmem>>, vector<1x384xf32>
    %7 = vector.broadcast %6 : vector<1x384xf32> to vector<128x384xf32>
    %8 = arith.addf %5, %7 : vector<128x384xf32>
    %9 = vector.extract_strided_slice %8 {offsets = [0, 0], sizes = [128, 128], strides = [1, 1]} : vector<128x384xf32> to vector<128x128xf32>
    %10 = math.tanh %9 : vector<128x128xf32>
    %11 = vector.extract_strided_slice %8 {offsets = [0, 128], sizes = [128, 128], strides = [1, 1]} : vector<128x384xf32> to vector<128x128xf32>
    %12 = arith.negf %11 : vector<128x128xf32>
    %13 = math.exp %12 : vector<128x128xf32>
    %cst_6 = arith.constant 1.000000e+00 : f32
    %14 = vector.broadcast %cst_6 : f32 to vector<128x128xf32>
    %15 = arith.addf %14, %13 : vector<128x128xf32>
    %16 = arith.divf %14, %15 : vector<128x128xf32>
    %17 = vector.extract_strided_slice %8 {offsets = [0, 256], sizes = [128, 128], strides = [1, 1]} : vector<128x384xf32> to vector<128x128xf32>
    %18 = arith.negf %17 : vector<128x128xf32>
    %19 = math.exp %18 : vector<128x128xf32>
    %cst_7 = arith.constant 1.000000e+00 : f32
    %20 = vector.broadcast %cst_7 : f32 to vector<128x128xf32>
    %21 = arith.addf %20, %19 : vector<128x128xf32>
    %22 = arith.divf %20, %21 : vector<128x128xf32>
    %c0_8 = arith.constant 0 : index
    %c0_9 = arith.constant 0 : index
    %23 = vector.load %arg9[%c0_8, %c0_9] : memref<4x128xf32, #tpu.memory_space<vmem>>, vector<4x128xf32>
    %24 = vector.extract_strided_slice %16 {offsets = [0, 0], sizes = [4, 128], strides = [1, 1]} : vector<128x128xf32> to vector<4x128xf32>
    %25 = vector.extract_strided_slice %10 {offsets = [0, 0], sizes = [4, 128], strides = [1, 1]} : vector<128x128xf32> to vector<4x128xf32>
    %26 = arith.mulf %24, %25 : vector<4x128xf32>
    %cst_10 = arith.constant 1.000000e+00 : f32
    %27 = vector.broadcast %cst_10 : f32 to vector<4x128xf32>
    %28 = arith.subf %27, %24 : vector<4x128xf32>
    %29 = arith.mulf %28, %23 : vector<4x128xf32>
    %30 = arith.addf %26, %29 : vector<4x128xf32>
    %c0_11 = arith.constant 0 : index
    %c0_12 = arith.constant 0 : index
    %31 = vector.load %arg10[%c0_11, %c0_12] : memref<128x128xf32, #tpu.memory_space<vmem>>, vector<4x128xf32>
    tpu.vector_store %arg10[%c0_11, %c0_12], %30 {strides = array<i32>} : memref<128x128xf32, #tpu.memory_space<vmem>>, vector<4x128xf32>,
    %32 = vector.extract_strided_slice %16 {offsets = [4, 0], sizes = [4, 128], strides = [1, 1]} : vector<128x128xf32> to vector<4x128xf32>
    %33 = vector.extract_strided_slice %10 {offsets = [4, 0], sizes = [4, 128], strides = [1, 1]} : vector<128x128xf32> to vector<4x128xf32>
    %34 = arith.mulf %32, %33 : vector<4x128xf32>
    %cst_13 = arith.constant 1.000000e+00 : f32
    %35 = vector.broadcast %cst_13 : f32 to vector<4x128xf32>
    %36 = arith.subf %35, %32 : vector<4x128xf32>
    %37 = arith.mulf %36, %30 : vector<4x128xf32>
    %38 = arith.addf %34, %37 : vector<4x128xf32>
    %c4 = arith.constant 4 : index
    %c0_14 = arith.constant 0 : index
    %39 = vector.load %arg10[%c4, %c0_14] : memref<128x128xf32, #tpu.memory_space<vmem>>, vector<4x128xf32>
    tpu.vector_store %arg10[%c4, %c0_14], %38 {strides = array<i32>} : memref<128x128xf32, #tpu.memory_space<vmem>>, vector<4x128xf32>,
    %40 = vector.extract_strided_slice %16 {offsets = [8, 0], sizes = [4, 128], strides = [1, 1]} : vector<128x128xf32> to vector<4x128xf32>
    %41 = vector.extract_strided_slice %10 {offsets = [8, 0], sizes = [4, 128], strides = [1, 1]} : vector<128x128xf32> to vector<4x128xf32>
    %42 = arith.mulf %40, %41 : vector<4x128xf32>
    %cst_15 = arith.constant 1.000000e+00 : f32
    %43 = vector.broadcast %cst_15 : f32 to vector<4x128xf32>
    %44 = arith.subf %43, %40 : vector<4x128xf32>
    %45 = arith.mulf %44, %38 : vector<4x128xf32>
    %46 = arith.addf %42, %45 : vector<4x128xf32>
    %c8 = arith.constant 8 : index
    %c0_16 = arith.constant 0 : index
    %47 = vector.load %arg10[%c8, %c0_16] : memref<128x128xf32, #tpu.memory_space<vmem>>, vector<4x128xf32>
    tpu.vector_store %arg10[%c8, %c0_16], %46 {strides = array<i32>} : memref<128x128xf32, #tpu.memory_space<vmem>>, vector<4x128xf32>,
    %48 = vector.extract_strided_slice %16 {offsets = [12, 0], sizes = [4, 128], strides = [1, 1]} : vector<128x128xf32> to vector<4x128xf32>
    %49 = vector.extract_strided_slice %10 {offsets = [12, 0], sizes = [4, 128], strides = [1, 1]} : vector<128x128xf32> to vector<4x128xf32>
    %50 = arith.mulf %48, %49 : vector<4x128xf32>
    %cst_17 = arith.constant 1.000000e+00 : f32
    %51 = vector.broadcast %cst_17 : f32 to vector<4x128xf32>
    %52 = arith.subf %51, %48 : vector<4x128xf32>
    %53 = arith.mulf %52, %46 : vector<4x128xf32>
    %54 = arith.addf %50, %53 : vector<4x128xf32>
    %c12 = arith.constant 12 : index
    %c0_18 = arith.constant 0 : index
    %55 = vector.load %arg10[%c12, %c0_18] : memref<128x128xf32, #tpu.memory_space<vmem>>, vector<4x128xf32>
    tpu.vector_store %arg10[%c12, %c0_18], %54 {strides = array<i32>} : memref<128x128xf32, #tpu.memory_space<vmem>>, vector<4x128xf32>,
    %56 = vector.extract_strided_slice %16 {offsets = [16, 0], sizes = [4, 128], strides = [1, 1]} : vector<128x128xf32> to vector<4x128xf32>
    %57 = vector.extract_strided_slice %10 {offsets = [16, 0], sizes = [4, 128], strides = [1, 1]} : vector<128x128xf32> to vector<4x128xf32>
    %58 = arith.mulf %56, %57 : vector<4x128xf32>
    %cst_19 = arith.constant 1.000000e+00 : f32
    %59 = vector.broadcast %cst_19 : f32 to vector<4x128xf32>
    %60 = arith.subf %59, %56 : vector<4x128xf32>
    %61 = arith.mulf %60, %54 : vector<4x128xf32>
    %62 = arith.addf %58, %61 : vector<4x128xf32>
    %c16 = arith.constant 16 : index
    %c0_20 = arith.constant 0 : index
    %63 = vector.load %arg10[%c16, %c0_20] : memref<128x128xf32, #tpu.memory_space<vmem>>, vector<4x128xf32>
    tpu.vector_store %arg10[%c16, %c0_20], %62 {strides = array<i32>} : memref<128x128xf32, #tpu.memory_space<vmem>>, vector<4x128xf32>,
    %64 = vector.extract_strided_slice %16 {offsets = [20, 0], sizes = [4, 128], strides = [1, 1]} : vector<128x128xf32> to vector<4x128xf32>
    %65 = vector.extract_strided_slice %10 {offsets = [20, 0], sizes = [4, 128], strides = [1, 1]} : vector<128x128xf32> to vector<4x128xf32>
    %66 = arith.mulf %64, %65 : vector<4x128xf32>
    %cst_21 = arith.constant 1.000000e+00 : f32
    %67 = vector.broadcast %cst_21 : f32 to vector<4x128xf32>
    %68 = arith.subf %67, %64 : vector<4x128xf32>
    %69 = arith.mulf %68, %62 : vector<4x128xf32>
    %70 = arith.addf %66, %69 : vector<4x128xf32>
    %c20 = arith.constant 20 : index
    %c0_22 = arith.constant 0 : index
    %71 = vector.load %arg10[%c20, %c0_22] : memref<128x128xf32, #tpu.memory_space<vmem>>, vector<4x128xf32>
    tpu.vector_store %arg10[%c20, %c0_22], %70 {strides = array<i32>} : memref<128x128xf32, #tpu.memory_space<vmem>>, vector<4x128xf32>,
    %72 = vector.extract_strided_slice %16 {offsets = [24, 0], sizes = [4, 128], strides = [1, 1]} : vector<128x128xf32> to vector<4x128xf32>
    %73 = vector.extract_strided_slice %10 {offsets = [24, 0], sizes = [4, 128], strides = [1, 1]} : vector<128x128xf32> to vector<4x128xf32>
    %74 = arith.mulf %72, %73 : vector<4x128xf32>
    %cst_23 = arith.constant 1.000000e+00 : f32
    %75 = vector.broadcast %cst_23 : f32 to vector<4x128xf32>
    %76 = arith.subf %75, %72 : vector<4x128xf32>
    %77 = arith.mulf %76, %70 : vector<4x128xf32>
    %78 = arith.addf %74, %77 : vector<4x128xf32>
    %c24 = arith.constant 24 : index
    %c0_24 = arith.constant 0 : index
    %79 = vector.load %arg10[%c24, %c0_24] : memref<128x128xf32, #tpu.memory_space<vmem>>, vector<4x128xf32>
    tpu.vector_store %arg10[%c24, %c0_24], %78 {strides = array<i32>} : memref<128x128xf32, #tpu.memory_space<vmem>>, vector<4x128xf32>,
    %80 = vector.extract_strided_slice %16 {offsets = [28, 0], sizes = [4, 128], strides = [1, 1]} : vector<128x128xf32> to vector<4x128xf32>
    %81 = vector.extract_strided_slice %10 {offsets = [28, 0], sizes = [4, 128], strides = [1, 1]} : vector<128x128xf32> to vector<4x128xf32>
    %82 = arith.mulf %80, %81 : vector<4x128xf32>
    %cst_25 = arith.constant 1.000000e+00 : f32
    %83 = vector.broadcast %cst_25 : f32 to vector<4x128xf32>
    %84 = arith.subf %83, %80 : vector<4x128xf32>
    %85 = arith.mulf %84, %78 : vector<4x128xf32>
    %86 = arith.addf %82, %85 : vector<4x128xf32>
    %c28 = arith.constant 28 : index
    %c0_26 = arith.constant 0 : index
    %87 = vector.load %arg10[%c28, %c0_26] : memref<128x128xf32, #tpu.memory_space<vmem>>, vector<4x128xf32>
    tpu.vector_store %arg10[%c28, %c0_26], %86 {strides = array<i32>} : memref<128x128xf32, #tpu.memory_space<vmem>>, vector<4x128xf32>,
    %88 = vector.extract_strided_slice %16 {offsets = [32, 0], sizes = [4, 128], strides = [1, 1]} : vector<128x128xf32> to vector<4x128xf32>
    %89 = vector.extract_strided_slice %10 {offsets = [32, 0], sizes = [4, 128], strides = [1, 1]} : vector<128x128xf32> to vector<4x128xf32>
    %90 = arith.mulf %88, %89 : vector<4x128xf32>
    %cst_27 = arith.constant 1.000000e+00 : f32
    %91 = vector.broadcast %cst_27 : f32 to vector<4x128xf32>
    %92 = arith.subf %91, %88 : vector<4x128xf32>
    %93 = arith.mulf %92, %86 : vector<4x128xf32>
    %94 = arith.addf %90, %93 : vector<4x128xf32>
    %c32 = arith.constant 32 : index
    %c0_28 = arith.constant 0 : index
    %95 = vector.load %arg10[%c32, %c0_28] : memref<128x128xf32, #tpu.memory_space<vmem>>, vector<4x128xf32>
    tpu.vector_store %arg10[%c32, %c0_28], %94 {strides = array<i32>} : memref<128x128xf32, #tpu.memory_space<vmem>>, vector<4x128xf32>,
    %96 = vector.extract_strided_slice %16 {offsets = [36, 0], sizes = [4, 128], strides = [1, 1]} : vector<128x128xf32> to vector<4x128xf32>
    %97 = vector.extract_strided_slice %10 {offsets = [36, 0], sizes = [4, 128], strides = [1, 1]} : vector<128x128xf32> to vector<4x128xf32>
    %98 = arith.mulf %96, %97 : vector<4x128xf32>
    %cst_29 = arith.constant 1.000000e+00 : f32
    %99 = vector.broadcast %cst_29 : f32 to vector<4x128xf32>
    %100 = arith.subf %99, %96 : vector<4x128xf32>
    %101 = arith.mulf %100, %94 : vector<4x128xf32>
    %102 = arith.addf %98, %101 : vector<4x128xf32>
    %c36 = arith.constant 36 : index
    %c0_30 = arith.constant 0 : index
    %103 = vector.load %arg10[%c36, %c0_30] : memref<128x128xf32, #tpu.memory_space<vmem>>, vector<4x128xf32>
    tpu.vector_store %arg10[%c36, %c0_30], %102 {strides = array<i32>} : memref<128x128xf32, #tpu.memory_space<vmem>>, vector<4x128xf32>,
    %104 = vector.extract_strided_slice %16 {offsets = [40, 0], sizes = [4, 128], strides = [1, 1]} : vector<128x128xf32> to vector<4x128xf32>
    %105 = vector.extract_strided_slice %10 {offsets = [40, 0], sizes = [4, 128], strides = [1, 1]} : vector<128x128xf32> to vector<4x128xf32>
    %106 = arith.mulf %104, %105 : vector<4x128xf32>
    %cst_31 = arith.constant 1.000000e+00 : f32
    %107 = vector.broadcast %cst_31 : f32 to vector<4x128xf32>
    %108 = arith.subf %107, %104 : vector<4x128xf32>
    %109 = arith.mulf %108, %102 : vector<4x128xf32>
    %110 = arith.addf %106, %109 : vector<4x128xf32>
    %c40 = arith.constant 40 : index
    %c0_32 = arith.constant 0 : index
    %111 = vector.load %arg10[%c40, %c0_32] : memref<128x128xf32, #tpu.memory_space<vmem>>, vector<4x128xf32>
    tpu.vector_store %arg10[%c40, %c0_32], %110 {strides = array<i32>} : memref<128x128xf32, #tpu.memory_space<vmem>>, vector<4x128xf32>,
    %112 = vector.extract_strided_slice %16 {offsets = [44, 0], sizes = [4, 128], strides = [1, 1]} : vector<128x128xf32> to vector<4x128xf32>
    %113 = vector.extract_strided_slice %10 {offsets = [44, 0], sizes = [4, 128], strides = [1, 1]} : vector<128x128xf32> to vector<4x128xf32>
    %114 = arith.mulf %112, %113 : vector<4x128xf32>
    %cst_33 = arith.constant 1.000000e+00 : f32
    %115 = vector.broadcast %cst_33 : f32 to vector<4x128xf32>
    %116 = arith.subf %115, %112 : vector<4x128xf32>
    %117 = arith.mulf %116, %110 : vector<4x128xf32>
    %118 = arith.addf %114, %117 : vector<4x128xf32>
    %c44 = arith.constant 44 : index
    %c0_34 = arith.constant 0 : index
    %119 = vector.load %arg10[%c44, %c0_34] : memref<128x128xf32, #tpu.memory_space<vmem>>, vector<4x128xf32>
    tpu.vector_store %arg10[%c44, %c0_34], %118 {strides = array<i32>} : memref<128x128xf32, #tpu.memory_space<vmem>>, vector<4x128xf32>,
    %120 = vector.extract_strided_slice %16 {offsets = [48, 0], sizes = [4, 128], strides = [1, 1]} : vector<128x128xf32> to vector<4x128xf32>
    %121 = vector.extract_strided_slice %10 {offsets = [48, 0], sizes = [4, 128], strides = [1, 1]} : vector<128x128xf32> to vector<4x128xf32>
    %122 = arith.mulf %120, %121 : vector<4x128xf32>
    %cst_35 = arith.constant 1.000000e+00 : f32
    %123 = vector.broadcast %cst_35 : f32 to vector<4x128xf32>
    %124 = arith.subf %123, %120 : vector<4x128xf32>
    %125 = arith.mulf %124, %118 : vector<4x128xf32>
    %126 = arith.addf %122, %125 : vector<4x128xf32>
    %c48 = arith.constant 48 : index
    %c0_36 = arith.constant 0 : index
    %127 = vector.load %arg10[%c48, %c0_36] : memref<128x128xf32, #tpu.memory_space<vmem>>, vector<4x128xf32>
    tpu.vector_store %arg10[%c48, %c0_36], %126 {strides = array<i32>} : memref<128x128xf32, #tpu.memory_space<vmem>>, vector<4x128xf32>,
    %128 = vector.extract_strided_slice %16 {offsets = [52, 0], sizes = [4, 128], strides = [1, 1]} : vector<128x128xf32> to vector<4x128xf32>
    %129 = vector.extract_strided_slice %10 {offsets = [52, 0], sizes = [4, 128], strides = [1, 1]} : vector<128x128xf32> to vector<4x128xf32>
    %130 = arith.mulf %128, %129 : vector<4x128xf32>
    %cst_37 = arith.constant 1.000000e+00 : f32
    %131 = vector.broadcast %cst_37 : f32 to vector<4x128xf32>
    %132 = arith.subf %131, %128 : vector<4x128xf32>
    %133 = arith.mulf %132, %126 : vector<4x128xf32>
    %134 = arith.addf %130, %133 : vector<4x128xf32>
    %c52 = arith.constant 52 : index
    %c0_38 = arith.constant 0 : index
    %135 = vector.load %arg10[%c52, %c0_38] : memref<128x128xf32, #tpu.memory_space<vmem>>, vector<4x128xf32>
    tpu.vector_store %arg10[%c52, %c0_38], %134 {strides = array<i32>} : memref<128x128xf32, #tpu.memory_space<vmem>>, vector<4x128xf32>,
    %136 = vector.extract_strided_slice %16 {offsets = [56, 0], sizes = [4, 128], strides = [1, 1]} : vector<128x128xf32> to vector<4x128xf32>
    %137 = vector.extract_strided_slice %10 {offsets = [56, 0], sizes = [4, 128], strides = [1, 1]} : vector<128x128xf32> to vector<4x128xf32>
    %138 = arith.mulf %136, %137 : vector<4x128xf32>
    %cst_39 = arith.constant 1.000000e+00 : f32
    %139 = vector.broadcast %cst_39 : f32 to vector<4x128xf32>
    %140 = arith.subf %139, %136 : vector<4x128xf32>
    %141 = arith.mulf %140, %134 : vector<4x128xf32>
    %142 = arith.addf %138, %141 : vector<4x128xf32>
    %c56 = arith.constant 56 : index
    %c0_40 = arith.constant 0 : index
    %143 = vector.load %arg10[%c56, %c0_40] : memref<128x128xf32, #tpu.memory_space<vmem>>, vector<4x128xf32>
    tpu.vector_store %arg10[%c56, %c0_40], %142 {strides = array<i32>} : memref<128x128xf32, #tpu.memory_space<vmem>>, vector<4x128xf32>,
    %144 = vector.extract_strided_slice %16 {offsets = [60, 0], sizes = [4, 128], strides = [1, 1]} : vector<128x128xf32> to vector<4x128xf32>
    %145 = vector.extract_strided_slice %10 {offsets = [60, 0], sizes = [4, 128], strides = [1, 1]} : vector<128x128xf32> to vector<4x128xf32>
    %146 = arith.mulf %144, %145 : vector<4x128xf32>
    %cst_41 = arith.constant 1.000000e+00 : f32
    %147 = vector.broadcast %cst_41 : f32 to vector<4x128xf32>
    %148 = arith.subf %147, %144 : vector<4x128xf32>
    %149 = arith.mulf %148, %142 : vector<4x128xf32>
    %150 = arith.addf %146, %149 : vector<4x128xf32>
    %c60 = arith.constant 60 : index
    %c0_42 = arith.constant 0 : index
    %151 = vector.load %arg10[%c60, %c0_42] : memref<128x128xf32, #tpu.memory_space<vmem>>, vector<4x128xf32>
    tpu.vector_store %arg10[%c60, %c0_42], %150 {strides = array<i32>} : memref<128x128xf32, #tpu.memory_space<vmem>>, vector<4x128xf32>,
    %152 = vector.extract_strided_slice %16 {offsets = [64, 0], sizes = [4, 128], strides = [1, 1]} : vector<128x128xf32> to vector<4x128xf32>
    %153 = vector.extract_strided_slice %10 {offsets = [64, 0], sizes = [4, 128], strides = [1, 1]} : vector<128x128xf32> to vector<4x128xf32>
    %154 = arith.mulf %152, %153 : vector<4x128xf32>
    %cst_43 = arith.constant 1.000000e+00 : f32
    %155 = vector.broadcast %cst_43 : f32 to vector<4x128xf32>
    %156 = arith.subf %155, %152 : vector<4x128xf32>
    %157 = arith.mulf %156, %150 : vector<4x128xf32>
    %158 = arith.addf %154, %157 : vector<4x128xf32>
    %c64 = arith.constant 64 : index
    %c0_44 = arith.constant 0 : index
    %159 = vector.load %arg10[%c64, %c0_44] : memref<128x128xf32, #tpu.memory_space<vmem>>, vector<4x128xf32>
    tpu.vector_store %arg10[%c64, %c0_44], %158 {strides = array<i32>} : memref<128x128xf32, #tpu.memory_space<vmem>>, vector<4x128xf32>,
    %160 = vector.extract_strided_slice %16 {offsets = [68, 0], sizes = [4, 128], strides = [1, 1]} : vector<128x128xf32> to vector<4x128xf32>
    %161 = vector.extract_strided_slice %10 {offsets = [68, 0], sizes = [4, 128], strides = [1, 1]} : vector<128x128xf32> to vector<4x128xf32>
    %162 = arith.mulf %160, %161 : vector<4x128xf32>
    %cst_45 = arith.constant 1.000000e+00 : f32
    %163 = vector.broadcast %cst_45 : f32 to vector<4x128xf32>
    %164 = arith.subf %163, %160 : vector<4x128xf32>
    %165 = arith.mulf %164, %158 : vector<4x128xf32>
    %166 = arith.addf %162, %165 : vector<4x128xf32>
    %c68 = arith.constant 68 : index
    %c0_46 = arith.constant 0 : index
    %167 = vector.load %arg10[%c68, %c0_46] : memref<128x128xf32, #tpu.memory_space<vmem>>, vector<4x128xf32>
    tpu.vector_store %arg10[%c68, %c0_46], %166 {strides = array<i32>} : memref<128x128xf32, #tpu.memory_space<vmem>>, vector<4x128xf32>,
    %168 = vector.extract_strided_slice %16 {offsets = [72, 0], sizes = [4, 128], strides = [1, 1]} : vector<128x128xf32> to vector<4x128xf32>
    %169 = vector.extract_strided_slice %10 {offsets = [72, 0], sizes = [4, 128], strides = [1, 1]} : vector<128x128xf32> to vector<4x128xf32>
    %170 = arith.mulf %168, %169 : vector<4x128xf32>
    %cst_47 = arith.constant 1.000000e+00 : f32
    %171 = vector.broadcast %cst_47 : f32 to vector<4x128xf32>
    %172 = arith.subf %171, %168 : vector<4x128xf32>
    %173 = arith.mulf %172, %166 : vector<4x128xf32>
    %174 = arith.addf %170, %173 : vector<4x128xf32>
    %c72 = arith.constant 72 : index
    %c0_48 = arith.constant 0 : index
    %175 = vector.load %arg10[%c72, %c0_48] : memref<128x128xf32, #tpu.memory_space<vmem>>, vector<4x128xf32>
    tpu.vector_store %arg10[%c72, %c0_48], %174 {strides = array<i32>} : memref<128x128xf32, #tpu.memory_space<vmem>>, vector<4x128xf32>,
    %176 = vector.extract_strided_slice %16 {offsets = [76, 0], sizes = [4, 128], strides = [1, 1]} : vector<128x128xf32> to vector<4x128xf32>
    %177 = vector.extract_strided_slice %10 {offsets = [76, 0], sizes = [4, 128], strides = [1, 1]} : vector<128x128xf32> to vector<4x128xf32>
    %178 = arith.mulf %176, %177 : vector<4x128xf32>
    %cst_49 = arith.constant 1.000000e+00 : f32
    %179 = vector.broadcast %cst_49 : f32 to vector<4x128xf32>
    %180 = arith.subf %179, %176 : vector<4x128xf32>
    %181 = arith.mulf %180, %174 : vector<4x128xf32>
    %182 = arith.addf %178, %181 : vector<4x128xf32>
    %c76 = arith.constant 76 : index
    %c0_50 = arith.constant 0 : index
    %183 = vector.load %arg10[%c76, %c0_50] : memref<128x128xf32, #tpu.memory_space<vmem>>, vector<4x128xf32>
    tpu.vector_store %arg10[%c76, %c0_50], %182 {strides = array<i32>} : memref<128x128xf32, #tpu.memory_space<vmem>>, vector<4x128xf32>,
    %184 = vector.extract_strided_slice %16 {offsets = [80, 0], sizes = [4, 128], strides = [1, 1]} : vector<128x128xf32> to vector<4x128xf32>
    %185 = vector.extract_strided_slice %10 {offsets = [80, 0], sizes = [4, 128], strides = [1, 1]} : vector<128x128xf32> to vector<4x128xf32>
    %186 = arith.mulf %184, %185 : vector<4x128xf32>
    %cst_51 = arith.constant 1.000000e+00 : f32
    %187 = vector.broadcast %cst_51 : f32 to vector<4x128xf32>
    %188 = arith.subf %187, %184 : vector<4x128xf32>
    %189 = arith.mulf %188, %182 : vector<4x128xf32>
    %190 = arith.addf %186, %189 : vector<4x128xf32>
    %c80 = arith.constant 80 : index
    %c0_52 = arith.constant 0 : index
    %191 = vector.load %arg10[%c80, %c0_52] : memref<128x128xf32, #tpu.memory_space<vmem>>, vector<4x128xf32>
    tpu.vector_store %arg10[%c80, %c0_52], %190 {strides = array<i32>} : memref<128x128xf32, #tpu.memory_space<vmem>>, vector<4x128xf32>,
    %192 = vector.extract_strided_slice %16 {offsets = [84, 0], sizes = [4, 128], strides = [1, 1]} : vector<128x128xf32> to vector<4x128xf32>
    %193 = vector.extract_strided_slice %10 {offsets = [84, 0], sizes = [4, 128], strides = [1, 1]} : vector<128x128xf32> to vector<4x128xf32>
    %194 = arith.mulf %192, %193 : vector<4x128xf32>
    %cst_53 = arith.constant 1.000000e+00 : f32
    %195 = vector.broadcast %cst_53 : f32 to vector<4x128xf32>
    %196 = arith.subf %195, %192 : vector<4x128xf32>
    %197 = arith.mulf %196, %190 : vector<4x128xf32>
    %198 = arith.addf %194, %197 : vector<4x128xf32>
    %c84 = arith.constant 84 : index
    %c0_54 = arith.constant 0 : index
    %199 = vector.load %arg10[%c84, %c0_54] : memref<128x128xf32, #tpu.memory_space<vmem>>, vector<4x128xf32>
    tpu.vector_store %arg10[%c84, %c0_54], %198 {strides = array<i32>} : memref<128x128xf32, #tpu.memory_space<vmem>>, vector<4x128xf32>,
    %200 = vector.extract_strided_slice %16 {offsets = [88, 0], sizes = [4, 128], strides = [1, 1]} : vector<128x128xf32> to vector<4x128xf32>
    %201 = vector.extract_strided_slice %10 {offsets = [88, 0], sizes = [4, 128], strides = [1, 1]} : vector<128x128xf32> to vector<4x128xf32>
    %202 = arith.mulf %200, %201 : vector<4x128xf32>
    %cst_55 = arith.constant 1.000000e+00 : f32
    %203 = vector.broadcast %cst_55 : f32 to vector<4x128xf32>
    %204 = arith.subf %203, %200 : vector<4x128xf32>
    %205 = arith.mulf %204, %198 : vector<4x128xf32>
    %206 = arith.addf %202, %205 : vector<4x128xf32>
    %c88 = arith.constant 88 : index
    %c0_56 = arith.constant 0 : index
    %207 = vector.load %arg10[%c88, %c0_56] : memref<128x128xf32, #tpu.memory_space<vmem>>, vector<4x128xf32>
    tpu.vector_store %arg10[%c88, %c0_56], %206 {strides = array<i32>} : memref<128x128xf32, #tpu.memory_space<vmem>>, vector<4x128xf32>,
    %208 = vector.extract_strided_slice %16 {offsets = [92, 0], sizes = [4, 128], strides = [1, 1]} : vector<128x128xf32> to vector<4x128xf32>
    %209 = vector.extract_strided_slice %10 {offsets = [92, 0], sizes = [4, 128], strides = [1, 1]} : vector<128x128xf32> to vector<4x128xf32>
    %210 = arith.mulf %208, %209 : vector<4x128xf32>
    %cst_57 = arith.constant 1.000000e+00 : f32
    %211 = vector.broadcast %cst_57 : f32 to vector<4x128xf32>
    %212 = arith.subf %211, %208 : vector<4x128xf32>
    %213 = arith.mulf %212, %206 : vector<4x128xf32>
    %214 = arith.addf %210, %213 : vector<4x128xf32>
    %c92 = arith.constant 92 : index
    %c0_58 = arith.constant 0 : index
    %215 = vector.load %arg10[%c92, %c0_58] : memref<128x128xf32, #tpu.memory_space<vmem>>, vector<4x128xf32>
    tpu.vector_store %arg10[%c92, %c0_58], %214 {strides = array<i32>} : memref<128x128xf32, #tpu.memory_space<vmem>>, vector<4x128xf32>,
    %216 = vector.extract_strided_slice %16 {offsets = [96, 0], sizes = [4, 128], strides = [1, 1]} : vector<128x128xf32> to vector<4x128xf32>
    %217 = vector.extract_strided_slice %10 {offsets = [96, 0], sizes = [4, 128], strides = [1, 1]} : vector<128x128xf32> to vector<4x128xf32>
    %218 = arith.mulf %216, %217 : vector<4x128xf32>
    %cst_59 = arith.constant 1.000000e+00 : f32
    %219 = vector.broadcast %cst_59 : f32 to vector<4x128xf32>
    %220 = arith.subf %219, %216 : vector<4x128xf32>
    %221 = arith.mulf %220, %214 : vector<4x128xf32>
    %222 = arith.addf %218, %221 : vector<4x128xf32>
    %c96 = arith.constant 96 : index
    %c0_60 = arith.constant 0 : index
    %223 = vector.load %arg10[%c96, %c0_60] : memref<128x128xf32, #tpu.memory_space<vmem>>, vector<4x128xf32>
    tpu.vector_store %arg10[%c96, %c0_60], %222 {strides = array<i32>} : memref<128x128xf32, #tpu.memory_space<vmem>>, vector<4x128xf32>,
    %224 = vector.extract_strided_slice %16 {offsets = [100, 0], sizes = [4, 128], strides = [1, 1]} : vector<128x128xf32> to vector<4x128xf32>
    %225 = vector.extract_strided_slice %10 {offsets = [100, 0], sizes = [4, 128], strides = [1, 1]} : vector<128x128xf32> to vector<4x128xf32>
    %226 = arith.mulf %224, %225 : vector<4x128xf32>
    %cst_61 = arith.constant 1.000000e+00 : f32
    %227 = vector.broadcast %cst_61 : f32 to vector<4x128xf32>
    %228 = arith.subf %227, %224 : vector<4x128xf32>
    %229 = arith.mulf %228, %222 : vector<4x128xf32>
    %230 = arith.addf %226, %229 : vector<4x128xf32>
    %c100 = arith.constant 100 : index
    %c0_62 = arith.constant 0 : index
    %231 = vector.load %arg10[%c100, %c0_62] : memref<128x128xf32, #tpu.memory_space<vmem>>, vector<4x128xf32>
    tpu.vector_store %arg10[%c100, %c0_62], %230 {strides = array<i32>} : memref<128x128xf32, #tpu.memory_space<vmem>>, vector<4x128xf32>,
    %232 = vector.extract_strided_slice %16 {offsets = [104, 0], sizes = [4, 128], strides = [1, 1]} : vector<128x128xf32> to vector<4x128xf32>
    %233 = vector.extract_strided_slice %10 {offsets = [104, 0], sizes = [4, 128], strides = [1, 1]} : vector<128x128xf32> to vector<4x128xf32>
    %234 = arith.mulf %232, %233 : vector<4x128xf32>
    %cst_63 = arith.constant 1.000000e+00 : f32
    %235 = vector.broadcast %cst_63 : f32 to vector<4x128xf32>
    %236 = arith.subf %235, %232 : vector<4x128xf32>
    %237 = arith.mulf %236, %230 : vector<4x128xf32>
    %238 = arith.addf %234, %237 : vector<4x128xf32>
    %c104 = arith.constant 104 : index
    %c0_64 = arith.constant 0 : index
    %239 = vector.load %arg10[%c104, %c0_64] : memref<128x128xf32, #tpu.memory_space<vmem>>, vector<4x128xf32>
    tpu.vector_store %arg10[%c104, %c0_64], %238 {strides = array<i32>} : memref<128x128xf32, #tpu.memory_space<vmem>>, vector<4x128xf32>,
    %240 = vector.extract_strided_slice %16 {offsets = [108, 0], sizes = [4, 128], strides = [1, 1]} : vector<128x128xf32> to vector<4x128xf32>
    %241 = vector.extract_strided_slice %10 {offsets = [108, 0], sizes = [4, 128], strides = [1, 1]} : vector<128x128xf32> to vector<4x128xf32>
    %242 = arith.mulf %240, %241 : vector<4x128xf32>
    %cst_65 = arith.constant 1.000000e+00 : f32
    %243 = vector.broadcast %cst_65 : f32 to vector<4x128xf32>
    %244 = arith.subf %243, %240 : vector<4x128xf32>
    %245 = arith.mulf %244, %238 : vector<4x128xf32>
    %246 = arith.addf %242, %245 : vector<4x128xf32>
    %c108 = arith.constant 108 : index
    %c0_66 = arith.constant 0 : index
    %247 = vector.load %arg10[%c108, %c0_66] : memref<128x128xf32, #tpu.memory_space<vmem>>, vector<4x128xf32>
    tpu.vector_store %arg10[%c108, %c0_66], %246 {strides = array<i32>} : memref<128x128xf32, #tpu.memory_space<vmem>>, vector<4x128xf32>,
    %248 = vector.extract_strided_slice %16 {offsets = [112, 0], sizes = [4, 128], strides = [1, 1]} : vector<128x128xf32> to vector<4x128xf32>
    %249 = vector.extract_strided_slice %10 {offsets = [112, 0], sizes = [4, 128], strides = [1, 1]} : vector<128x128xf32> to vector<4x128xf32>
    %250 = arith.mulf %248, %249 : vector<4x128xf32>
    %cst_67 = arith.constant 1.000000e+00 : f32
    %251 = vector.broadcast %cst_67 : f32 to vector<4x128xf32>
    %252 = arith.subf %251, %248 : vector<4x128xf32>
    %253 = arith.mulf %252, %246 : vector<4x128xf32>
    %254 = arith.addf %250, %253 : vector<4x128xf32>
    %c112 = arith.constant 112 : index
    %c0_68 = arith.constant 0 : index
    %255 = vector.load %arg10[%c112, %c0_68] : memref<128x128xf32, #tpu.memory_space<vmem>>, vector<4x128xf32>
    tpu.vector_store %arg10[%c112, %c0_68], %254 {strides = array<i32>} : memref<128x128xf32, #tpu.memory_space<vmem>>, vector<4x128xf32>,
    %256 = vector.extract_strided_slice %16 {offsets = [116, 0], sizes = [4, 128], strides = [1, 1]} : vector<128x128xf32> to vector<4x128xf32>
    %257 = vector.extract_strided_slice %10 {offsets = [116, 0], sizes = [4, 128], strides = [1, 1]} : vector<128x128xf32> to vector<4x128xf32>
    %258 = arith.mulf %256, %257 : vector<4x128xf32>
    %cst_69 = arith.constant 1.000000e+00 : f32
    %259 = vector.broadcast %cst_69 : f32 to vector<4x128xf32>
    %260 = arith.subf %259, %256 : vector<4x128xf32>
    %261 = arith.mulf %260, %254 : vector<4x128xf32>
    %262 = arith.addf %258, %261 : vector<4x128xf32>
    %c116 = arith.constant 116 : index
    %c0_70 = arith.constant 0 : index
    %263 = vector.load %arg10[%c116, %c0_70] : memref<128x128xf32, #tpu.memory_space<vmem>>, vector<4x128xf32>
    tpu.vector_store %arg10[%c116, %c0_70], %262 {strides = array<i32>} : memref<128x128xf32, #tpu.memory_space<vmem>>, vector<4x128xf32>,
    %264 = vector.extract_strided_slice %16 {offsets = [120, 0], sizes = [4, 128], strides = [1, 1]} : vector<128x128xf32> to vector<4x128xf32>
    %265 = vector.extract_strided_slice %10 {offsets = [120, 0], sizes = [4, 128], strides = [1, 1]} : vector<128x128xf32> to vector<4x128xf32>
    %266 = arith.mulf %264, %265 : vector<4x128xf32>
    %cst_71 = arith.constant 1.000000e+00 : f32
    %267 = vector.broadcast %cst_71 : f32 to vector<4x128xf32>
    %268 = arith.subf %267, %264 : vector<4x128xf32>
    %269 = arith.mulf %268, %262 : vector<4x128xf32>
    %270 = arith.addf %266, %269 : vector<4x128xf32>
    %c120 = arith.constant 120 : index
    %c0_72 = arith.constant 0 : index
    %271 = vector.load %arg10[%c120, %c0_72] : memref<128x128xf32, #tpu.memory_space<vmem>>, vector<4x128xf32>
    tpu.vector_store %arg10[%c120, %c0_72], %270 {strides = array<i32>} : memref<128x128xf32, #tpu.memory_space<vmem>>, vector<4x128xf32>,
    %272 = vector.extract_strided_slice %16 {offsets = [124, 0], sizes = [4, 128], strides = [1, 1]} : vector<128x128xf32> to vector<4x128xf32>
    %273 = vector.extract_strided_slice %10 {offsets = [124, 0], sizes = [4, 128], strides = [1, 1]} : vector<128x128xf32> to vector<4x128xf32>
    %274 = arith.mulf %272, %273 : vector<4x128xf32>
    %cst_73 = arith.constant 1.000000e+00 : f32
    %275 = vector.broadcast %cst_73 : f32 to vector<4x128xf32>
    %276 = arith.subf %275, %272 : vector<4x128xf32>
    %277 = arith.mulf %276, %270 : vector<4x128xf32>
    %278 = arith.addf %274, %277 : vector<4x128xf32>
    %c124 = arith.constant 124 : index
    %c0_74 = arith.constant 0 : index
    %279 = vector.load %arg10[%c124, %c0_74] : memref<128x128xf32, #tpu.memory_space<vmem>>, vector<4x128xf32>
    tpu.vector_store %arg10[%c124, %c0_74], %278 {strides = array<i32>} : memref<128x128xf32, #tpu.memory_space<vmem>>, vector<4x128xf32>,
    %c0_75 = arith.constant 0 : index
    %c0_76 = arith.constant 0 : index
    %280 = vector.load %arg9[%c0_75, %c0_76] : memref<4x128xf32, #tpu.memory_space<vmem>>, vector<4x128xf32>
    tpu.vector_store %arg9[%c0_75, %c0_76], %278 {strides = array<i32>} : memref<4x128xf32, #tpu.memory_space<vmem>>, vector<4x128xf32>,
    %c0_i32_77 = arith.constant 0 : i32
    %281 = arith.cmpi eq, %arg0, %c0_i32_77 : i32
    %282 = arith.extui %281 : i1 to i32
    %c0_i32_78 = arith.constant 0 : i32
    %283 = arith.cmpi ne, %282, %c0_i32_78 : i32
    scf.if %283 {
      %c0_99 = arith.constant 0 : index
      %c0_100 = arith.constant 0 : index
      %322 = vector.load %arg8[%c0_99, %c0_100] : memref<4x128xf32, #tpu.memory_space<vmem>>, vector<4x128xf32>
      tpu.vector_store %arg8[%c0_99, %c0_100], %278 {strides = array<i32>} : memref<4x128xf32, #tpu.memory_space<vmem>>, vector<4x128xf32>,
    } else {
    }
    %c0_79 = arith.constant 0 : index
    %c0_80 = arith.constant 0 : index
    %284 = vector.load %arg10[%c0_79, %c0_80] : memref<128x128xf32, #tpu.memory_space<vmem>>, vector<128x128xf32>
    %285 = arith.mulf %22, %284 : vector<128x128xf32>
    %cst_81 = arith.constant -5.000000e+00 : f32
    %cst_82 = arith.constant 5.000000e+00 : f32
    %286 = vector.broadcast %cst_81 : f32 to vector<128x128xf32>
    %287 = arith.maximumf %286, %285 : vector<128x128xf32>
    %288 = vector.broadcast %cst_82 : f32 to vector<128x128xf32>
    %289 = arith.minimumf %288, %287 : vector<128x128xf32>
    %290 = arith.truncf %289 : vector<128x128xf32> to vector<128x128xbf16>
    %c0_83 = arith.constant 0 : index
    %c0_84 = arith.constant 0 : index
    %291 = vector.load %arg4[%c0_83, %c0_84] : memref<128x128xbf16, #tpu.memory_space<vmem>>, vector<128x128xbf16>
    %cst_85 = arith.constant dense<0.000000e+00> : vector<128x128xf32>
    %292 = tpu.matmul %290, %291, %cst_85 {dimension_numbers = #tpu.dot_dimension_numbers<[1], [0], [0], [1], [0, 0, 1, 1], [], []>} : vector<128x128xbf16>, vector<128x128xbf16>, vector<128x128xf32> -> vector<128x128xf32>
    %cst_86 = arith.constant -5.000000e+00 : f32
    %cst_87 = arith.constant 5.000000e+00 : f32
    %293 = vector.broadcast %cst_86 : f32 to vector<128x128xf32>
    %294 = arith.maximumf %293, %292 : vector<128x128xf32>
    %295 = vector.broadcast %cst_87 : f32 to vector<128x128xf32>
    %296 = arith.minimumf %295, %294 : vector<128x128xf32>
    %cst_88 = arith.constant dense<0.000000e+00> : vector<128xf32>
    %297 = vector.multi_reduction <add>, %296, %cst_88 [1] : vector<128x128xf32> to vector<128xf32>
    %298 = vector.shape_cast %297 : vector<128xf32> to vector<128x1xf32>
    %cst_89 = arith.constant 0.0416666679 : f32
    %299 = vector.broadcast %cst_89 : f32 to vector<128x1xf32>
    %300 = arith.mulf %298, %299 : vector<128x1xf32>
    %301 = arith.mulf %296, %296 : vector<128x128xf32>
    %cst_90 = arith.constant dense<0.000000e+00> : vector<128xf32>
    %302 = vector.multi_reduction <add>, %301, %cst_90 [1] : vector<128x128xf32> to vector<128xf32>
    %303 = vector.shape_cast %302 : vector<128xf32> to vector<128x1xf32>
    %cst_91 = arith.constant 0.0416666679 : f32
    %304 = vector.broadcast %cst_91 : f32 to vector<128x1xf32>
    %305 = arith.mulf %303, %304 : vector<128x1xf32>
    %306 = arith.mulf %300, %300 : vector<128x1xf32>
    %307 = arith.subf %305, %306 : vector<128x1xf32>
    %c0_92 = arith.constant 0 : index
    %c0_93 = arith.constant 0 : index
    %308 = vector.load %arg5[%c0_92, %c0_93] : memref<1x128xf32, #tpu.memory_space<vmem>>, vector<1x128xf32>
    %309 = vector.broadcast %300 : vector<128x1xf32> to vector<128x128xf32>
    %310 = arith.subf %296, %309 : vector<128x128xf32>
    %311 = vector.broadcast %308 : vector<1x128xf32> to vector<128x128xf32>
    %312 = arith.mulf %311, %310 : vector<128x128xf32>
    %cst_94 = arith.constant 9.99999974E-6 : f32
    %313 = vector.broadcast %cst_94 : f32 to vector<128x1xf32>
    %314 = arith.addf %307, %313 : vector<128x1xf32>
    %315 = math.rsqrt %314 : vector<128x1xf32>
    %316 = vector.broadcast %315 : vector<128x1xf32> to vector<128x128xf32>
    %317 = arith.mulf %312, %316 : vector<128x128xf32>
    %c0_95 = arith.constant 0 : index
    %c0_96 = arith.constant 0 : index
    %318 = vector.load %arg6[%c0_95, %c0_96] : memref<1x128xf32, #tpu.memory_space<vmem>>, vector<1x128xf32>
    %319 = vector.broadcast %318 : vector<1x128xf32> to vector<128x128xf32>
    %320 = arith.addf %317, %319 : vector<128x128xf32>
    %c0_97 = arith.constant 0 : index
    %c0_98 = arith.constant 0 : index
    %321 = vector.load %arg7[%c0_97, %c0_98] : memref<128x128xf32, #tpu.memory_space<vmem>>, vector<128x128xf32>
    tpu.vector_store %arg7[%c0_97, %c0_98], %320 {strides = array<i32>} : memref<128x128xf32, #tpu.memory_space<vmem>>, vector<128x128xf32>,
    return
  }
  func.func @transform_0(%arg0: i32) -> (i32, i32) {
    %c0_i32 = arith.constant 0 : i32
    %c0_i32_0 = arith.constant 0 : i32
    return %arg0, %c0_i32 : i32, i32
  }
  func.func @transform_1(%arg0: i32) -> (i32, i32) {
    %c0_i32 = arith.constant 0 : i32
    %c0_i32_0 = arith.constant 0 : i32
    %c0_i32_1 = arith.constant 0 : i32
    return %c0_i32, %c0_i32_0 : i32, i32
  }
  func.func @transform_2(%arg0: i32) -> (i32, i32) {
    %c0_i32 = arith.constant 0 : i32
    %c0_i32_0 = arith.constant 0 : i32
    %c0_i32_1 = arith.constant 0 : i32
    return %c0_i32, %c0_i32_0 : i32, i32
  }
  func.func @transform_3(%arg0: i32) -> (i32, i32) {
    %c0_i32 = arith.constant 0 : i32
    %c0_i32_0 = arith.constant 0 : i32
    %c0_i32_1 = arith.constant 0 : i32
    return %c0_i32, %c0_i32_0 : i32, i32
  }
  func.func @transform_4(%arg0: i32) -> (i32, i32) {
    %c0_i32 = arith.constant 0 : i32
    %c0_i32_0 = arith.constant 0 : i32
    %c0_i32_1 = arith.constant 0 : i32
    return %c0_i32, %c0_i32_0 : i32, i32
  }
  func.func @transform_5(%arg0: i32) -> (i32, i32) {
    %c0_i32 = arith.constant 0 : i32
    %c0_i32_0 = arith.constant 0 : i32
    %c0_i32_1 = arith.constant 0 : i32
    return %c0_i32, %c0_i32_0 : i32, i32
  }
  func.func @transform_6(%arg0: i32) -> (i32, i32) {
    %c0_i32 = arith.constant 0 : i32
    %c0_i32_0 = arith.constant 0 : i32
    return %arg0, %c0_i32 : i32, i32
  }
  func.func @transform_7(%arg0: i32) -> (i32, i32) {
    %c0_i32 = arith.constant 0 : i32
    %c0_i32_0 = arith.constant 0 : i32
    %c0_i32_1 = arith.constant 0 : i32
    return %c0_i32, %c0_i32_0 : i32, i32
  }
}

module attributes {stable_mosaic.version = 11 : i64} {
  func.func @_input_proj_ln_kernel(%arg0: i32, %arg1: memref<128x16xf32, #tpu.memory_space<vmem>>, %arg2: memref<16x128xbf16, #tpu.memory_space<vmem>>, %arg3: memref<1x128xf32, #tpu.memory_space<vmem>>, %arg4: memref<1x128xf32, #tpu.memory_space<vmem>>, %arg5: memref<1x128xf32, #tpu.memory_space<vmem>>, %arg6: memref<128x128xbf16, #tpu.memory_space<vmem>>) attributes {dimension_semantics = [#tpu.dimension_semantics<parallel>], iteration_bounds = array<i64: 1>, scalar_prefetch = 0 : i64, scratch_operands = 0 : i64, tpu.core_type = #tpu.core_type<tc>, window_params = [{transform_indices = @transform_0, window_bounds = array<i64: 128, 16>}, {pipeline_mode = #tpu.pipeline_mode<synchronous>, transform_indices = @transform_1, window_bounds = array<i64: 16, 128>}, {pipeline_mode = #tpu.pipeline_mode<synchronous>, transform_indices = @transform_2, window_bounds = array<i64: 1, 128>}, {pipeline_mode = #tpu.pipeline_mode<synchronous>, transform_indices = @transform_3, window_bounds = array<i64: 1, 128>}, {pipeline_mode = #tpu.pipeline_mode<synchronous>, transform_indices = @transform_4, window_bounds = array<i64: 1, 128>}, {transform_indices = @transform_5, window_bounds = array<i64: 128, 128>}]} {
    %c0 = arith.constant 0 : index
    %c0_0 = arith.constant 0 : index
    %0 = vector.load %arg1[%c0, %c0_0] : memref<128x16xf32, #tpu.memory_space<vmem>>, vector<128x16xf32>
    %1 = arith.truncf %0 : vector<128x16xf32> to vector<128x16xbf16>
    %c0_1 = arith.constant 0 : index
    %c0_2 = arith.constant 0 : index
    %2 = vector.load %arg2[%c0_1, %c0_2] : memref<16x128xbf16, #tpu.memory_space<vmem>>, vector<16x128xbf16>
    %cst = arith.constant dense<0.000000e+00> : vector<128x128xf32>
    %3 = tpu.matmul %1, %2, %cst {dimension_numbers = #tpu.dot_dimension_numbers<[1], [0], [0], [1], [0, 0, 1, 1], [], []>} : vector<128x16xbf16>, vector<16x128xbf16>, vector<128x128xf32> -> vector<128x128xf32>
    %c0_3 = arith.constant 0 : index
    %c0_4 = arith.constant 0 : index
    %4 = vector.load %arg3[%c0_3, %c0_4] : memref<1x128xf32, #tpu.memory_space<vmem>>, vector<1x128xf32>
    %5 = vector.broadcast %4 : vector<1x128xf32> to vector<128x128xf32>
    %6 = arith.addf %3, %5 : vector<128x128xf32>
    %cst_5 = arith.constant dense<0.000000e+00> : vector<128xf32>
    %7 = vector.multi_reduction <add>, %6, %cst_5 [1] : vector<128x128xf32> to vector<128xf32>
    %8 = vector.shape_cast %7 : vector<128xf32> to vector<128x1xf32>
    %cst_6 = arith.constant 0.0416666679 : f32
    %9 = vector.broadcast %cst_6 : f32 to vector<128x1xf32>
    %10 = arith.mulf %8, %9 : vector<128x1xf32>
    %11 = arith.mulf %6, %6 : vector<128x128xf32>
    %cst_7 = arith.constant dense<0.000000e+00> : vector<128xf32>
    %12 = vector.multi_reduction <add>, %11, %cst_7 [1] : vector<128x128xf32> to vector<128xf32>
    %13 = vector.shape_cast %12 : vector<128xf32> to vector<128x1xf32>
    %cst_8 = arith.constant 0.0416666679 : f32
    %14 = vector.broadcast %cst_8 : f32 to vector<128x1xf32>
    %15 = arith.mulf %13, %14 : vector<128x1xf32>
    %16 = arith.mulf %10, %10 : vector<128x1xf32>
    %17 = arith.subf %15, %16 : vector<128x1xf32>
    %c0_9 = arith.constant 0 : index
    %c0_10 = arith.constant 0 : index
    %18 = vector.load %arg4[%c0_9, %c0_10] : memref<1x128xf32, #tpu.memory_space<vmem>>, vector<1x128xf32>
    %19 = vector.broadcast %10 : vector<128x1xf32> to vector<128x128xf32>
    %20 = arith.subf %6, %19 : vector<128x128xf32>
    %21 = vector.broadcast %18 : vector<1x128xf32> to vector<128x128xf32>
    %22 = arith.mulf %21, %20 : vector<128x128xf32>
    %cst_11 = arith.constant 9.99999974E-6 : f32
    %23 = vector.broadcast %cst_11 : f32 to vector<128x1xf32>
    %24 = arith.addf %17, %23 : vector<128x1xf32>
    %25 = math.rsqrt %24 : vector<128x1xf32>
    %26 = vector.broadcast %25 : vector<128x1xf32> to vector<128x128xf32>
    %27 = arith.mulf %22, %26 : vector<128x128xf32>
    %c0_12 = arith.constant 0 : index
    %c0_13 = arith.constant 0 : index
    %28 = vector.load %arg5[%c0_12, %c0_13] : memref<1x128xf32, #tpu.memory_space<vmem>>, vector<1x128xf32>
    %29 = vector.broadcast %28 : vector<1x128xf32> to vector<128x128xf32>
    %30 = arith.addf %27, %29 : vector<128x128xf32>
    %31 = arith.truncf %30 : vector<128x128xf32> to vector<128x128xbf16>
    %c0_14 = arith.constant 0 : index
    %c0_15 = arith.constant 0 : index
    %32 = vector.load %arg6[%c0_14, %c0_15] : memref<128x128xbf16, #tpu.memory_space<vmem>>, vector<128x128xbf16>
    tpu.vector_store %arg6[%c0_14, %c0_15], %31 {strides = array<i32>} : memref<128x128xbf16, #tpu.memory_space<vmem>>, vector<128x128xbf16>,
    return
  }
  func.func @transform_0(%arg0: i32) -> (i32, i32) {
    %c0_i32 = arith.constant 0 : i32
    %c0_i32_0 = arith.constant 0 : i32
    return %arg0, %c0_i32 : i32, i32
  }
  func.func @transform_1(%arg0: i32) -> (i32, i32) {
    %c0_i32 = arith.constant 0 : i32
    %c0_i32_0 = arith.constant 0 : i32
    %c0_i32_1 = arith.constant 0 : i32
    return %c0_i32, %c0_i32_0 : i32, i32
  }
  func.func @transform_2(%arg0: i32) -> (i32, i32) {
    %c0_i32 = arith.constant 0 : i32
    %c0_i32_0 = arith.constant 0 : i32
    %c0_i32_1 = arith.constant 0 : i32
    return %c0_i32, %c0_i32_0 : i32, i32
  }
  func.func @transform_3(%arg0: i32) -> (i32, i32) {
    %c0_i32 = arith.constant 0 : i32
    %c0_i32_0 = arith.constant 0 : i32
    %c0_i32_1 = arith.constant 0 : i32
    return %c0_i32, %c0_i32_0 : i32, i32
  }
  func.func @transform_4(%arg0: i32) -> (i32, i32) {
    %c0_i32 = arith.constant 0 : i32
    %c0_i32_0 = arith.constant 0 : i32
    %c0_i32_1 = arith.constant 0 : i32
    return %c0_i32, %c0_i32_0 : i32, i32
  }
  func.func @transform_5(%arg0: i32) -> (i32, i32) {
    %c0_i32 = arith.constant 0 : i32
    %c0_i32_0 = arith.constant 0 : i32
    return %arg0, %c0_i32 : i32, i32
  }
}

module attributes {stable_mosaic.version = 11 : i64} {
  func.func @_qrnn_layer_kernel(%arg0: i32, %arg1: memref<128x128xbf16, #tpu.memory_space<vmem>>, %arg2: memref<128x384xbf16, #tpu.memory_space<vmem>>, %arg3: memref<1x384xf32, #tpu.memory_space<vmem>>, %arg4: memref<128x128xbf16, #tpu.memory_space<vmem>>, %arg5: memref<1x128xf32, #tpu.memory_space<vmem>>, %arg6: memref<1x128xf32, #tpu.memory_space<vmem>>, %arg7: memref<128x128xbf16, #tpu.memory_space<vmem>>, %arg8: memref<4x128xf32, #tpu.memory_space<vmem>>, %arg9: memref<4x128xf32, #tpu.memory_space<vmem>>, %arg10: memref<128x128xf32, #tpu.memory_space<vmem>>) attributes {dimension_semantics = [#tpu.dimension_semantics<arbitrary>], iteration_bounds = array<i64: 1>, scalar_prefetch = 0 : i64, scratch_operands = 2 : i64, tpu.core_type = #tpu.core_type<tc>, window_params = [{transform_indices = @transform_0, window_bounds = array<i64: 128, 128>}, {pipeline_mode = #tpu.pipeline_mode<synchronous>, transform_indices = @transform_1, window_bounds = array<i64: 128, 384>}, {pipeline_mode = #tpu.pipeline_mode<synchronous>, transform_indices = @transform_2, window_bounds = array<i64: 1, 384>}, {pipeline_mode = #tpu.pipeline_mode<synchronous>, transform_indices = @transform_3, window_bounds = array<i64: 128, 128>}, {pipeline_mode = #tpu.pipeline_mode<synchronous>, transform_indices = @transform_4, window_bounds = array<i64: 1, 128>}, {pipeline_mode = #tpu.pipeline_mode<synchronous>, transform_indices = @transform_5, window_bounds = array<i64: 1, 128>}, {transform_indices = @transform_6, window_bounds = array<i64: 128, 128>}, {pipeline_mode = #tpu.pipeline_mode<synchronous>, transform_indices = @transform_7, window_bounds = array<i64: 4, 128>}]} {
    %c0_i32 = arith.constant 0 : i32
    %0 = arith.cmpi eq, %arg0, %c0_i32 : i32
    %1 = arith.extui %0 : i1 to i32
    %c0_i32_0 = arith.constant 0 : i32
    %2 = arith.cmpi ne, %1, %c0_i32_0 : i32
    scf.if %2 {
      %cst_99 = arith.constant 0.000000e+00 : f32
      %323 = vector.broadcast %cst_99 : f32 to vector<4x128xf32>
      %c0_100 = arith.constant 0 : index
      %c0_101 = arith.constant 0 : index
      %324 = vector.load %arg9[%c0_100, %c0_101] : memref<4x128xf32, #tpu.memory_space<vmem>>, vector<4x128xf32>
      tpu.vector_store %arg9[%c0_100, %c0_101], %323 {strides = array<i32>} : memref<4x128xf32, #tpu.memory_space<vmem>>, vector<4x128xf32>,
    } else {
    }
    %c0 = arith.constant 0 : index
    %c0_1 = arith.constant 0 : index
    %3 = vector.load %arg1[%c0, %c0_1] : memref<128x128xbf16, #tpu.memory_space<vmem>>, vector<128x128xbf16>
    %c0_2 = arith.constant 0 : index
    %c0_3 = arith.constant 0 : index
    %4 = vector.load %arg2[%c0_2, %c0_3] : memref<128x384xbf16, #tpu.memory_space<vmem>>, vector<128x384xbf16>
    %cst = arith.constant dense<0.000000e+00> : vector<128x384xf32>
    %5 = tpu.matmul %3, %4, %cst {dimension_numbers = #tpu.dot_dimension_numbers<[1], [0], [0], [1], [0, 0, 1, 1], [], []>} : vector<128x128xbf16>, vector<128x384xbf16>, vector<128x384xf32> -> vector<128x384xf32>
    %c0_4 = arith.constant 0 : index
    %c0_5 = arith.constant 0 : index
    %6 = vector.load %arg3[%c0_4, %c0_5] : memref<1x384xf32, #tpu.memory_space<vmem>>, vector<1x384xf32>
    %7 = vector.broadcast %6 : vector<1x384xf32> to vector<128x384xf32>
    %8 = arith.addf %5, %7 : vector<128x384xf32>
    %9 = vector.extract_strided_slice %8 {offsets = [0, 0], sizes = [128, 128], strides = [1, 1]} : vector<128x384xf32> to vector<128x128xf32>
    %10 = math.tanh %9 : vector<128x128xf32>
    %11 = vector.extract_strided_slice %8 {offsets = [0, 128], sizes = [128, 128], strides = [1, 1]} : vector<128x384xf32> to vector<128x128xf32>
    %12 = arith.negf %11 : vector<128x128xf32>
    %13 = math.exp %12 : vector<128x128xf32>
    %cst_6 = arith.constant 1.000000e+00 : f32
    %14 = vector.broadcast %cst_6 : f32 to vector<128x128xf32>
    %15 = arith.addf %14, %13 : vector<128x128xf32>
    %16 = arith.divf %14, %15 : vector<128x128xf32>
    %17 = vector.extract_strided_slice %8 {offsets = [0, 256], sizes = [128, 128], strides = [1, 1]} : vector<128x384xf32> to vector<128x128xf32>
    %18 = arith.negf %17 : vector<128x128xf32>
    %19 = math.exp %18 : vector<128x128xf32>
    %cst_7 = arith.constant 1.000000e+00 : f32
    %20 = vector.broadcast %cst_7 : f32 to vector<128x128xf32>
    %21 = arith.addf %20, %19 : vector<128x128xf32>
    %22 = arith.divf %20, %21 : vector<128x128xf32>
    %c0_8 = arith.constant 0 : index
    %c0_9 = arith.constant 0 : index
    %23 = vector.load %arg9[%c0_8, %c0_9] : memref<4x128xf32, #tpu.memory_space<vmem>>, vector<4x128xf32>
    %24 = vector.extract_strided_slice %16 {offsets = [0, 0], sizes = [4, 128], strides = [1, 1]} : vector<128x128xf32> to vector<4x128xf32>
    %25 = vector.extract_strided_slice %10 {offsets = [0, 0], sizes = [4, 128], strides = [1, 1]} : vector<128x128xf32> to vector<4x128xf32>
    %26 = arith.mulf %24, %25 : vector<4x128xf32>
    %cst_10 = arith.constant 1.000000e+00 : f32
    %27 = vector.broadcast %cst_10 : f32 to vector<4x128xf32>
    %28 = arith.subf %27, %24 : vector<4x128xf32>
    %29 = arith.mulf %28, %23 : vector<4x128xf32>
    %30 = arith.addf %26, %29 : vector<4x128xf32>
    %c0_11 = arith.constant 0 : index
    %c0_12 = arith.constant 0 : index
    %31 = vector.load %arg10[%c0_11, %c0_12] : memref<128x128xf32, #tpu.memory_space<vmem>>, vector<4x128xf32>
    tpu.vector_store %arg10[%c0_11, %c0_12], %30 {strides = array<i32>} : memref<128x128xf32, #tpu.memory_space<vmem>>, vector<4x128xf32>,
    %32 = vector.extract_strided_slice %16 {offsets = [4, 0], sizes = [4, 128], strides = [1, 1]} : vector<128x128xf32> to vector<4x128xf32>
    %33 = vector.extract_strided_slice %10 {offsets = [4, 0], sizes = [4, 128], strides = [1, 1]} : vector<128x128xf32> to vector<4x128xf32>
    %34 = arith.mulf %32, %33 : vector<4x128xf32>
    %cst_13 = arith.constant 1.000000e+00 : f32
    %35 = vector.broadcast %cst_13 : f32 to vector<4x128xf32>
    %36 = arith.subf %35, %32 : vector<4x128xf32>
    %37 = arith.mulf %36, %30 : vector<4x128xf32>
    %38 = arith.addf %34, %37 : vector<4x128xf32>
    %c4 = arith.constant 4 : index
    %c0_14 = arith.constant 0 : index
    %39 = vector.load %arg10[%c4, %c0_14] : memref<128x128xf32, #tpu.memory_space<vmem>>, vector<4x128xf32>
    tpu.vector_store %arg10[%c4, %c0_14], %38 {strides = array<i32>} : memref<128x128xf32, #tpu.memory_space<vmem>>, vector<4x128xf32>,
    %40 = vector.extract_strided_slice %16 {offsets = [8, 0], sizes = [4, 128], strides = [1, 1]} : vector<128x128xf32> to vector<4x128xf32>
    %41 = vector.extract_strided_slice %10 {offsets = [8, 0], sizes = [4, 128], strides = [1, 1]} : vector<128x128xf32> to vector<4x128xf32>
    %42 = arith.mulf %40, %41 : vector<4x128xf32>
    %cst_15 = arith.constant 1.000000e+00 : f32
    %43 = vector.broadcast %cst_15 : f32 to vector<4x128xf32>
    %44 = arith.subf %43, %40 : vector<4x128xf32>
    %45 = arith.mulf %44, %38 : vector<4x128xf32>
    %46 = arith.addf %42, %45 : vector<4x128xf32>
    %c8 = arith.constant 8 : index
    %c0_16 = arith.constant 0 : index
    %47 = vector.load %arg10[%c8, %c0_16] : memref<128x128xf32, #tpu.memory_space<vmem>>, vector<4x128xf32>
    tpu.vector_store %arg10[%c8, %c0_16], %46 {strides = array<i32>} : memref<128x128xf32, #tpu.memory_space<vmem>>, vector<4x128xf32>,
    %48 = vector.extract_strided_slice %16 {offsets = [12, 0], sizes = [4, 128], strides = [1, 1]} : vector<128x128xf32> to vector<4x128xf32>
    %49 = vector.extract_strided_slice %10 {offsets = [12, 0], sizes = [4, 128], strides = [1, 1]} : vector<128x128xf32> to vector<4x128xf32>
    %50 = arith.mulf %48, %49 : vector<4x128xf32>
    %cst_17 = arith.constant 1.000000e+00 : f32
    %51 = vector.broadcast %cst_17 : f32 to vector<4x128xf32>
    %52 = arith.subf %51, %48 : vector<4x128xf32>
    %53 = arith.mulf %52, %46 : vector<4x128xf32>
    %54 = arith.addf %50, %53 : vector<4x128xf32>
    %c12 = arith.constant 12 : index
    %c0_18 = arith.constant 0 : index
    %55 = vector.load %arg10[%c12, %c0_18] : memref<128x128xf32, #tpu.memory_space<vmem>>, vector<4x128xf32>
    tpu.vector_store %arg10[%c12, %c0_18], %54 {strides = array<i32>} : memref<128x128xf32, #tpu.memory_space<vmem>>, vector<4x128xf32>,
    %56 = vector.extract_strided_slice %16 {offsets = [16, 0], sizes = [4, 128], strides = [1, 1]} : vector<128x128xf32> to vector<4x128xf32>
    %57 = vector.extract_strided_slice %10 {offsets = [16, 0], sizes = [4, 128], strides = [1, 1]} : vector<128x128xf32> to vector<4x128xf32>
    %58 = arith.mulf %56, %57 : vector<4x128xf32>
    %cst_19 = arith.constant 1.000000e+00 : f32
    %59 = vector.broadcast %cst_19 : f32 to vector<4x128xf32>
    %60 = arith.subf %59, %56 : vector<4x128xf32>
    %61 = arith.mulf %60, %54 : vector<4x128xf32>
    %62 = arith.addf %58, %61 : vector<4x128xf32>
    %c16 = arith.constant 16 : index
    %c0_20 = arith.constant 0 : index
    %63 = vector.load %arg10[%c16, %c0_20] : memref<128x128xf32, #tpu.memory_space<vmem>>, vector<4x128xf32>
    tpu.vector_store %arg10[%c16, %c0_20], %62 {strides = array<i32>} : memref<128x128xf32, #tpu.memory_space<vmem>>, vector<4x128xf32>,
    %64 = vector.extract_strided_slice %16 {offsets = [20, 0], sizes = [4, 128], strides = [1, 1]} : vector<128x128xf32> to vector<4x128xf32>
    %65 = vector.extract_strided_slice %10 {offsets = [20, 0], sizes = [4, 128], strides = [1, 1]} : vector<128x128xf32> to vector<4x128xf32>
    %66 = arith.mulf %64, %65 : vector<4x128xf32>
    %cst_21 = arith.constant 1.000000e+00 : f32
    %67 = vector.broadcast %cst_21 : f32 to vector<4x128xf32>
    %68 = arith.subf %67, %64 : vector<4x128xf32>
    %69 = arith.mulf %68, %62 : vector<4x128xf32>
    %70 = arith.addf %66, %69 : vector<4x128xf32>
    %c20 = arith.constant 20 : index
    %c0_22 = arith.constant 0 : index
    %71 = vector.load %arg10[%c20, %c0_22] : memref<128x128xf32, #tpu.memory_space<vmem>>, vector<4x128xf32>
    tpu.vector_store %arg10[%c20, %c0_22], %70 {strides = array<i32>} : memref<128x128xf32, #tpu.memory_space<vmem>>, vector<4x128xf32>,
    %72 = vector.extract_strided_slice %16 {offsets = [24, 0], sizes = [4, 128], strides = [1, 1]} : vector<128x128xf32> to vector<4x128xf32>
    %73 = vector.extract_strided_slice %10 {offsets = [24, 0], sizes = [4, 128], strides = [1, 1]} : vector<128x128xf32> to vector<4x128xf32>
    %74 = arith.mulf %72, %73 : vector<4x128xf32>
    %cst_23 = arith.constant 1.000000e+00 : f32
    %75 = vector.broadcast %cst_23 : f32 to vector<4x128xf32>
    %76 = arith.subf %75, %72 : vector<4x128xf32>
    %77 = arith.mulf %76, %70 : vector<4x128xf32>
    %78 = arith.addf %74, %77 : vector<4x128xf32>
    %c24 = arith.constant 24 : index
    %c0_24 = arith.constant 0 : index
    %79 = vector.load %arg10[%c24, %c0_24] : memref<128x128xf32, #tpu.memory_space<vmem>>, vector<4x128xf32>
    tpu.vector_store %arg10[%c24, %c0_24], %78 {strides = array<i32>} : memref<128x128xf32, #tpu.memory_space<vmem>>, vector<4x128xf32>,
    %80 = vector.extract_strided_slice %16 {offsets = [28, 0], sizes = [4, 128], strides = [1, 1]} : vector<128x128xf32> to vector<4x128xf32>
    %81 = vector.extract_strided_slice %10 {offsets = [28, 0], sizes = [4, 128], strides = [1, 1]} : vector<128x128xf32> to vector<4x128xf32>
    %82 = arith.mulf %80, %81 : vector<4x128xf32>
    %cst_25 = arith.constant 1.000000e+00 : f32
    %83 = vector.broadcast %cst_25 : f32 to vector<4x128xf32>
    %84 = arith.subf %83, %80 : vector<4x128xf32>
    %85 = arith.mulf %84, %78 : vector<4x128xf32>
    %86 = arith.addf %82, %85 : vector<4x128xf32>
    %c28 = arith.constant 28 : index
    %c0_26 = arith.constant 0 : index
    %87 = vector.load %arg10[%c28, %c0_26] : memref<128x128xf32, #tpu.memory_space<vmem>>, vector<4x128xf32>
    tpu.vector_store %arg10[%c28, %c0_26], %86 {strides = array<i32>} : memref<128x128xf32, #tpu.memory_space<vmem>>, vector<4x128xf32>,
    %88 = vector.extract_strided_slice %16 {offsets = [32, 0], sizes = [4, 128], strides = [1, 1]} : vector<128x128xf32> to vector<4x128xf32>
    %89 = vector.extract_strided_slice %10 {offsets = [32, 0], sizes = [4, 128], strides = [1, 1]} : vector<128x128xf32> to vector<4x128xf32>
    %90 = arith.mulf %88, %89 : vector<4x128xf32>
    %cst_27 = arith.constant 1.000000e+00 : f32
    %91 = vector.broadcast %cst_27 : f32 to vector<4x128xf32>
    %92 = arith.subf %91, %88 : vector<4x128xf32>
    %93 = arith.mulf %92, %86 : vector<4x128xf32>
    %94 = arith.addf %90, %93 : vector<4x128xf32>
    %c32 = arith.constant 32 : index
    %c0_28 = arith.constant 0 : index
    %95 = vector.load %arg10[%c32, %c0_28] : memref<128x128xf32, #tpu.memory_space<vmem>>, vector<4x128xf32>
    tpu.vector_store %arg10[%c32, %c0_28], %94 {strides = array<i32>} : memref<128x128xf32, #tpu.memory_space<vmem>>, vector<4x128xf32>,
    %96 = vector.extract_strided_slice %16 {offsets = [36, 0], sizes = [4, 128], strides = [1, 1]} : vector<128x128xf32> to vector<4x128xf32>
    %97 = vector.extract_strided_slice %10 {offsets = [36, 0], sizes = [4, 128], strides = [1, 1]} : vector<128x128xf32> to vector<4x128xf32>
    %98 = arith.mulf %96, %97 : vector<4x128xf32>
    %cst_29 = arith.constant 1.000000e+00 : f32
    %99 = vector.broadcast %cst_29 : f32 to vector<4x128xf32>
    %100 = arith.subf %99, %96 : vector<4x128xf32>
    %101 = arith.mulf %100, %94 : vector<4x128xf32>
    %102 = arith.addf %98, %101 : vector<4x128xf32>
    %c36 = arith.constant 36 : index
    %c0_30 = arith.constant 0 : index
    %103 = vector.load %arg10[%c36, %c0_30] : memref<128x128xf32, #tpu.memory_space<vmem>>, vector<4x128xf32>
    tpu.vector_store %arg10[%c36, %c0_30], %102 {strides = array<i32>} : memref<128x128xf32, #tpu.memory_space<vmem>>, vector<4x128xf32>,
    %104 = vector.extract_strided_slice %16 {offsets = [40, 0], sizes = [4, 128], strides = [1, 1]} : vector<128x128xf32> to vector<4x128xf32>
    %105 = vector.extract_strided_slice %10 {offsets = [40, 0], sizes = [4, 128], strides = [1, 1]} : vector<128x128xf32> to vector<4x128xf32>
    %106 = arith.mulf %104, %105 : vector<4x128xf32>
    %cst_31 = arith.constant 1.000000e+00 : f32
    %107 = vector.broadcast %cst_31 : f32 to vector<4x128xf32>
    %108 = arith.subf %107, %104 : vector<4x128xf32>
    %109 = arith.mulf %108, %102 : vector<4x128xf32>
    %110 = arith.addf %106, %109 : vector<4x128xf32>
    %c40 = arith.constant 40 : index
    %c0_32 = arith.constant 0 : index
    %111 = vector.load %arg10[%c40, %c0_32] : memref<128x128xf32, #tpu.memory_space<vmem>>, vector<4x128xf32>
    tpu.vector_store %arg10[%c40, %c0_32], %110 {strides = array<i32>} : memref<128x128xf32, #tpu.memory_space<vmem>>, vector<4x128xf32>,
    %112 = vector.extract_strided_slice %16 {offsets = [44, 0], sizes = [4, 128], strides = [1, 1]} : vector<128x128xf32> to vector<4x128xf32>
    %113 = vector.extract_strided_slice %10 {offsets = [44, 0], sizes = [4, 128], strides = [1, 1]} : vector<128x128xf32> to vector<4x128xf32>
    %114 = arith.mulf %112, %113 : vector<4x128xf32>
    %cst_33 = arith.constant 1.000000e+00 : f32
    %115 = vector.broadcast %cst_33 : f32 to vector<4x128xf32>
    %116 = arith.subf %115, %112 : vector<4x128xf32>
    %117 = arith.mulf %116, %110 : vector<4x128xf32>
    %118 = arith.addf %114, %117 : vector<4x128xf32>
    %c44 = arith.constant 44 : index
    %c0_34 = arith.constant 0 : index
    %119 = vector.load %arg10[%c44, %c0_34] : memref<128x128xf32, #tpu.memory_space<vmem>>, vector<4x128xf32>
    tpu.vector_store %arg10[%c44, %c0_34], %118 {strides = array<i32>} : memref<128x128xf32, #tpu.memory_space<vmem>>, vector<4x128xf32>,
    %120 = vector.extract_strided_slice %16 {offsets = [48, 0], sizes = [4, 128], strides = [1, 1]} : vector<128x128xf32> to vector<4x128xf32>
    %121 = vector.extract_strided_slice %10 {offsets = [48, 0], sizes = [4, 128], strides = [1, 1]} : vector<128x128xf32> to vector<4x128xf32>
    %122 = arith.mulf %120, %121 : vector<4x128xf32>
    %cst_35 = arith.constant 1.000000e+00 : f32
    %123 = vector.broadcast %cst_35 : f32 to vector<4x128xf32>
    %124 = arith.subf %123, %120 : vector<4x128xf32>
    %125 = arith.mulf %124, %118 : vector<4x128xf32>
    %126 = arith.addf %122, %125 : vector<4x128xf32>
    %c48 = arith.constant 48 : index
    %c0_36 = arith.constant 0 : index
    %127 = vector.load %arg10[%c48, %c0_36] : memref<128x128xf32, #tpu.memory_space<vmem>>, vector<4x128xf32>
    tpu.vector_store %arg10[%c48, %c0_36], %126 {strides = array<i32>} : memref<128x128xf32, #tpu.memory_space<vmem>>, vector<4x128xf32>,
    %128 = vector.extract_strided_slice %16 {offsets = [52, 0], sizes = [4, 128], strides = [1, 1]} : vector<128x128xf32> to vector<4x128xf32>
    %129 = vector.extract_strided_slice %10 {offsets = [52, 0], sizes = [4, 128], strides = [1, 1]} : vector<128x128xf32> to vector<4x128xf32>
    %130 = arith.mulf %128, %129 : vector<4x128xf32>
    %cst_37 = arith.constant 1.000000e+00 : f32
    %131 = vector.broadcast %cst_37 : f32 to vector<4x128xf32>
    %132 = arith.subf %131, %128 : vector<4x128xf32>
    %133 = arith.mulf %132, %126 : vector<4x128xf32>
    %134 = arith.addf %130, %133 : vector<4x128xf32>
    %c52 = arith.constant 52 : index
    %c0_38 = arith.constant 0 : index
    %135 = vector.load %arg10[%c52, %c0_38] : memref<128x128xf32, #tpu.memory_space<vmem>>, vector<4x128xf32>
    tpu.vector_store %arg10[%c52, %c0_38], %134 {strides = array<i32>} : memref<128x128xf32, #tpu.memory_space<vmem>>, vector<4x128xf32>,
    %136 = vector.extract_strided_slice %16 {offsets = [56, 0], sizes = [4, 128], strides = [1, 1]} : vector<128x128xf32> to vector<4x128xf32>
    %137 = vector.extract_strided_slice %10 {offsets = [56, 0], sizes = [4, 128], strides = [1, 1]} : vector<128x128xf32> to vector<4x128xf32>
    %138 = arith.mulf %136, %137 : vector<4x128xf32>
    %cst_39 = arith.constant 1.000000e+00 : f32
    %139 = vector.broadcast %cst_39 : f32 to vector<4x128xf32>
    %140 = arith.subf %139, %136 : vector<4x128xf32>
    %141 = arith.mulf %140, %134 : vector<4x128xf32>
    %142 = arith.addf %138, %141 : vector<4x128xf32>
    %c56 = arith.constant 56 : index
    %c0_40 = arith.constant 0 : index
    %143 = vector.load %arg10[%c56, %c0_40] : memref<128x128xf32, #tpu.memory_space<vmem>>, vector<4x128xf32>
    tpu.vector_store %arg10[%c56, %c0_40], %142 {strides = array<i32>} : memref<128x128xf32, #tpu.memory_space<vmem>>, vector<4x128xf32>,
    %144 = vector.extract_strided_slice %16 {offsets = [60, 0], sizes = [4, 128], strides = [1, 1]} : vector<128x128xf32> to vector<4x128xf32>
    %145 = vector.extract_strided_slice %10 {offsets = [60, 0], sizes = [4, 128], strides = [1, 1]} : vector<128x128xf32> to vector<4x128xf32>
    %146 = arith.mulf %144, %145 : vector<4x128xf32>
    %cst_41 = arith.constant 1.000000e+00 : f32
    %147 = vector.broadcast %cst_41 : f32 to vector<4x128xf32>
    %148 = arith.subf %147, %144 : vector<4x128xf32>
    %149 = arith.mulf %148, %142 : vector<4x128xf32>
    %150 = arith.addf %146, %149 : vector<4x128xf32>
    %c60 = arith.constant 60 : index
    %c0_42 = arith.constant 0 : index
    %151 = vector.load %arg10[%c60, %c0_42] : memref<128x128xf32, #tpu.memory_space<vmem>>, vector<4x128xf32>
    tpu.vector_store %arg10[%c60, %c0_42], %150 {strides = array<i32>} : memref<128x128xf32, #tpu.memory_space<vmem>>, vector<4x128xf32>,
    %152 = vector.extract_strided_slice %16 {offsets = [64, 0], sizes = [4, 128], strides = [1, 1]} : vector<128x128xf32> to vector<4x128xf32>
    %153 = vector.extract_strided_slice %10 {offsets = [64, 0], sizes = [4, 128], strides = [1, 1]} : vector<128x128xf32> to vector<4x128xf32>
    %154 = arith.mulf %152, %153 : vector<4x128xf32>
    %cst_43 = arith.constant 1.000000e+00 : f32
    %155 = vector.broadcast %cst_43 : f32 to vector<4x128xf32>
    %156 = arith.subf %155, %152 : vector<4x128xf32>
    %157 = arith.mulf %156, %150 : vector<4x128xf32>
    %158 = arith.addf %154, %157 : vector<4x128xf32>
    %c64 = arith.constant 64 : index
    %c0_44 = arith.constant 0 : index
    %159 = vector.load %arg10[%c64, %c0_44] : memref<128x128xf32, #tpu.memory_space<vmem>>, vector<4x128xf32>
    tpu.vector_store %arg10[%c64, %c0_44], %158 {strides = array<i32>} : memref<128x128xf32, #tpu.memory_space<vmem>>, vector<4x128xf32>,
    %160 = vector.extract_strided_slice %16 {offsets = [68, 0], sizes = [4, 128], strides = [1, 1]} : vector<128x128xf32> to vector<4x128xf32>
    %161 = vector.extract_strided_slice %10 {offsets = [68, 0], sizes = [4, 128], strides = [1, 1]} : vector<128x128xf32> to vector<4x128xf32>
    %162 = arith.mulf %160, %161 : vector<4x128xf32>
    %cst_45 = arith.constant 1.000000e+00 : f32
    %163 = vector.broadcast %cst_45 : f32 to vector<4x128xf32>
    %164 = arith.subf %163, %160 : vector<4x128xf32>
    %165 = arith.mulf %164, %158 : vector<4x128xf32>
    %166 = arith.addf %162, %165 : vector<4x128xf32>
    %c68 = arith.constant 68 : index
    %c0_46 = arith.constant 0 : index
    %167 = vector.load %arg10[%c68, %c0_46] : memref<128x128xf32, #tpu.memory_space<vmem>>, vector<4x128xf32>
    tpu.vector_store %arg10[%c68, %c0_46], %166 {strides = array<i32>} : memref<128x128xf32, #tpu.memory_space<vmem>>, vector<4x128xf32>,
    %168 = vector.extract_strided_slice %16 {offsets = [72, 0], sizes = [4, 128], strides = [1, 1]} : vector<128x128xf32> to vector<4x128xf32>
    %169 = vector.extract_strided_slice %10 {offsets = [72, 0], sizes = [4, 128], strides = [1, 1]} : vector<128x128xf32> to vector<4x128xf32>
    %170 = arith.mulf %168, %169 : vector<4x128xf32>
    %cst_47 = arith.constant 1.000000e+00 : f32
    %171 = vector.broadcast %cst_47 : f32 to vector<4x128xf32>
    %172 = arith.subf %171, %168 : vector<4x128xf32>
    %173 = arith.mulf %172, %166 : vector<4x128xf32>
    %174 = arith.addf %170, %173 : vector<4x128xf32>
    %c72 = arith.constant 72 : index
    %c0_48 = arith.constant 0 : index
    %175 = vector.load %arg10[%c72, %c0_48] : memref<128x128xf32, #tpu.memory_space<vmem>>, vector<4x128xf32>
    tpu.vector_store %arg10[%c72, %c0_48], %174 {strides = array<i32>} : memref<128x128xf32, #tpu.memory_space<vmem>>, vector<4x128xf32>,
    %176 = vector.extract_strided_slice %16 {offsets = [76, 0], sizes = [4, 128], strides = [1, 1]} : vector<128x128xf32> to vector<4x128xf32>
    %177 = vector.extract_strided_slice %10 {offsets = [76, 0], sizes = [4, 128], strides = [1, 1]} : vector<128x128xf32> to vector<4x128xf32>
    %178 = arith.mulf %176, %177 : vector<4x128xf32>
    %cst_49 = arith.constant 1.000000e+00 : f32
    %179 = vector.broadcast %cst_49 : f32 to vector<4x128xf32>
    %180 = arith.subf %179, %176 : vector<4x128xf32>
    %181 = arith.mulf %180, %174 : vector<4x128xf32>
    %182 = arith.addf %178, %181 : vector<4x128xf32>
    %c76 = arith.constant 76 : index
    %c0_50 = arith.constant 0 : index
    %183 = vector.load %arg10[%c76, %c0_50] : memref<128x128xf32, #tpu.memory_space<vmem>>, vector<4x128xf32>
    tpu.vector_store %arg10[%c76, %c0_50], %182 {strides = array<i32>} : memref<128x128xf32, #tpu.memory_space<vmem>>, vector<4x128xf32>,
    %184 = vector.extract_strided_slice %16 {offsets = [80, 0], sizes = [4, 128], strides = [1, 1]} : vector<128x128xf32> to vector<4x128xf32>
    %185 = vector.extract_strided_slice %10 {offsets = [80, 0], sizes = [4, 128], strides = [1, 1]} : vector<128x128xf32> to vector<4x128xf32>
    %186 = arith.mulf %184, %185 : vector<4x128xf32>
    %cst_51 = arith.constant 1.000000e+00 : f32
    %187 = vector.broadcast %cst_51 : f32 to vector<4x128xf32>
    %188 = arith.subf %187, %184 : vector<4x128xf32>
    %189 = arith.mulf %188, %182 : vector<4x128xf32>
    %190 = arith.addf %186, %189 : vector<4x128xf32>
    %c80 = arith.constant 80 : index
    %c0_52 = arith.constant 0 : index
    %191 = vector.load %arg10[%c80, %c0_52] : memref<128x128xf32, #tpu.memory_space<vmem>>, vector<4x128xf32>
    tpu.vector_store %arg10[%c80, %c0_52], %190 {strides = array<i32>} : memref<128x128xf32, #tpu.memory_space<vmem>>, vector<4x128xf32>,
    %192 = vector.extract_strided_slice %16 {offsets = [84, 0], sizes = [4, 128], strides = [1, 1]} : vector<128x128xf32> to vector<4x128xf32>
    %193 = vector.extract_strided_slice %10 {offsets = [84, 0], sizes = [4, 128], strides = [1, 1]} : vector<128x128xf32> to vector<4x128xf32>
    %194 = arith.mulf %192, %193 : vector<4x128xf32>
    %cst_53 = arith.constant 1.000000e+00 : f32
    %195 = vector.broadcast %cst_53 : f32 to vector<4x128xf32>
    %196 = arith.subf %195, %192 : vector<4x128xf32>
    %197 = arith.mulf %196, %190 : vector<4x128xf32>
    %198 = arith.addf %194, %197 : vector<4x128xf32>
    %c84 = arith.constant 84 : index
    %c0_54 = arith.constant 0 : index
    %199 = vector.load %arg10[%c84, %c0_54] : memref<128x128xf32, #tpu.memory_space<vmem>>, vector<4x128xf32>
    tpu.vector_store %arg10[%c84, %c0_54], %198 {strides = array<i32>} : memref<128x128xf32, #tpu.memory_space<vmem>>, vector<4x128xf32>,
    %200 = vector.extract_strided_slice %16 {offsets = [88, 0], sizes = [4, 128], strides = [1, 1]} : vector<128x128xf32> to vector<4x128xf32>
    %201 = vector.extract_strided_slice %10 {offsets = [88, 0], sizes = [4, 128], strides = [1, 1]} : vector<128x128xf32> to vector<4x128xf32>
    %202 = arith.mulf %200, %201 : vector<4x128xf32>
    %cst_55 = arith.constant 1.000000e+00 : f32
    %203 = vector.broadcast %cst_55 : f32 to vector<4x128xf32>
    %204 = arith.subf %203, %200 : vector<4x128xf32>
    %205 = arith.mulf %204, %198 : vector<4x128xf32>
    %206 = arith.addf %202, %205 : vector<4x128xf32>
    %c88 = arith.constant 88 : index
    %c0_56 = arith.constant 0 : index
    %207 = vector.load %arg10[%c88, %c0_56] : memref<128x128xf32, #tpu.memory_space<vmem>>, vector<4x128xf32>
    tpu.vector_store %arg10[%c88, %c0_56], %206 {strides = array<i32>} : memref<128x128xf32, #tpu.memory_space<vmem>>, vector<4x128xf32>,
    %208 = vector.extract_strided_slice %16 {offsets = [92, 0], sizes = [4, 128], strides = [1, 1]} : vector<128x128xf32> to vector<4x128xf32>
    %209 = vector.extract_strided_slice %10 {offsets = [92, 0], sizes = [4, 128], strides = [1, 1]} : vector<128x128xf32> to vector<4x128xf32>
    %210 = arith.mulf %208, %209 : vector<4x128xf32>
    %cst_57 = arith.constant 1.000000e+00 : f32
    %211 = vector.broadcast %cst_57 : f32 to vector<4x128xf32>
    %212 = arith.subf %211, %208 : vector<4x128xf32>
    %213 = arith.mulf %212, %206 : vector<4x128xf32>
    %214 = arith.addf %210, %213 : vector<4x128xf32>
    %c92 = arith.constant 92 : index
    %c0_58 = arith.constant 0 : index
    %215 = vector.load %arg10[%c92, %c0_58] : memref<128x128xf32, #tpu.memory_space<vmem>>, vector<4x128xf32>
    tpu.vector_store %arg10[%c92, %c0_58], %214 {strides = array<i32>} : memref<128x128xf32, #tpu.memory_space<vmem>>, vector<4x128xf32>,
    %216 = vector.extract_strided_slice %16 {offsets = [96, 0], sizes = [4, 128], strides = [1, 1]} : vector<128x128xf32> to vector<4x128xf32>
    %217 = vector.extract_strided_slice %10 {offsets = [96, 0], sizes = [4, 128], strides = [1, 1]} : vector<128x128xf32> to vector<4x128xf32>
    %218 = arith.mulf %216, %217 : vector<4x128xf32>
    %cst_59 = arith.constant 1.000000e+00 : f32
    %219 = vector.broadcast %cst_59 : f32 to vector<4x128xf32>
    %220 = arith.subf %219, %216 : vector<4x128xf32>
    %221 = arith.mulf %220, %214 : vector<4x128xf32>
    %222 = arith.addf %218, %221 : vector<4x128xf32>
    %c96 = arith.constant 96 : index
    %c0_60 = arith.constant 0 : index
    %223 = vector.load %arg10[%c96, %c0_60] : memref<128x128xf32, #tpu.memory_space<vmem>>, vector<4x128xf32>
    tpu.vector_store %arg10[%c96, %c0_60], %222 {strides = array<i32>} : memref<128x128xf32, #tpu.memory_space<vmem>>, vector<4x128xf32>,
    %224 = vector.extract_strided_slice %16 {offsets = [100, 0], sizes = [4, 128], strides = [1, 1]} : vector<128x128xf32> to vector<4x128xf32>
    %225 = vector.extract_strided_slice %10 {offsets = [100, 0], sizes = [4, 128], strides = [1, 1]} : vector<128x128xf32> to vector<4x128xf32>
    %226 = arith.mulf %224, %225 : vector<4x128xf32>
    %cst_61 = arith.constant 1.000000e+00 : f32
    %227 = vector.broadcast %cst_61 : f32 to vector<4x128xf32>
    %228 = arith.subf %227, %224 : vector<4x128xf32>
    %229 = arith.mulf %228, %222 : vector<4x128xf32>
    %230 = arith.addf %226, %229 : vector<4x128xf32>
    %c100 = arith.constant 100 : index
    %c0_62 = arith.constant 0 : index
    %231 = vector.load %arg10[%c100, %c0_62] : memref<128x128xf32, #tpu.memory_space<vmem>>, vector<4x128xf32>
    tpu.vector_store %arg10[%c100, %c0_62], %230 {strides = array<i32>} : memref<128x128xf32, #tpu.memory_space<vmem>>, vector<4x128xf32>,
    %232 = vector.extract_strided_slice %16 {offsets = [104, 0], sizes = [4, 128], strides = [1, 1]} : vector<128x128xf32> to vector<4x128xf32>
    %233 = vector.extract_strided_slice %10 {offsets = [104, 0], sizes = [4, 128], strides = [1, 1]} : vector<128x128xf32> to vector<4x128xf32>
    %234 = arith.mulf %232, %233 : vector<4x128xf32>
    %cst_63 = arith.constant 1.000000e+00 : f32
    %235 = vector.broadcast %cst_63 : f32 to vector<4x128xf32>
    %236 = arith.subf %235, %232 : vector<4x128xf32>
    %237 = arith.mulf %236, %230 : vector<4x128xf32>
    %238 = arith.addf %234, %237 : vector<4x128xf32>
    %c104 = arith.constant 104 : index
    %c0_64 = arith.constant 0 : index
    %239 = vector.load %arg10[%c104, %c0_64] : memref<128x128xf32, #tpu.memory_space<vmem>>, vector<4x128xf32>
    tpu.vector_store %arg10[%c104, %c0_64], %238 {strides = array<i32>} : memref<128x128xf32, #tpu.memory_space<vmem>>, vector<4x128xf32>,
    %240 = vector.extract_strided_slice %16 {offsets = [108, 0], sizes = [4, 128], strides = [1, 1]} : vector<128x128xf32> to vector<4x128xf32>
    %241 = vector.extract_strided_slice %10 {offsets = [108, 0], sizes = [4, 128], strides = [1, 1]} : vector<128x128xf32> to vector<4x128xf32>
    %242 = arith.mulf %240, %241 : vector<4x128xf32>
    %cst_65 = arith.constant 1.000000e+00 : f32
    %243 = vector.broadcast %cst_65 : f32 to vector<4x128xf32>
    %244 = arith.subf %243, %240 : vector<4x128xf32>
    %245 = arith.mulf %244, %238 : vector<4x128xf32>
    %246 = arith.addf %242, %245 : vector<4x128xf32>
    %c108 = arith.constant 108 : index
    %c0_66 = arith.constant 0 : index
    %247 = vector.load %arg10[%c108, %c0_66] : memref<128x128xf32, #tpu.memory_space<vmem>>, vector<4x128xf32>
    tpu.vector_store %arg10[%c108, %c0_66], %246 {strides = array<i32>} : memref<128x128xf32, #tpu.memory_space<vmem>>, vector<4x128xf32>,
    %248 = vector.extract_strided_slice %16 {offsets = [112, 0], sizes = [4, 128], strides = [1, 1]} : vector<128x128xf32> to vector<4x128xf32>
    %249 = vector.extract_strided_slice %10 {offsets = [112, 0], sizes = [4, 128], strides = [1, 1]} : vector<128x128xf32> to vector<4x128xf32>
    %250 = arith.mulf %248, %249 : vector<4x128xf32>
    %cst_67 = arith.constant 1.000000e+00 : f32
    %251 = vector.broadcast %cst_67 : f32 to vector<4x128xf32>
    %252 = arith.subf %251, %248 : vector<4x128xf32>
    %253 = arith.mulf %252, %246 : vector<4x128xf32>
    %254 = arith.addf %250, %253 : vector<4x128xf32>
    %c112 = arith.constant 112 : index
    %c0_68 = arith.constant 0 : index
    %255 = vector.load %arg10[%c112, %c0_68] : memref<128x128xf32, #tpu.memory_space<vmem>>, vector<4x128xf32>
    tpu.vector_store %arg10[%c112, %c0_68], %254 {strides = array<i32>} : memref<128x128xf32, #tpu.memory_space<vmem>>, vector<4x128xf32>,
    %256 = vector.extract_strided_slice %16 {offsets = [116, 0], sizes = [4, 128], strides = [1, 1]} : vector<128x128xf32> to vector<4x128xf32>
    %257 = vector.extract_strided_slice %10 {offsets = [116, 0], sizes = [4, 128], strides = [1, 1]} : vector<128x128xf32> to vector<4x128xf32>
    %258 = arith.mulf %256, %257 : vector<4x128xf32>
    %cst_69 = arith.constant 1.000000e+00 : f32
    %259 = vector.broadcast %cst_69 : f32 to vector<4x128xf32>
    %260 = arith.subf %259, %256 : vector<4x128xf32>
    %261 = arith.mulf %260, %254 : vector<4x128xf32>
    %262 = arith.addf %258, %261 : vector<4x128xf32>
    %c116 = arith.constant 116 : index
    %c0_70 = arith.constant 0 : index
    %263 = vector.load %arg10[%c116, %c0_70] : memref<128x128xf32, #tpu.memory_space<vmem>>, vector<4x128xf32>
    tpu.vector_store %arg10[%c116, %c0_70], %262 {strides = array<i32>} : memref<128x128xf32, #tpu.memory_space<vmem>>, vector<4x128xf32>,
    %264 = vector.extract_strided_slice %16 {offsets = [120, 0], sizes = [4, 128], strides = [1, 1]} : vector<128x128xf32> to vector<4x128xf32>
    %265 = vector.extract_strided_slice %10 {offsets = [120, 0], sizes = [4, 128], strides = [1, 1]} : vector<128x128xf32> to vector<4x128xf32>
    %266 = arith.mulf %264, %265 : vector<4x128xf32>
    %cst_71 = arith.constant 1.000000e+00 : f32
    %267 = vector.broadcast %cst_71 : f32 to vector<4x128xf32>
    %268 = arith.subf %267, %264 : vector<4x128xf32>
    %269 = arith.mulf %268, %262 : vector<4x128xf32>
    %270 = arith.addf %266, %269 : vector<4x128xf32>
    %c120 = arith.constant 120 : index
    %c0_72 = arith.constant 0 : index
    %271 = vector.load %arg10[%c120, %c0_72] : memref<128x128xf32, #tpu.memory_space<vmem>>, vector<4x128xf32>
    tpu.vector_store %arg10[%c120, %c0_72], %270 {strides = array<i32>} : memref<128x128xf32, #tpu.memory_space<vmem>>, vector<4x128xf32>,
    %272 = vector.extract_strided_slice %16 {offsets = [124, 0], sizes = [4, 128], strides = [1, 1]} : vector<128x128xf32> to vector<4x128xf32>
    %273 = vector.extract_strided_slice %10 {offsets = [124, 0], sizes = [4, 128], strides = [1, 1]} : vector<128x128xf32> to vector<4x128xf32>
    %274 = arith.mulf %272, %273 : vector<4x128xf32>
    %cst_73 = arith.constant 1.000000e+00 : f32
    %275 = vector.broadcast %cst_73 : f32 to vector<4x128xf32>
    %276 = arith.subf %275, %272 : vector<4x128xf32>
    %277 = arith.mulf %276, %270 : vector<4x128xf32>
    %278 = arith.addf %274, %277 : vector<4x128xf32>
    %c124 = arith.constant 124 : index
    %c0_74 = arith.constant 0 : index
    %279 = vector.load %arg10[%c124, %c0_74] : memref<128x128xf32, #tpu.memory_space<vmem>>, vector<4x128xf32>
    tpu.vector_store %arg10[%c124, %c0_74], %278 {strides = array<i32>} : memref<128x128xf32, #tpu.memory_space<vmem>>, vector<4x128xf32>,
    %c0_75 = arith.constant 0 : index
    %c0_76 = arith.constant 0 : index
    %280 = vector.load %arg9[%c0_75, %c0_76] : memref<4x128xf32, #tpu.memory_space<vmem>>, vector<4x128xf32>
    tpu.vector_store %arg9[%c0_75, %c0_76], %278 {strides = array<i32>} : memref<4x128xf32, #tpu.memory_space<vmem>>, vector<4x128xf32>,
    %c0_i32_77 = arith.constant 0 : i32
    %281 = arith.cmpi eq, %arg0, %c0_i32_77 : i32
    %282 = arith.extui %281 : i1 to i32
    %c0_i32_78 = arith.constant 0 : i32
    %283 = arith.cmpi ne, %282, %c0_i32_78 : i32
    scf.if %283 {
      %c0_99 = arith.constant 0 : index
      %c0_100 = arith.constant 0 : index
      %323 = vector.load %arg8[%c0_99, %c0_100] : memref<4x128xf32, #tpu.memory_space<vmem>>, vector<4x128xf32>
      tpu.vector_store %arg8[%c0_99, %c0_100], %278 {strides = array<i32>} : memref<4x128xf32, #tpu.memory_space<vmem>>, vector<4x128xf32>,
    } else {
    }
    %c0_79 = arith.constant 0 : index
    %c0_80 = arith.constant 0 : index
    %284 = vector.load %arg10[%c0_79, %c0_80] : memref<128x128xf32, #tpu.memory_space<vmem>>, vector<128x128xf32>
    %285 = arith.mulf %22, %284 : vector<128x128xf32>
    %cst_81 = arith.constant -5.000000e+00 : f32
    %cst_82 = arith.constant 5.000000e+00 : f32
    %286 = vector.broadcast %cst_81 : f32 to vector<128x128xf32>
    %287 = arith.maximumf %286, %285 : vector<128x128xf32>
    %288 = vector.broadcast %cst_82 : f32 to vector<128x128xf32>
    %289 = arith.minimumf %288, %287 : vector<128x128xf32>
    %290 = arith.truncf %289 : vector<128x128xf32> to vector<128x128xbf16>
    %c0_83 = arith.constant 0 : index
    %c0_84 = arith.constant 0 : index
    %291 = vector.load %arg4[%c0_83, %c0_84] : memref<128x128xbf16, #tpu.memory_space<vmem>>, vector<128x128xbf16>
    %cst_85 = arith.constant dense<0.000000e+00> : vector<128x128xf32>
    %292 = tpu.matmul %290, %291, %cst_85 {dimension_numbers = #tpu.dot_dimension_numbers<[1], [0], [0], [1], [0, 0, 1, 1], [], []>} : vector<128x128xbf16>, vector<128x128xbf16>, vector<128x128xf32> -> vector<128x128xf32>
    %cst_86 = arith.constant -5.000000e+00 : f32
    %cst_87 = arith.constant 5.000000e+00 : f32
    %293 = vector.broadcast %cst_86 : f32 to vector<128x128xf32>
    %294 = arith.maximumf %293, %292 : vector<128x128xf32>
    %295 = vector.broadcast %cst_87 : f32 to vector<128x128xf32>
    %296 = arith.minimumf %295, %294 : vector<128x128xf32>
    %cst_88 = arith.constant dense<0.000000e+00> : vector<128xf32>
    %297 = vector.multi_reduction <add>, %296, %cst_88 [1] : vector<128x128xf32> to vector<128xf32>
    %298 = vector.shape_cast %297 : vector<128xf32> to vector<128x1xf32>
    %cst_89 = arith.constant 0.0416666679 : f32
    %299 = vector.broadcast %cst_89 : f32 to vector<128x1xf32>
    %300 = arith.mulf %298, %299 : vector<128x1xf32>
    %301 = arith.mulf %296, %296 : vector<128x128xf32>
    %cst_90 = arith.constant dense<0.000000e+00> : vector<128xf32>
    %302 = vector.multi_reduction <add>, %301, %cst_90 [1] : vector<128x128xf32> to vector<128xf32>
    %303 = vector.shape_cast %302 : vector<128xf32> to vector<128x1xf32>
    %cst_91 = arith.constant 0.0416666679 : f32
    %304 = vector.broadcast %cst_91 : f32 to vector<128x1xf32>
    %305 = arith.mulf %303, %304 : vector<128x1xf32>
    %306 = arith.mulf %300, %300 : vector<128x1xf32>
    %307 = arith.subf %305, %306 : vector<128x1xf32>
    %c0_92 = arith.constant 0 : index
    %c0_93 = arith.constant 0 : index
    %308 = vector.load %arg5[%c0_92, %c0_93] : memref<1x128xf32, #tpu.memory_space<vmem>>, vector<1x128xf32>
    %309 = vector.broadcast %300 : vector<128x1xf32> to vector<128x128xf32>
    %310 = arith.subf %296, %309 : vector<128x128xf32>
    %311 = vector.broadcast %308 : vector<1x128xf32> to vector<128x128xf32>
    %312 = arith.mulf %311, %310 : vector<128x128xf32>
    %cst_94 = arith.constant 9.99999974E-6 : f32
    %313 = vector.broadcast %cst_94 : f32 to vector<128x1xf32>
    %314 = arith.addf %307, %313 : vector<128x1xf32>
    %315 = math.rsqrt %314 : vector<128x1xf32>
    %316 = vector.broadcast %315 : vector<128x1xf32> to vector<128x128xf32>
    %317 = arith.mulf %312, %316 : vector<128x128xf32>
    %c0_95 = arith.constant 0 : index
    %c0_96 = arith.constant 0 : index
    %318 = vector.load %arg6[%c0_95, %c0_96] : memref<1x128xf32, #tpu.memory_space<vmem>>, vector<1x128xf32>
    %319 = vector.broadcast %318 : vector<1x128xf32> to vector<128x128xf32>
    %320 = arith.addf %317, %319 : vector<128x128xf32>
    %321 = arith.truncf %320 : vector<128x128xf32> to vector<128x128xbf16>
    %c0_97 = arith.constant 0 : index
    %c0_98 = arith.constant 0 : index
    %322 = vector.load %arg7[%c0_97, %c0_98] : memref<128x128xbf16, #tpu.memory_space<vmem>>, vector<128x128xbf16>
    tpu.vector_store %arg7[%c0_97, %c0_98], %321 {strides = array<i32>} : memref<128x128xbf16, #tpu.memory_space<vmem>>, vector<128x128xbf16>,
    return
  }
  func.func @transform_0(%arg0: i32) -> (i32, i32) {
    %c0_i32 = arith.constant 0 : i32
    %c0_i32_0 = arith.constant 0 : i32
    return %arg0, %c0_i32 : i32, i32
  }
  func.func @transform_1(%arg0: i32) -> (i32, i32) {
    %c0_i32 = arith.constant 0 : i32
    %c0_i32_0 = arith.constant 0 : i32
    %c0_i32_1 = arith.constant 0 : i32
    return %c0_i32, %c0_i32_0 : i32, i32
  }
  func.func @transform_2(%arg0: i32) -> (i32, i32) {
    %c0_i32 = arith.constant 0 : i32
    %c0_i32_0 = arith.constant 0 : i32
    %c0_i32_1 = arith.constant 0 : i32
    return %c0_i32, %c0_i32_0 : i32, i32
  }
  func.func @transform_3(%arg0: i32) -> (i32, i32) {
    %c0_i32 = arith.constant 0 : i32
    %c0_i32_0 = arith.constant 0 : i32
    %c0_i32_1 = arith.constant 0 : i32
    return %c0_i32, %c0_i32_0 : i32, i32
  }
  func.func @transform_4(%arg0: i32) -> (i32, i32) {
    %c0_i32 = arith.constant 0 : i32
    %c0_i32_0 = arith.constant 0 : i32
    %c0_i32_1 = arith.constant 0 : i32
    return %c0_i32, %c0_i32_0 : i32, i32
  }
  func.func @transform_5(%arg0: i32) -> (i32, i32) {
    %c0_i32 = arith.constant 0 : i32
    %c0_i32_0 = arith.constant 0 : i32
    %c0_i32_1 = arith.constant 0 : i32
    return %c0_i32, %c0_i32_0 : i32, i32
  }
  func.func @transform_6(%arg0: i32) -> (i32, i32) {
    %c0_i32 = arith.constant 0 : i32
    %c0_i32_0 = arith.constant 0 : i32
    return %arg0, %c0_i32 : i32, i32
  }
  func.func @transform_7(%arg0: i32) -> (i32, i32) {
    %c0_i32 = arith.constant 0 : i32
    %c0_i32_0 = arith.constant 0 : i32
    %c0_i32_1 = arith.constant 0 : i32
    return %c0_i32, %c0_i32_0 : i32, i32
  }
}

</mosaic_0001>

<llo_original>
// kernel: qrnn_projection_forward.3
$region0: #{qrnn_projection_forward.3}
  #allocation0 [shape = 'u32[]', space=smem, size = 0x4, offset = 0x4, fixed_abs, tag = 'smem constant byte address 0x4 - core index']
  #allocation1 [shape = 'u32[144,128]{1,0:T(1,128)}', space=vmem, size = 0x12000, scoped, tag = 'internal scratch']
  %s0 = inlined_call_operand.vmem [shape: f32[128,16], index: 0, kind: input, shape index: {}]
  %s1 = inlined_call_operand.vmem [shape: bf16[16,128], index: 1, kind: input, shape index: {}]
  %s2 = inlined_call_operand.vmem [shape: f32[1,128], index: 2, kind: input, shape index: {}]
  %s3 = inlined_call_operand.vmem [shape: f32[1,128], index: 3, kind: input, shape index: {}]
  %s4 = inlined_call_operand.vmem [shape: f32[1,128], index: 4, kind: input, shape index: {}]
  %s5 = inlined_call_operand.vmem [shape: bf16[128,128], index: 5, kind: output, shape index: {}]
  %s6 = sld [smem:[#allocation0]]
  $region30: #{qrnn_projection_forward.3} parent=0
    _
  %s8 = ssub.s32 1, %s6
  %s9 = scalar_select 0, %s8, %s6
  // Predicated region
  $region2: #{qrnn_projection_forward.3} parent=0 // pred_check
    _
  $region3: #{qrnn_projection_forward.3} parent=0 // pred_check_branch
    %11 = sbr.rel (0) target = $region5
  $region4: #{qrnn_projection_forward.3} parent=0 // pred_region
    _
  $region5: #{qrnn_projection_forward.3} parent=0 // pred_fallthru
    _
  // Predicated region
  $region6: #{qrnn_projection_forward.3} parent=0 // pred_check
    _
  $region7: #{qrnn_projection_forward.3} parent=0 // pred_check_branch
    %13 = sbr.rel (0) target = $region9
  $region8: #{qrnn_projection_forward.3} parent=0 // pred_region
    _
  $region9: #{qrnn_projection_forward.3} parent=0 // pred_fallthru
    _
  // Predicated region
  $region10: #{qrnn_projection_forward.3} parent=0 // pred_check
    _
  $region11: #{qrnn_projection_forward.3} parent=0 // pred_check_branch
    %15 = sbr.rel (0) target = $region13
  $region12: #{qrnn_projection_forward.3} parent=0 // pred_region
    _
  $region13: #{qrnn_projection_forward.3} parent=0 // pred_fallthru
    _
  // Predicated region
  $region14: #{qrnn_projection_forward.3} parent=0 // pred_check
    _
  $region15: #{qrnn_projection_forward.3} parent=0 // pred_check_branch
    %17 = sbr.rel (0) target = $region17
  $region16: #{qrnn_projection_forward.3} parent=0 // pred_region
    _
  $region17: #{qrnn_projection_forward.3} parent=0 // pred_fallthru
    _
  // Predicated region
  $region18: #{qrnn_projection_forward.3} parent=0 // pred_check
    _
  $region19: #{qrnn_projection_forward.3} parent=0 // pred_check_branch
    %19 = sbr.rel (0) target = $region21
  $region20: #{qrnn_projection_forward.3} parent=0 // pred_region
    _
  $region21: #{qrnn_projection_forward.3} parent=0 // pred_fallthru
    _
  %v21 = vld [vmem:[%s0] sm:$0xff]
  %v22 = vld [vmem:[%s0 + $0x8] sm:$0xff]
  %v23 = vld [vmem:[%s0 + $0x10] sm:$0xff]
  %v24 = vld [vmem:[%s0 + $0x18] sm:$0xff]
  %v25 = vld [vmem:[%s0 + $0x20] sm:$0xff]
  %v26 = vld [vmem:[%s0 + $0x28] sm:$0xff]
  %v27 = vld [vmem:[%s0 + $0x30] sm:$0xff]
  %v28 = vld [vmem:[%s0 + $0x38] sm:$0xff]
  %v29 = vld [vmem:[%s0 + $0x40] sm:$0xff]
  %v30 = vld [vmem:[%s0 + $0x48] sm:$0xff]
  %v31 = vld [vmem:[%s0 + $0x50] sm:$0xff]
  %v32 = vld [vmem:[%s0 + $0x58] sm:$0xff]
  %v33 = vld [vmem:[%s0 + $0x60] sm:$0xff]
  %v34 = vld [vmem:[%s0 + $0x68] sm:$0xff]
  %v35 = vld [vmem:[%s0 + $0x70] sm:$0xff]
  %v36 = vld [vmem:[%s0 + $0x78] sm:$0xff]
  %v37 = vpack.c.bf16 %v22, %v21
  %v38 = vpack.c.bf16 %v24, %v23
  %v39 = vpack.c.bf16 %v26, %v25
  %v40 = vpack.c.bf16 %v28, %v27
  %v41 = vpack.c.bf16 %v30, %v29
  %v42 = vpack.c.bf16 %v32, %v31
  %v43 = vpack.c.bf16 %v34, %v33
  %v44 = vpack.c.bf16 %v36, %v35
  %v45 = vld [vmem:[%s1] sm:$0xf]
  %v46 = vld [vmem:[%s1 + $0x4] sm:$0xf]
  %v47 = vld [vmem:[%s2] sm:$0x1]
  %v49 = vlaneseq
  %v50 = vshrl.u32 %v49, 7
  %v51 = vsub.s32 0, %v50
  %v52 = vrot.slane %v47, %v51
  %v56 = vunpack.c.l.b16 %v45
  %v57 = vunpack.c.l.b16 %v46
  %v58 = vpack.c.b16 %v57, %v56
  %vm60 = vcmask 130048
  %v62 = vsel %vm60, %v37, 0
  %v65 = vsel %vm60, %v38, 0
  %v68 = vsel %vm60, %v39, 0
  %v71 = vsel %vm60, %v40, 0
  %v74 = vsel %vm60, %v41, 0
  %v77 = vsel %vm60, %v42, 0
  %v80 = vsel %vm60, %v43, 0
  %v83 = vsel %vm60, %v44, 0
  %85 = vmatprep.subr.bf16.mxu0 0
  %86 = vmatpush1.bf16.msra.mxu0 %v58
  %87 = vmatprep.subr.bf16.mxu0 0
  %88 = vmatpush1.bf16.msra.mxu0 0
  %89 = vmatprep.subr.bf16.mxu0 0
  %90 = vmatpush1.bf16.msra.mxu0 0
  %91 = vmatprep.subr.bf16.mxu0 0
  %92 = vmatpush1.bf16.msra.mxu0 0
  %93 = vmatprep.subr.bf16.mxu0 0
  %94 = vmatpush1.bf16.msra.mxu0 0
  %95 = vmatprep.subr.bf16.mxu0 0
  %96 = vmatpush1.bf16.msra.mxu0 0
  %97 = vmatprep.subr.bf16.mxu0 0
  %98 = vmatpush1.bf16.msra.mxu0 0
  %99 = vmatprep.subr.bf16.mxu0 0
  %100 = vmatpush1.bf16.msra.mxu0 0
  %101 = vmatprep.subr.bf16.mxu0 0
  %102 = vmatpush1.bf16.msra.mxu0 0
  %103 = vmatprep.subr.bf16.mxu0 0
  %104 = vmatpush1.bf16.msra.mxu0 0
  %105 = vmatprep.subr.bf16.mxu0 0
  %106 = vmatpush1.bf16.msra.mxu0 0
  %107 = vmatprep.subr.bf16.mxu0 0
  %108 = vmatpush1.bf16.msra.mxu0 0
  %109 = vmatprep.subr.bf16.mxu0 0
  %110 = vmatpush1.bf16.msra.mxu0 0
  %111 = vmatprep.subr.bf16.mxu0 0
  %112 = vmatpush1.bf16.msra.mxu0 0
  %113 = vmatprep.subr.bf16.mxu0 0
  %114 = vmatpush1.bf16.msra.mxu0 0
  %115 = vmatprep.subr.bf16.mxu0 0
  %116 = vmatpush1.bf16.msra.mxu0 0
  %117 = vmatprep.mubr.bf16.mxu0 0
  %118 = vmatmul.mubr.bf16.gmra.mrb[0].mxu0 %v62
  %v119 = vpop.f32.mrb[0].mxu0
  %v120 = vadd.f32 %v52, %v119
  %v121 = vpop.f32.mrb[0].mxu0
  %v122 = vpop.f32.mrb[0].mxu0
  %v123 = vadd.f32 %v52, %v122
  %v124 = vpop.f32.mrb[0].mxu0
  %125 = vmatprep.mubr.bf16.mxu0 0
  %126 = vmatmul.mubr.bf16.gmra.mrb[0].mxu0 %v65
  %v127 = vpop.f32.mrb[0].mxu0
  %v128 = vadd.f32 %v52, %v127
  %v129 = vpop.f32.mrb[0].mxu0
  %v130 = vpop.f32.mrb[0].mxu0
  %v131 = vadd.f32 %v52, %v130
  %v132 = vpop.f32.mrb[0].mxu0
  %133 = vmatprep.mubr.bf16.mxu0 0
  %134 = vmatmul.mubr.bf16.gmra.mrb[0].mxu0 %v68
  %v135 = vpop.f32.mrb[0].mxu0
  %v136 = vadd.f32 %v52, %v135
  %v137 = vpop.f32.mrb[0].mxu0
  %v138 = vpop.f32.mrb[0].mxu0
  %v139 = vadd.f32 %v52, %v138
  %v140 = vpop.f32.mrb[0].mxu0
  %141 = vmatprep.mubr.bf16.mxu0 0
  %142 = vmatmul.mubr.bf16.gmra.mrb[0].mxu0 %v71
  %v143 = vpop.f32.mrb[0].mxu0
  %v144 = vadd.f32 %v52, %v143
  %v145 = vpop.f32.mrb[0].mxu0
  %v146 = vpop.f32.mrb[0].mxu0
  %v147 = vadd.f32 %v52, %v146
  %v148 = vpop.f32.mrb[0].mxu0
  %149 = vmatprep.mubr.bf16.mxu0 0
  %150 = vmatmul.mubr.bf16.gmra.mrb[0].mxu0 %v74
  %v151 = vpop.f32.mrb[0].mxu0
  %v152 = vadd.f32 %v52, %v151
  %v153 = vpop.f32.mrb[0].mxu0
  %v154 = vpop.f32.mrb[0].mxu0
  %v155 = vadd.f32 %v52, %v154
  %v156 = vpop.f32.mrb[0].mxu0
  %157 = vmatprep.mubr.bf16.mxu0 0
  %158 = vmatmul.mubr.bf16.gmra.mrb[0].mxu0 %v77
  %v159 = vpop.f32.mrb[0].mxu0
  %v160 = vadd.f32 %v52, %v159
  %v161 = vpop.f32.mrb[0].mxu0
  %v162 = vpop.f32.mrb[0].mxu0
  %v163 = vadd.f32 %v52, %v162
  %v164 = vpop.f32.mrb[0].mxu0
  %165 = vmatprep.mubr.bf16.mxu0 0
  %166 = vmatmul.mubr.bf16.gmra.mrb[0].mxu0 %v80
  %v167 = vpop.f32.mrb[0].mxu0
  %v168 = vadd.f32 %v52, %v167
  %v169 = vpop.f32.mrb[0].mxu0
  %v170 = vpop.f32.mrb[0].mxu0
  %v171 = vadd.f32 %v52, %v170
  %v172 = vpop.f32.mrb[0].mxu0
  %173 = vmatprep.mubr.bf16.mxu0 0
  %174 = vmatmul.mubr.bf16.gmra.mrb[0].mxu0 %v83
  %v175 = vpop.f32.mrb[0].mxu0
  %v176 = vadd.f32 %v52, %v175
  %v177 = vpop.f32.mrb[0].mxu0
  %v178 = vpop.f32.mrb[0].mxu0
  %v179 = vadd.f32 %v52, %v178
  %v180 = vpop.f32.mrb[0].mxu0
  %181 = vdwg.mxu0
  %182 = vadd.xlane.f32.xlu0 %v120
  %v183 = vpop.xlane.xlu0 %182
  %184 = vadd.xlane.f32.xlu0 %v123
  %v185 = vpop.xlane.xlu0 %184
  %186 = vadd.xlane.f32.xlu0 %v128
  %v187 = vpop.xlane.xlu0 %186
  %188 = vadd.xlane.f32.xlu0 %v131
  %v189 = vpop.xlane.xlu0 %188
  %190 = vadd.xlane.f32.xlu0 %v136
  %v191 = vpop.xlane.xlu0 %190
  %192 = vadd.xlane.f32.xlu0 %v139
  %v193 = vpop.xlane.xlu0 %192
  %194 = vadd.xlane.f32.xlu0 %v144
  %v195 = vpop.xlane.xlu0 %194
  %196 = vadd.xlane.f32.xlu0 %v147
  %v197 = vpop.xlane.xlu0 %196
  %198 = vadd.xlane.f32.xlu0 %v152
  %v199 = vpop.xlane.xlu0 %198
  %200 = vadd.xlane.f32.xlu0 %v155
  %v201 = vpop.xlane.xlu0 %200
  %202 = vadd.xlane.f32.xlu0 %v160
  %v203 = vpop.xlane.xlu0 %202
  %204 = vadd.xlane.f32.xlu0 %v163
  %v205 = vpop.xlane.xlu0 %204
  %206 = vadd.xlane.f32.xlu0 %v168
  %v207 = vpop.xlane.xlu0 %206
  %208 = vadd.xlane.f32.xlu0 %v171
  %v209 = vpop.xlane.xlu0 %208
  %210 = vadd.xlane.f32.xlu0 %v176
  %v211 = vpop.xlane.xlu0 %210
  %212 = vadd.xlane.f32.xlu0 %v179
  %v213 = vpop.xlane.xlu0 %212
  %v214 = vmul.f32 %v183, 0.041666668
  %v215 = vmul.f32 %v185, 0.041666668
  %v216 = vmul.f32 %v187, 0.041666668
  %v217 = vmul.f32 %v189, 0.041666668
  %v218 = vmul.f32 %v191, 0.041666668
  %v219 = vmul.f32 %v193, 0.041666668
  %v220 = vmul.f32 %v195, 0.041666668
  %v221 = vmul.f32 %v197, 0.041666668
  %v222 = vmul.f32 %v199, 0.041666668
  %v223 = vmul.f32 %v201, 0.041666668
  %v224 = vmul.f32 %v203, 0.041666668
  %v225 = vmul.f32 %v205, 0.041666668
  %v226 = vmul.f32 %v207, 0.041666668
  %v227 = vmul.f32 %v209, 0.041666668
  %v228 = vmul.f32 %v211, 0.041666668
  %v229 = vmul.f32 %v213, 0.041666668
  %v230 = vmul.f32 %v120, %v120
  %v231 = vmul.f32 %v123, %v123
  %v232 = vmul.f32 %v128, %v128
  %v233 = vmul.f32 %v131, %v131
  %v234 = vmul.f32 %v136, %v136
  %v235 = vmul.f32 %v139, %v139
  %v236 = vmul.f32 %v144, %v144
  %v237 = vmul.f32 %v147, %v147
  %v238 = vmul.f32 %v152, %v152
  %v239 = vmul.f32 %v155, %v155
  %v240 = vmul.f32 %v160, %v160
  %v241 = vmul.f32 %v163, %v163
  %v242 = vmul.f32 %v168, %v168
  %v243 = vmul.f32 %v171, %v171
  %v244 = vmul.f32 %v176, %v176
  %v245 = vmul.f32 %v179, %v179
  %246 = vadd.xlane.f32.xlu0 %v230
  %v247 = vpop.xlane.xlu0 %246
  %248 = vadd.xlane.f32.xlu0 %v231
  %v249 = vpop.xlane.xlu0 %248
  %250 = vadd.xlane.f32.xlu0 %v232
  %v251 = vpop.xlane.xlu0 %250
  %252 = vadd.xlane.f32.xlu0 %v233
  %v253 = vpop.xlane.xlu0 %252
  %254 = vadd.xlane.f32.xlu0 %v234
  %v255 = vpop.xlane.xlu0 %254
  %256 = vadd.xlane.f32.xlu0 %v235
  %v257 = vpop.xlane.xlu0 %256
  %258 = vadd.xlane.f32.xlu0 %v236
  %v259 = vpop.xlane.xlu0 %258
  %260 = vadd.xlane.f32.xlu0 %v237
  %v261 = vpop.xlane.xlu0 %260
  %262 = vadd.xlane.f32.xlu0 %v238
  %v263 = vpop.xlane.xlu0 %262
  %264 = vadd.xlane.f32.xlu0 %v239
  %v265 = vpop.xlane.xlu0 %264
  %266 = vadd.xlane.f32.xlu0 %v240
  %v267 = vpop.xlane.xlu0 %266
  %268 = vadd.xlane.f32.xlu0 %v241
  %v269 = vpop.xlane.xlu0 %268
  %270 = vadd.xlane.f32.xlu0 %v242
  %v271 = vpop.xlane.xlu0 %270
  %272 = vadd.xlane.f32.xlu0 %v243
  %v273 = vpop.xlane.xlu0 %272
  %274 = vadd.xlane.f32.xlu0 %v244
  %v275 = vpop.xlane.xlu0 %274
  %276 = vadd.xlane.f32.xlu0 %v245
  %v277 = vpop.xlane.xlu0 %276
  %v278 = vmul.f32 %v247, 0.041666668
  %v279 = vmul.f32 %v249, 0.041666668
  %v280 = vmul.f32 %v251, 0.041666668
  %v281 = vmul.f32 %v253, 0.041666668
  %v282 = vmul.f32 %v255, 0.041666668
  %v283 = vmul.f32 %v257, 0.041666668
  %v284 = vmul.f32 %v259, 0.041666668
  %v285 = vmul.f32 %v261, 0.041666668
  %v286 = vmul.f32 %v263, 0.041666668
  %v287 = vmul.f32 %v265, 0.041666668
  %v288 = vmul.f32 %v267, 0.041666668
  %v289 = vmul.f32 %v269, 0.041666668
  %v290 = vmul.f32 %v271, 0.041666668
  %v291 = vmul.f32 %v273, 0.041666668
  %v292 = vmul.f32 %v275, 0.041666668
  %v293 = vmul.f32 %v277, 0.041666668
  %v294 = vmul.f32 %v214, %v214
  %v295 = vmul.f32 %v215, %v215
  %v296 = vmul.f32 %v216, %v216
  %v297 = vmul.f32 %v217, %v217
  %v298 = vmul.f32 %v218, %v218
  %v299 = vmul.f32 %v219, %v219
  %v300 = vmul.f32 %v220, %v220
  %v301 = vmul.f32 %v221, %v221
  %v302 = vmul.f32 %v222, %v222
  %v303 = vmul.f32 %v223, %v223
  %v304 = vmul.f32 %v224, %v224
  %v305 = vmul.f32 %v225, %v225
  %v306 = vmul.f32 %v226, %v226
  %v307 = vmul.f32 %v227, %v227
  %v308 = vmul.f32 %v228, %v228
  %v309 = vmul.f32 %v229, %v229
  %v310 = vsub.f32 %v278, %v294
  %v311 = vsub.f32 %v279, %v295
  %v312 = vsub.f32 %v280, %v296
  %v313 = vsub.f32 %v281, %v297
  %v314 = vsub.f32 %v282, %v298
  %v315 = vsub.f32 %v283, %v299
  %v316 = vsub.f32 %v284, %v300
  %v317 = vsub.f32 %v285, %v301
  %v318 = vsub.f32 %v286, %v302
  %v319 = vsub.f32 %v287, %v303
  %v320 = vsub.f32 %v288, %v304
  %v321 = vsub.f32 %v289, %v305
  %v322 = vsub.f32 %v290, %v306
  %v323 = vsub.f32 %v291, %v307
  %v324 = vsub.f32 %v292, %v308
  %v325 = vsub.f32 %v293, %v309
  %v326 = vld [vmem:[%s3] sm:$0x1]
  %v327 = vsub.f32 %v120, %v214
  %v328 = vsub.f32 %v123, %v215
  %v329 = vsub.f32 %v128, %v216
  %v330 = vsub.f32 %v131, %v217
  %v331 = vsub.f32 %v136, %v218
  %v332 = vsub.f32 %v139, %v219
  %v333 = vsub.f32 %v144, %v220
  %v334 = vsub.f32 %v147, %v221
  %v335 = vsub.f32 %v152, %v222
  %v336 = vsub.f32 %v155, %v223
  %v337 = vsub.f32 %v160, %v224
  %v338 = vsub.f32 %v163, %v225
  %v339 = vsub.f32 %v168, %v226
  %v340 = vsub.f32 %v171, %v227
  %v341 = vsub.f32 %v176, %v228
  %v342 = vsub.f32 %v179, %v229
  %v344 = vlaneseq
  %v345 = vshrl.u32 %v344, 7
  %v346 = vsub.s32 0, %v345
  %v347 = vrot.slane %v326, %v346
  %v349 = vmul.f32 %v347, %v327
  %v350 = vmul.f32 %v347, %v328
  %v351 = vmul.f32 %v347, %v329
  %v352 = vmul.f32 %v347, %v330
  %v353 = vmul.f32 %v347, %v331
  %v354 = vmul.f32 %v347, %v332
  %v355 = vmul.f32 %v347, %v333
  %v356 = vmul.f32 %v347, %v334
  %v357 = vmul.f32 %v347, %v335
  %v358 = vmul.f32 %v347, %v336
  %v359 = vmul.f32 %v347, %v337
  %v360 = vmul.f32 %v347, %v338
  %v361 = vmul.f32 %v347, %v339
  %v362 = vmul.f32 %v347, %v340
  %v363 = vmul.f32 %v347, %v341
  %v364 = vmul.f32 %v347, %v342
  %v365 = vadd.f32 %v310, 1e-05
  %v366 = vadd.f32 %v311, 1e-05
  %v367 = vadd.f32 %v312, 1e-05
  %v368 = vadd.f32 %v313, 1e-05
  %v369 = vadd.f32 %v314, 1e-05
  %v370 = vadd.f32 %v315, 1e-05
  %v371 = vadd.f32 %v316, 1e-05
  %v372 = vadd.f32 %v317, 1e-05
  %v373 = vadd.f32 %v318, 1e-05
  %v374 = vadd.f32 %v319, 1e-05
  %v375 = vadd.f32 %v320, 1e-05
  %v376 = vadd.f32 %v321, 1e-05
  %v377 = vadd.f32 %v322, 1e-05
  %v378 = vadd.f32 %v323, 1e-05
  %v379 = vadd.f32 %v324, 1e-05
  %v380 = vadd.f32 %v325, 1e-05
  %v381 = vrsqrt.pop %v365
  %v382 = vrsqrt.pop %v366
  %v383 = vrsqrt.pop %v367
  %v384 = vrsqrt.pop %v368
  %v385 = vrsqrt.pop %v369
  %v386 = vrsqrt.pop %v370
  %v387 = vrsqrt.pop %v371
  %v388 = vrsqrt.pop %v372
  %v389 = vrsqrt.pop %v373
  %v390 = vrsqrt.pop %v374
  %v391 = vrsqrt.pop %v375
  %v392 = vrsqrt.pop %v376
  %v393 = vrsqrt.pop %v377
  %v394 = vrsqrt.pop %v378
  %v395 = vrsqrt.pop %v379
  %v396 = vrsqrt.pop %v380
  %v397 = vmul.f32 %v349, %v381
  %v398 = vmul.f32 %v350, %v382
  %v399 = vmul.f32 %v351, %v383
  %v400 = vmul.f32 %v352, %v384
  %v401 = vmul.f32 %v353, %v385
  %v402 = vmul.f32 %v354, %v386
  %v403 = vmul.f32 %v355, %v387
  %v404 = vmul.f32 %v356, %v388
  %v405 = vmul.f32 %v357, %v389
  %v406 = vmul.f32 %v358, %v390
  %v407 = vmul.f32 %v359, %v391
  %v408 = vmul.f32 %v360, %v392
  %v409 = vmul.f32 %v361, %v393
  %v410 = vmul.f32 %v362, %v394
  %v411 = vmul.f32 %v363, %v395
  %v412 = vmul.f32 %v364, %v396
  %v413 = vld [vmem:[%s4] sm:$0x1]
  %v415 = vlaneseq
  %v416 = vshrl.u32 %v415, 7
  %v417 = vsub.s32 0, %v416
  %v418 = vrot.slane %v413, %v417
  %v420 = vadd.f32 %v397, %v418
  %v421 = vadd.f32 %v398, %v418
  %v422 = vadd.f32 %v399, %v418
  %v423 = vadd.f32 %v400, %v418
  %v424 = vadd.f32 %v401, %v418
  %v425 = vadd.f32 %v402, %v418
  %v426 = vadd.f32 %v403, %v418
  %v427 = vadd.f32 %v404, %v418
  %v428 = vadd.f32 %v405, %v418
  %v429 = vadd.f32 %v406, %v418
  %v430 = vadd.f32 %v407, %v418
  %v431 = vadd.f32 %v408, %v418
  %v432 = vadd.f32 %v409, %v418
  %v433 = vadd.f32 %v410, %v418
  %v434 = vadd.f32 %v411, %v418
  %v435 = vadd.f32 %v412, %v418
  %v436 = vpack.c.bf16 %v421, %v420
  %v437 = vpack.c.bf16 %v423, %v422
  %v438 = vpack.c.bf16 %v425, %v424
  %v439 = vpack.c.bf16 %v427, %v426
  %v440 = vpack.c.bf16 %v429, %v428
  %v441 = vpack.c.bf16 %v431, %v430
  %v442 = vpack.c.bf16 %v433, %v432
  %v443 = vpack.c.bf16 %v435, %v434
  %v452 = vunpack.c.l.b16 %v436
  %v453 = vunpack.c.h.b16 %v436
  %v454 = vunpack.c.l.b16 %v437
  %v455 = vunpack.c.h.b16 %v437
  %v456 = vunpack.c.l.b16 %v438
  %v457 = vunpack.c.h.b16 %v438
  %v458 = vunpack.c.l.b16 %v439
  %v459 = vunpack.c.h.b16 %v439
  %v460 = vunpack.c.l.b16 %v440
  %v461 = vunpack.c.h.b16 %v440
  %v462 = vunpack.c.l.b16 %v441
  %v463 = vunpack.c.h.b16 %v441
  %v464 = vunpack.c.l.b16 %v442
  %v465 = vunpack.c.h.b16 %v442
  %v466 = vunpack.c.l.b16 %v443
  %v467 = vunpack.c.h.b16 %v443
  %v468 = vpack.c.b16 %v452, %v452
  %v469 = vpack.c.b16 %v453, %v453
  %v470 = vpack.c.b16 %v454, %v454
  %v471 = vpack.c.b16 %v455, %v455
  %v472 = vpack.c.b16 %v456, %v456
  %v473 = vpack.c.b16 %v457, %v457
  %v474 = vpack.c.b16 %v458, %v458
  %v475 = vpack.c.b16 %v459, %v459
  %v476 = vpack.c.b16 %v460, %v460
  %v477 = vpack.c.b16 %v461, %v461
  %v478 = vpack.c.b16 %v462, %v462
  %v479 = vpack.c.b16 %v463, %v463
  %v480 = vpack.c.b16 %v464, %v464
  %v481 = vpack.c.b16 %v465, %v465
  %v482 = vpack.c.b16 %v466, %v466
  %v483 = vpack.c.b16 %v467, %v467
  %500 = vst [vmem:[%s5] sm:$0xf] %v468
  %501 = vst [vmem:[%s5 + $0x4] sm:$0xf] %v469
  %502 = vst [vmem:[%s5 + $0x8] sm:$0xf] %v470
  %503 = vst [vmem:[%s5 + $0xc] sm:$0xf] %v471
  %504 = vst [vmem:[%s5 + $0x10] sm:$0xf] %v472
  %505 = vst [vmem:[%s5 + $0x14] sm:$0xf] %v473
  %506 = vst [vmem:[%s5 + $0x18] sm:$0xf] %v474
  %507 = vst [vmem:[%s5 + $0x1c] sm:$0xf] %v475
  %508 = vst [vmem:[%s5 + $0x20] sm:$0xf] %v476
  %509 = vst [vmem:[%s5 + $0x24] sm:$0xf] %v477
  %510 = vst [vmem:[%s5 + $0x28] sm:$0xf] %v478
  %511 = vst [vmem:[%s5 + $0x2c] sm:$0xf] %v479
  %512 = vst [vmem:[%s5 + $0x30] sm:$0xf] %v480
  %513 = vst [vmem:[%s5 + $0x34] sm:$0xf] %v481
  %514 = vst [vmem:[%s5 + $0x38] sm:$0xf] %v482
  %515 = vst [vmem:[%s5 + $0x3c] sm:$0xf] %v483
  // Predicated region
  $region22: #{qrnn_projection_forward.3} parent=0 // pred_check
    _
  $region23: #{qrnn_projection_forward.3} parent=0 // pred_check_branch
    %517 = sbr.rel (0) target = $region25
  $region24: #{qrnn_projection_forward.3} parent=0 // pred_region
    _
  $region25: #{qrnn_projection_forward.3} parent=0 // pred_fallthru
    _
  // Predicated region
  $region26: #{qrnn_projection_forward.3} parent=0 // pred_check
    _
  $region27: #{qrnn_projection_forward.3} parent=0 // pred_check_branch
    %519 = sbr.rel (0) target = $region29
  $region28: #{qrnn_projection_forward.3} parent=0 // pred_region
    _
  $region29: #{qrnn_projection_forward.3} parent=0 // pred_fallthru
    _

// kernel: qrnn_projection_forward.5
$region0: #{qrnn_projection_forward.5}
  #allocation0 [shape = 'u32[]', space=smem, size = 0x4, offset = 0x4, fixed_abs, tag = 'smem constant byte address 0x4 - core index']
  #allocation1 [shape = 'u32[144,128]{1,0:T(1,128)}', space=vmem, size = 0x12000, scoped, tag = 'internal scratch']
  #allocation2 [shape = 'f32[4,128]{1,0:T(4,128)}', space=vmem, size = 0x800, scoped, tag = 'scratch operand']
  #allocation3 [shape = 'f32[128,128]{1,0:T(8,128)}', space=vmem, size = 0x10000, scoped, tag = 'scratch operand']
  %s0 = inlined_call_operand.vmem [shape: bf16[128,128], index: 0, kind: input, shape index: {}]
  %s1 = inlined_call_operand.vmem [shape: bf16[128,384], index: 1, kind: input, shape index: {}]
  %s2 = inlined_call_operand.vmem [shape: f32[1,384], index: 2, kind: input, shape index: {}]
  %s3 = inlined_call_operand.vmem [shape: bf16[128,128], index: 3, kind: input, shape index: {}]
  %s4 = inlined_call_operand.vmem [shape: f32[1,128], index: 4, kind: input, shape index: {}]
  %s5 = inlined_call_operand.vmem [shape: f32[1,128], index: 5, kind: input, shape index: {}]
  %s6 = inlined_call_operand.vmem [shape: f32[128,128], index: 6, kind: output, shape index: {0}]
  %s7 = inlined_call_operand.vmem [shape: f32[4,128], index: 7, kind: output, shape index: {1}]
  %8 = xla_tuple %s6, %s7
  %s9 = sld [smem:[#allocation0]]
  $region50: #{qrnn_projection_forward.5} parent=0
    _
  %s11 = ssub.s32 1, %s9
  %s12 = scalar_select 0, %s11, %s9
  // Predicated region
  $region2: #{qrnn_projection_forward.5} parent=0 // pred_check
    _
  $region3: #{qrnn_projection_forward.5} parent=0 // pred_check_branch
    %14 = sbr.rel (0) target = $region5
  $region4: #{qrnn_projection_forward.5} parent=0 // pred_region
    _
  $region5: #{qrnn_projection_forward.5} parent=0 // pred_fallthru
    _
  // Predicated region
  $region6: #{qrnn_projection_forward.5} parent=0 // pred_check
    _
  $region7: #{qrnn_projection_forward.5} parent=0 // pred_check_branch
    %16 = sbr.rel (0) target = $region9
  $region8: #{qrnn_projection_forward.5} parent=0 // pred_region
    _
  $region9: #{qrnn_projection_forward.5} parent=0 // pred_fallthru
    _
  // Predicated region
  $region10: #{qrnn_projection_forward.5} parent=0 // pred_check
    _
  $region11: #{qrnn_projection_forward.5} parent=0 // pred_check_branch
    %18 = sbr.rel (0) target = $region13
  $region12: #{qrnn_projection_forward.5} parent=0 // pred_region
    _
  $region13: #{qrnn_projection_forward.5} parent=0 // pred_fallthru
    _
  // Predicated region
  $region14: #{qrnn_projection_forward.5} parent=0 // pred_check
    _
  $region15: #{qrnn_projection_forward.5} parent=0 // pred_check_branch
    %20 = sbr.rel (0) target = $region17
  $region16: #{qrnn_projection_forward.5} parent=0 // pred_region
    _
  $region17: #{qrnn_projection_forward.5} parent=0 // pred_fallthru
    _
  // Predicated region
  $region18: #{qrnn_projection_forward.5} parent=0 // pred_check
    _
  $region19: #{qrnn_projection_forward.5} parent=0 // pred_check_branch
    %22 = sbr.rel (0) target = $region21
  $region20: #{qrnn_projection_forward.5} parent=0 // pred_region
    _
  $region21: #{qrnn_projection_forward.5} parent=0 // pred_fallthru
    _
  // Predicated region
  $region22: #{qrnn_projection_forward.5} parent=0 // pred_check
    _
  $region23: #{qrnn_projection_forward.5} parent=0 // pred_check_branch
    %24 = sbr.rel (0) target = $region25
  $region24: #{qrnn_projection_forward.5} parent=0 // pred_region
    _
  $region25: #{qrnn_projection_forward.5} parent=0 // pred_fallthru
    _
  %p26 = scmp.eq.s32.totalorder 0, 0
  // Predicated region
  $region26: #{qrnn_projection_forward.5} parent=0 // pred_check
    %p27 = pneg %p26
  $region27: #{qrnn_projection_forward.5} parent=0 // pred_check_branch
    %29 = sbr.rel (%p27) target = $region29
  $region28: #{qrnn_projection_forward.5} parent=0 // pred_region
    %30 = vst [vmem:[#allocation2] sm:$0xf] 0.0
  $region29: #{qrnn_projection_forward.5} parent=0 // pred_fallthru
    _
  %v31 = vld [vmem:[%s0] sm:$0xf]
  %v32 = vld [vmem:[%s0 + $0x4] sm:$0xf]
  %v33 = vld [vmem:[%s0 + $0x8] sm:$0xf]
  %v34 = vld [vmem:[%s0 + $0xc] sm:$0xf]
  %v35 = vld [vmem:[%s0 + $0x10] sm:$0xf]
  %v36 = vld [vmem:[%s0 + $0x14] sm:$0xf]
  %v37 = vld [vmem:[%s0 + $0x18] sm:$0xf]
  %v38 = vld [vmem:[%s0 + $0x1c] sm:$0xf]
  %v39 = vld [vmem:[%s0 + $0x20] sm:$0xf]
  %v40 = vld [vmem:[%s0 + $0x24] sm:$0xf]
  %v41 = vld [vmem:[%s0 + $0x28] sm:$0xf]
  %v42 = vld [vmem:[%s0 + $0x2c] sm:$0xf]
  %v43 = vld [vmem:[%s0 + $0x30] sm:$0xf]
  %v44 = vld [vmem:[%s0 + $0x34] sm:$0xf]
  %v45 = vld [vmem:[%s0 + $0x38] sm:$0xf]
  %v46 = vld [vmem:[%s0 + $0x3c] sm:$0xf]
  %v47 = vld [vmem:[%s1] sm:$0xff]
  %v48 = vld [vmem:[%s1 + $0x8] sm:$0xf]
  %v49 = vld [vmem:[%s1 + $0xc] sm:$0xff]
  %v50 = vld [vmem:[%s1 + $0x14] sm:$0xf]
  %v51 = vld [vmem:[%s1 + $0x18] sm:$0xff]
  %v52 = vld [vmem:[%s1 + $0x20] sm:$0xf]
  %v53 = vld [vmem:[%s1 + $0x24] sm:$0xff]
  %v54 = vld [vmem:[%s1 + $0x2c] sm:$0xf]
  %v55 = vld [vmem:[%s1 + $0x30] sm:$0xff]
  %v56 = vld [vmem:[%s1 + $0x38] sm:$0xf]
  %v57 = vld [vmem:[%s1 + $0x3c] sm:$0xff]
  %v58 = vld [vmem:[%s1 + $0x44] sm:$0xf]
  %v59 = vld [vmem:[%s1 + $0x48] sm:$0xff]
  %v60 = vld [vmem:[%s1 + $0x50] sm:$0xf]
  %v61 = vld [vmem:[%s1 + $0x54] sm:$0xff]
  %v62 = vld [vmem:[%s1 + $0x5c] sm:$0xf]
  %v63 = vld [vmem:[%s1 + $0x60] sm:$0xff]
  %v64 = vld [vmem:[%s1 + $0x68] sm:$0xf]
  %v65 = vld [vmem:[%s1 + $0x6c] sm:$0xff]
  %v66 = vld [vmem:[%s1 + $0x74] sm:$0xf]
  %v67 = vld [vmem:[%s1 + $0x78] sm:$0xff]
  %v68 = vld [vmem:[%s1 + $0x80] sm:$0xf]
  %v69 = vld [vmem:[%s1 + $0x84] sm:$0xff]
  %v70 = vld [vmem:[%s1 + $0x8c] sm:$0xf]
  %v71 = vld [vmem:[%s1 + $0x90] sm:$0xff]
  %v72 = vld [vmem:[%s1 + $0x98] sm:$0xf]
  %v73 = vld [vmem:[%s1 + $0x9c] sm:$0xff]
  %v74 = vld [vmem:[%s1 + $0xa4] sm:$0xf]
  %v75 = vld [vmem:[%s1 + $0xa8] sm:$0xff]
  %v76 = vld [vmem:[%s1 + $0xb0] sm:$0xf]
  %v77 = vld [vmem:[%s1 + $0xb4] sm:$0xff]
  %v78 = vld [vmem:[%s1 + $0xbc] sm:$0xf]
  %v79 = vld [vmem:[%s2] sm:$0x7]
  %v81 = vlaneseq
  %v82 = vshrl.u32 %v81, 7
  %v83 = vsub.s32 0, %v82
  %v84 = vrot.slane %v79, %v83
  %v85 = vlaneseq
  %v86 = vshrl.u32 %v85, 7
  %v87 = vsub.s32 1, %v86
  %v88 = vrot.slane %v79, %v87
  %v89 = vlaneseq
  %v90 = vshrl.u32 %v89, 7
  %v91 = vsub.s32 2, %v90
  %v92 = vrot.slane %v79, %v91
  %v112 = vunpack.c.l.b16 %v31
  %v113 = vunpack.c.l.b16 %v32
  %v114 = vunpack.c.l.b16 %v33
  %v115 = vunpack.c.l.b16 %v34
  %v116 = vunpack.c.l.b16 %v35
  %v117 = vunpack.c.l.b16 %v36
  %v118 = vunpack.c.l.b16 %v37
  %v119 = vunpack.c.l.b16 %v38
  %v120 = vunpack.c.l.b16 %v39
  %v121 = vunpack.c.l.b16 %v40
  %v122 = vunpack.c.l.b16 %v41
  %v123 = vunpack.c.l.b16 %v42
  %v124 = vunpack.c.l.b16 %v43
  %v125 = vunpack.c.l.b16 %v44
  %v126 = vunpack.c.l.b16 %v45
  %v127 = vunpack.c.l.b16 %v46
  %v128 = vpack.c.b16 %v113, %v112
  %v129 = vpack.c.b16 %v115, %v114
  %v130 = vpack.c.b16 %v117, %v116
  %v131 = vpack.c.b16 %v119, %v118
  %v132 = vpack.c.b16 %v121, %v120
  %v133 = vpack.c.b16 %v123, %v122
  %v134 = vpack.c.b16 %v125, %v124
  %v135 = vpack.c.b16 %v127, %v126
  %v176 = vunpack.c.l.b16 %v47
  %v177 = vunpack.c.h.b16 %v47
  %v178 = vunpack.c.l.b16 %v48
  %v179 = vunpack.c.l.b16 %v49
  %v180 = vunpack.c.h.b16 %v49
  %v181 = vunpack.c.l.b16 %v50
  %v182 = vunpack.c.l.b16 %v51
  %v183 = vunpack.c.h.b16 %v51
  %v184 = vunpack.c.l.b16 %v52
  %v185 = vunpack.c.l.b16 %v53
  %v186 = vunpack.c.h.b16 %v53
  %v187 = vunpack.c.l.b16 %v54
  %v188 = vunpack.c.l.b16 %v55
  %v189 = vunpack.c.h.b16 %v55
  %v190 = vunpack.c.l.b16 %v56
  %v191 = vunpack.c.l.b16 %v57
  %v192 = vunpack.c.h.b16 %v57
  %v193 = vunpack.c.l.b16 %v58
  %v194 = vunpack.c.l.b16 %v59
  %v195 = vunpack.c.h.b16 %v59
  %v196 = vunpack.c.l.b16 %v60
  %v197 = vunpack.c.l.b16 %v61
  %v198 = vunpack.c.h.b16 %v61
  %v199 = vunpack.c.l.b16 %v62
  %v200 = vunpack.c.l.b16 %v63
  %v201 = vunpack.c.h.b16 %v63
  %v202 = vunpack.c.l.b16 %v64
  %v203 = vunpack.c.l.b16 %v65
  %v204 = vunpack.c.h.b16 %v65
  %v205 = vunpack.c.l.b16 %v66
  %v206 = vunpack.c.l.b16 %v67
  %v207 = vunpack.c.h.b16 %v67
  %v208 = vunpack.c.l.b16 %v68
  %v209 = vunpack.c.l.b16 %v69
  %v210 = vunpack.c.h.b16 %v69
  %v211 = vunpack.c.l.b16 %v70
  %v212 = vunpack.c.l.b16 %v71
  %v213 = vunpack.c.h.b16 %v71
  %v214 = vunpack.c.l.b16 %v72
  %v215 = vunpack.c.l.b16 %v73
  %v216 = vunpack.c.h.b16 %v73
  %v217 = vunpack.c.l.b16 %v74
  %v218 = vunpack.c.l.b16 %v75
  %v219 = vunpack.c.h.b16 %v75
  %v220 = vunpack.c.l.b16 %v76
  %v221 = vunpack.c.l.b16 %v77
  %v222 = vunpack.c.h.b16 %v77
  %v223 = vunpack.c.l.b16 %v78
  %v224 = vpack.c.b16 %v179, %v176
  %v225 = vpack.c.b16 %v180, %v177
  %v226 = vpack.c.b16 %v181, %v178
  %v227 = vpack.c.b16 %v185, %v182
  %v228 = vpack.c.b16 %v186, %v183
  %v229 = vpack.c.b16 %v187, %v184
  %v230 = vpack.c.b16 %v191, %v188
  %v231 = vpack.c.b16 %v192, %v189
  %v232 = vpack.c.b16 %v193, %v190
  %v233 = vpack.c.b16 %v197, %v194
  %v234 = vpack.c.b16 %v198, %v195
  %v235 = vpack.c.b16 %v199, %v196
  %v236 = vpack.c.b16 %v203, %v200
  %v237 = vpack.c.b16 %v204, %v201
  %v238 = vpack.c.b16 %v205, %v202
  %v239 = vpack.c.b16 %v209, %v206
  %v240 = vpack.c.b16 %v210, %v207
  %v241 = vpack.c.b16 %v211, %v208
  %v242 = vpack.c.b16 %v215, %v212
  %v243 = vpack.c.b16 %v216, %v213
  %v244 = vpack.c.b16 %v217, %v214
  %v245 = vpack.c.b16 %v221, %v218
  %v246 = vpack.c.b16 %v222, %v219
  %v247 = vpack.c.b16 %v223, %v220
  %272 = vmatprep.subr.bf16.mxu0 %v225
  %273 = vmatpush1.bf16.msra.mxu0 %v224
  %274 = vmatprep.subr.bf16.mxu0 %v228
  %275 = vmatpush1.bf16.msra.mxu0 %v227
  %276 = vmatprep.subr.bf16.mxu0 %v231
  %277 = vmatpush1.bf16.msra.mxu0 %v230
  %278 = vmatprep.subr.bf16.mxu0 %v234
  %279 = vmatpush1.bf16.msra.mxu0 %v233
  %280 = vmatprep.subr.bf16.mxu0 %v237
  %281 = vmatpush1.bf16.msra.mxu0 %v236
  %282 = vmatprep.subr.bf16.mxu0 %v240
  %283 = vmatpush1.bf16.msra.mxu0 %v239
  %284 = vmatprep.subr.bf16.mxu0 %v243
  %285 = vmatpush1.bf16.msra.mxu0 %v242
  %286 = vmatprep.subr.bf16.mxu0 %v246
  %287 = vmatpush1.bf16.msra.mxu0 %v245
  %288 = vmatprep.subr.bf16.mxu0 0
  %289 = vmatpush1.bf16.msra.mxu0 0
  %290 = vmatprep.subr.bf16.mxu0 0
  %291 = vmatpush1.bf16.msra.mxu0 0
  %292 = vmatprep.subr.bf16.mxu0 0
  %293 = vmatpush1.bf16.msra.mxu0 0
  %294 = vmatprep.subr.bf16.mxu0 0
  %295 = vmatpush1.bf16.msra.mxu0 0
  %296 = vmatprep.subr.bf16.mxu0 0
  %297 = vmatpush1.bf16.msra.mxu0 0
  %298 = vmatprep.subr.bf16.mxu0 0
  %299 = vmatpush1.bf16.msra.mxu0 0
  %300 = vmatprep.subr.bf16.mxu0 0
  %301 = vmatpush1.bf16.msra.mxu0 0
  %302 = vmatprep.subr.bf16.mxu0 0
  %303 = vmatpush1.bf16.msra.mxu0 0
  %304 = vmatprep.mubr.bf16.mxu0 0
  %305 = vmatmul.mubr.bf16.gmra.mrb[0].mxu0 %v128
  %v306 = vpop.f32.mrb[0].mxu0
  %v307 = vadd.f32 %v84, %v306
  %v308 = vpop.f32.mrb[0].mxu0
  %v309 = vadd.f32 %v88, %v308
  %v310 = vpop.f32.mrb[0].mxu0
  %v311 = vadd.f32 %v84, %v310
  %v312 = vpop.f32.mrb[0].mxu0
  %v313 = vadd.f32 %v88, %v312
  %314 = vmatprep.mubr.bf16.mxu0 0
  %315 = vmatmul.mubr.bf16.gmra.mrb[0].mxu0 %v129
  %v316 = vpop.f32.mrb[0].mxu0
  %v317 = vadd.f32 %v84, %v316
  %v318 = vpop.f32.mrb[0].mxu0
  %v319 = vadd.f32 %v88, %v318
  %v320 = vpop.f32.mrb[0].mxu0
  %v321 = vadd.f32 %v84, %v320
  %v322 = vpop.f32.mrb[0].mxu0
  %v323 = vadd.f32 %v88, %v322
  %324 = vmatprep.mubr.bf16.mxu0 0
  %325 = vmatmul.mubr.bf16.gmra.mrb[0].mxu0 %v130
  %v326 = vpop.f32.mrb[0].mxu0
  %v327 = vadd.f32 %v84, %v326
  %v328 = vpop.f32.mrb[0].mxu0
  %v329 = vadd.f32 %v88, %v328
  %v330 = vpop.f32.mrb[0].mxu0
  %v331 = vadd.f32 %v84, %v330
  %v332 = vpop.f32.mrb[0].mxu0
  %v333 = vadd.f32 %v88, %v332
  %334 = vmatprep.mubr.bf16.mxu0 0
  %335 = vmatmul.mubr.bf16.gmra.mrb[0].mxu0 %v131
  %v336 = vpop.f32.mrb[0].mxu0
  %v337 = vadd.f32 %v84, %v336
  %v338 = vpop.f32.mrb[0].mxu0
  %v339 = vadd.f32 %v88, %v338
  %v340 = vpop.f32.mrb[0].mxu0
  %v341 = vadd.f32 %v84, %v340
  %v342 = vpop.f32.mrb[0].mxu0
  %v343 = vadd.f32 %v88, %v342
  %344 = vmatprep.mubr.bf16.mxu0 0
  %345 = vmatmul.mubr.bf16.gmra.mrb[0].mxu0 %v132
  %v346 = vpop.f32.mrb[0].mxu0
  %v347 = vadd.f32 %v84, %v346
  %v348 = vpop.f32.mrb[0].mxu0
  %v349 = vadd.f32 %v88, %v348
  %v350 = vpop.f32.mrb[0].mxu0
  %v351 = vadd.f32 %v84, %v350
  %v352 = vpop.f32.mrb[0].mxu0
  %v353 = vadd.f32 %v88, %v352
  %354 = vmatprep.mubr.bf16.mxu0 0
  %355 = vmatmul.mubr.bf16.gmra.mrb[0].mxu0 %v133
  %v356 = vpop.f32.mrb[0].mxu0
  %v357 = vadd.f32 %v84, %v356
  %v358 = vpop.f32.mrb[0].mxu0
  %v359 = vadd.f32 %v88, %v358
  %v360 = vpop.f32.mrb[0].mxu0
  %v361 = vadd.f32 %v84, %v360
  %v362 = vpop.f32.mrb[0].mxu0
  %v363 = vadd.f32 %v88, %v362
  %364 = vmatprep.mubr.bf16.mxu0 0
  %365 = vmatmul.mubr.bf16.gmra.mrb[0].mxu0 %v134
  %v366 = vpop.f32.mrb[0].mxu0
  %v367 = vadd.f32 %v84, %v366
  %v368 = vpop.f32.mrb[0].mxu0
  %v369 = vadd.f32 %v88, %v368
  %v370 = vpop.f32.mrb[0].mxu0
  %v371 = vadd.f32 %v84, %v370
  %v372 = vpop.f32.mrb[0].mxu0
  %v373 = vadd.f32 %v88, %v372
  %374 = vmatprep.mubr.bf16.mxu0 0
  %375 = vmatmul.mubr.bf16.gmra.mrb[0].mxu0 %v135
  %v376 = vpop.f32.mrb[0].mxu0
  %v377 = vadd.f32 %v84, %v376
  %v378 = vpop.f32.mrb[0].mxu0
  %v379 = vadd.f32 %v88, %v378
  %v380 = vpop.f32.mrb[0].mxu0
  %v381 = vadd.f32 %v84, %v380
  %v382 = vpop.f32.mrb[0].mxu0
  %v383 = vadd.f32 %v88, %v382
  %384 = vdwg.mxu0
  %385 = vmatprep.subr.bf16.mxu0 0
  %386 = vmatpush1.bf16.msra.mxu0 %v226
  %387 = vmatprep.subr.bf16.mxu0 0
  %388 = vmatpush1.bf16.msra.mxu0 %v229
  %389 = vmatprep.subr.bf16.mxu0 0
  %390 = vmatpush1.bf16.msra.mxu0 %v232
  %391 = vmatprep.subr.bf16.mxu0 0
  %392 = vmatpush1.bf16.msra.mxu0 %v235
  %393 = vmatprep.subr.bf16.mxu0 0
  %394 = vmatpush1.bf16.msra.mxu0 %v238
  %395 = vmatprep.subr.bf16.mxu0 0
  %396 = vmatpush1.bf16.msra.mxu0 %v241
  %397 = vmatprep.subr.bf16.mxu0 0
  %398 = vmatpush1.bf16.msra.mxu0 %v244
  %399 = vmatprep.subr.bf16.mxu0 0
  %400 = vmatpush1.bf16.msra.mxu0 %v247
  %401 = vmatprep.subr.bf16.mxu0 0
  %402 = vmatpush1.bf16.msra.mxu0 0
  %403 = vmatprep.subr.bf16.mxu0 0
  %404 = vmatpush1.bf16.msra.mxu0 0
  %405 = vmatprep.subr.bf16.mxu0 0
  %406 = vmatpush1.bf16.msra.mxu0 0
  %407 = vmatprep.subr.bf16.mxu0 0
  %408 = vmatpush1.bf16.msra.mxu0 0
  %409 = vmatprep.subr.bf16.mxu0 0
  %410 = vmatpush1.bf16.msra.mxu0 0
  %411 = vmatprep.subr.bf16.mxu0 0
  %412 = vmatpush1.bf16.msra.mxu0 0
  %413 = vmatprep.subr.bf16.mxu0 0
  %414 = vmatpush1.bf16.msra.mxu0 0
  %415 = vmatprep.subr.bf16.mxu0 0
  %416 = vmatpush1.bf16.msra.mxu0 0
  %417 = vmatprep.mubr.bf16.mxu0 0
  %418 = vmatmul.mubr.bf16.gmra.mrb[0].mxu0 %v128
  %v419 = vpop.f32.mrb[0].mxu0
  %v420 = vadd.f32 %v92, %v419
  %v421 = vpop.f32.mrb[0].mxu0
  %v422 = vpop.f32.mrb[0].mxu0
  %v423 = vadd.f32 %v92, %v422
  %v424 = vpop.f32.mrb[0].mxu0
  %425 = vmatprep.mubr.bf16.mxu0 0
  %426 = vmatmul.mubr.bf16.gmra.mrb[0].mxu0 %v129
  %v427 = vpop.f32.mrb[0].mxu0
  %v428 = vadd.f32 %v92, %v427
  %v429 = vpop.f32.mrb[0].mxu0
  %v430 = vpop.f32.mrb[0].mxu0
  %v431 = vadd.f32 %v92, %v430
  %v432 = vpop.f32.mrb[0].mxu0
  %433 = vmatprep.mubr.bf16.mxu0 0
  %434 = vmatmul.mubr.bf16.gmra.mrb[0].mxu0 %v130
  %v435 = vpop.f32.mrb[0].mxu0
  %v436 = vadd.f32 %v92, %v435
  %v437 = vpop.f32.mrb[0].mxu0
  %v438 = vpop.f32.mrb[0].mxu0
  %v439 = vadd.f32 %v92, %v438
  %v440 = vpop.f32.mrb[0].mxu0
  %441 = vmatprep.mubr.bf16.mxu0 0
  %442 = vmatmul.mubr.bf16.gmra.mrb[0].mxu0 %v131
  %v443 = vpop.f32.mrb[0].mxu0
  %v444 = vadd.f32 %v92, %v443
  %v445 = vpop.f32.mrb[0].mxu0
  %v446 = vpop.f32.mrb[0].mxu0
  %v447 = vadd.f32 %v92, %v446
  %v448 = vpop.f32.mrb[0].mxu0
  %449 = vmatprep.mubr.bf16.mxu0 0
  %450 = vmatmul.mubr.bf16.gmra.mrb[0].mxu0 %v132
  %v451 = vpop.f32.mrb[0].mxu0
  %v452 = vadd.f32 %v92, %v451
  %v453 = vpop.f32.mrb[0].mxu0
  %v454 = vpop.f32.mrb[0].mxu0
  %v455 = vadd.f32 %v92, %v454
  %v456 = vpop.f32.mrb[0].mxu0
  %457 = vmatprep.mubr.bf16.mxu0 0
  %458 = vmatmul.mubr.bf16.gmra.mrb[0].mxu0 %v133
  %v459 = vpop.f32.mrb[0].mxu0
  %v460 = vadd.f32 %v92, %v459
  %v461 = vpop.f32.mrb[0].mxu0
  %v462 = vpop.f32.mrb[0].mxu0
  %v463 = vadd.f32 %v92, %v462
  %v464 = vpop.f32.mrb[0].mxu0
  %465 = vmatprep.mubr.bf16.mxu0 0
  %466 = vmatmul.mubr.bf16.gmra.mrb[0].mxu0 %v134
  %v467 = vpop.f32.mrb[0].mxu0
  %v468 = vadd.f32 %v92, %v467
  %v469 = vpop.f32.mrb[0].mxu0
  %v470 = vpop.f32.mrb[0].mxu0
  %v471 = vadd.f32 %v92, %v470
  %v472 = vpop.f32.mrb[0].mxu0
  %473 = vmatprep.mubr.bf16.mxu0 0
  %474 = vmatmul.mubr.bf16.gmra.mrb[0].mxu0 %v135
  %v475 = vpop.f32.mrb[0].mxu0
  %v476 = vadd.f32 %v92, %v475
  %v477 = vpop.f32.mrb[0].mxu0
  %v478 = vpop.f32.mrb[0].mxu0
  %v479 = vadd.f32 %v92, %v478
  %v480 = vpop.f32.mrb[0].mxu0
  %481 = vdwg.mxu0
  %v482 = vtanh.pop %v307
  %v483 = vtanh.pop %v311
  %v484 = vtanh.pop %v317
  %v485 = vtanh.pop %v321
  %v486 = vtanh.pop %v327
  %v487 = vtanh.pop %v331
  %v488 = vtanh.pop %v337
  %v489 = vtanh.pop %v341
  %v490 = vtanh.pop %v347
  %v491 = vtanh.pop %v351
  %v492 = vtanh.pop %v357
  %v493 = vtanh.pop %v361
  %v494 = vtanh.pop %v367
  %v495 = vtanh.pop %v371
  %v496 = vtanh.pop %v377
  %v497 = vtanh.pop %v381
  %v498 = vxor.u32 %v309, 2147483648
  %v499 = vxor.u32 %v313, 2147483648
  %v500 = vxor.u32 %v319, 2147483648
  %v501 = vxor.u32 %v323, 2147483648
  %v502 = vxor.u32 %v329, 2147483648
  %v503 = vxor.u32 %v333, 2147483648
  %v504 = vxor.u32 %v339, 2147483648
  %v505 = vxor.u32 %v343, 2147483648
  %v506 = vxor.u32 %v349, 2147483648
  %v507 = vxor.u32 %v353, 2147483648
  %v508 = vxor.u32 %v359, 2147483648
  %v509 = vxor.u32 %v363, 2147483648
  %v510 = vxor.u32 %v369, 2147483648
  %v511 = vxor.u32 %v373, 2147483648
  %v512 = vxor.u32 %v379, 2147483648
  %v513 = vxor.u32 %v383, 2147483648
  %v514 = vmul.f32 %v498, 1.442695
  %v515 = vpow.pop %v514
  %v516 = vmul.f32 %v499, 1.442695
  %v517 = vpow.pop %v516
  %v518 = vmul.f32 %v500, 1.442695
  %v519 = vpow.pop %v518
  %v520 = vmul.f32 %v501, 1.442695
  %v521 = vpow.pop %v520
  %v522 = vmul.f32 %v502, 1.442695
  %v523 = vpow.pop %v522
  %v524 = vmul.f32 %v503, 1.442695
  %v525 = vpow.pop %v524
  %v526 = vmul.f32 %v504, 1.442695
  %v527 = vpow.pop %v526
  %v528 = vmul.f32 %v505, 1.442695
  %v529 = vpow.pop %v528
  %v530 = vmul.f32 %v506, 1.442695
  %v531 = vpow.pop %v530
  %v532 = vmul.f32 %v507, 1.442695
  %v533 = vpow.pop %v532
  %v534 = vmul.f32 %v508, 1.442695
  %v535 = vpow.pop %v534
  %v536 = vmul.f32 %v509, 1.442695
  %v537 = vpow.pop %v536
  %v538 = vmul.f32 %v510, 1.442695
  %v539 = vpow.pop %v538
  %v540 = vmul.f32 %v511, 1.442695
  %v541 = vpow.pop %v540
  %v542 = vmul.f32 %v512, 1.442695
  %v543 = vpow.pop %v542
  %v544 = vmul.f32 %v513, 1.442695
  %v545 = vpow.pop %v544
  %v546 = vadd.f32 %v515, 1.0
  %v547 = vadd.f32 %v517, 1.0
  %v548 = vadd.f32 %v519, 1.0
  %v549 = vadd.f32 %v521, 1.0
  %v550 = vadd.f32 %v523, 1.0
  %v551 = vadd.f32 %v525, 1.0
  %v552 = vadd.f32 %v527, 1.0
  %v553 = vadd.f32 %v529, 1.0
  %v554 = vadd.f32 %v531, 1.0
  %v555 = vadd.f32 %v533, 1.0
  %v556 = vadd.f32 %v535, 1.0
  %v557 = vadd.f32 %v537, 1.0
  %v558 = vadd.f32 %v539, 1.0
  %v559 = vadd.f32 %v541, 1.0
  %v560 = vadd.f32 %v543, 1.0
  %v561 = vadd.f32 %v545, 1.0
  %v562 = vrcp.pop %v546
  %v563 = vmul.f32 1.0, %v562
  %v564 = vrcp.pop %v547
  %v565 = vmul.f32 1.0, %v564
  %v566 = vrcp.pop %v548
  %v567 = vmul.f32 1.0, %v566
  %v568 = vrcp.pop %v549
  %v569 = vmul.f32 1.0, %v568
  %v570 = vrcp.pop %v550
  %v571 = vmul.f32 1.0, %v570
  %v572 = vrcp.pop %v551
  %v573 = vmul.f32 1.0, %v572
  %v574 = vrcp.pop %v552
  %v575 = vmul.f32 1.0, %v574
  %v576 = vrcp.pop %v553
  %v577 = vmul.f32 1.0, %v576
  %v578 = vrcp.pop %v554
  %v579 = vmul.f32 1.0, %v578
  %v580 = vrcp.pop %v555
  %v581 = vmul.f32 1.0, %v580
  %v582 = vrcp.pop %v556
  %v583 = vmul.f32 1.0, %v582
  %v584 = vrcp.pop %v557
  %v585 = vmul.f32 1.0, %v584
  %v586 = vrcp.pop %v558
  %v587 = vmul.f32 1.0, %v586
  %v588 = vrcp.pop %v559
  %v589 = vmul.f32 1.0, %v588
  %v590 = vrcp.pop %v560
  %v591 = vmul.f32 1.0, %v590
  %v592 = vrcp.pop %v561
  %v593 = vmul.f32 1.0, %v592
  %v594 = vxor.u32 %v420, 2147483648
  %v595 = vxor.u32 %v423, 2147483648
  %v596 = vxor.u32 %v428, 2147483648
  %v597 = vxor.u32 %v431, 2147483648
  %v598 = vxor.u32 %v436, 2147483648
  %v599 = vxor.u32 %v439, 2147483648
  %v600 = vxor.u32 %v444, 2147483648
  %v601 = vxor.u32 %v447, 2147483648
  %v602 = vxor.u32 %v452, 2147483648
  %v603 = vxor.u32 %v455, 2147483648
  %v604 = vxor.u32 %v460, 2147483648
  %v605 = vxor.u32 %v463, 2147483648
  %v606 = vxor.u32 %v468, 2147483648
  %v607 = vxor.u32 %v471, 2147483648
  %v608 = vxor.u32 %v476, 2147483648
  %v609 = vxor.u32 %v479, 2147483648
  %v610 = vmul.f32 %v594, 1.442695
  %v611 = vpow.pop %v610
  %v612 = vmul.f32 %v595, 1.442695
  %v613 = vpow.pop %v612
  %v614 = vmul.f32 %v596, 1.442695
  %v615 = vpow.pop %v614
  %v616 = vmul.f32 %v597, 1.442695
  %v617 = vpow.pop %v616
  %v618 = vmul.f32 %v598, 1.442695
  %v619 = vpow.pop %v618
  %v620 = vmul.f32 %v599, 1.442695
  %v621 = vpow.pop %v620
  %v622 = vmul.f32 %v600, 1.442695
  %v623 = vpow.pop %v622
  %v624 = vmul.f32 %v601, 1.442695
  %v625 = vpow.pop %v624
  %v626 = vmul.f32 %v602, 1.442695
  %v627 = vpow.pop %v626
  %v628 = vmul.f32 %v603, 1.442695
  %v629 = vpow.pop %v628
  %v630 = vmul.f32 %v604, 1.442695
  %v631 = vpow.pop %v630
  %v632 = vmul.f32 %v605, 1.442695
  %v633 = vpow.pop %v632
  %v634 = vmul.f32 %v606, 1.442695
  %v635 = vpow.pop %v634
  %v636 = vmul.f32 %v607, 1.442695
  %v637 = vpow.pop %v636
  %v638 = vmul.f32 %v608, 1.442695
  %v639 = vpow.pop %v638
  %v640 = vmul.f32 %v609, 1.442695
  %v641 = vpow.pop %v640
  %v642 = vadd.f32 %v611, 1.0
  %v643 = vadd.f32 %v613, 1.0
  %v644 = vadd.f32 %v615, 1.0
  %v645 = vadd.f32 %v617, 1.0
  %v646 = vadd.f32 %v619, 1.0
  %v647 = vadd.f32 %v621, 1.0
  %v648 = vadd.f32 %v623, 1.0
  %v649 = vadd.f32 %v625, 1.0
  %v650 = vadd.f32 %v627, 1.0
  %v651 = vadd.f32 %v629, 1.0
  %v652 = vadd.f32 %v631, 1.0
  %v653 = vadd.f32 %v633, 1.0
  %v654 = vadd.f32 %v635, 1.0
  %v655 = vadd.f32 %v637, 1.0
  %v656 = vadd.f32 %v639, 1.0
  %v657 = vadd.f32 %v641, 1.0
  %v658 = vrcp.pop %v642
  %v659 = vmul.f32 1.0, %v658
  %v660 = vrcp.pop %v643
  %v661 = vmul.f32 1.0, %v660
  %v662 = vrcp.pop %v644
  %v663 = vmul.f32 1.0, %v662
  %v664 = vrcp.pop %v645
  %v665 = vmul.f32 1.0, %v664
  %v666 = vrcp.pop %v646
  %v667 = vmul.f32 1.0, %v666
  %v668 = vrcp.pop %v647
  %v669 = vmul.f32 1.0, %v668
  %v670 = vrcp.pop %v648
  %v671 = vmul.f32 1.0, %v670
  %v672 = vrcp.pop %v649
  %v673 = vmul.f32 1.0, %v672
  %v674 = vrcp.pop %v650
  %v675 = vmul.f32 1.0, %v674
  %v676 = vrcp.pop %v651
  %v677 = vmul.f32 1.0, %v676
  %v678 = vrcp.pop %v652
  %v679 = vmul.f32 1.0, %v678
  %v680 = vrcp.pop %v653
  %v681 = vmul.f32 1.0, %v680
  %v682 = vrcp.pop %v654
  %v683 = vmul.f32 1.0, %v682
  %v684 = vrcp.pop %v655
  %v685 = vmul.f32 1.0, %v684
  %v686 = vrcp.pop %v656
  %v687 = vmul.f32 1.0, %v686
  %v688 = vrcp.pop %v657
  %v689 = vmul.f32 1.0, %v688
  %v690 = vld [vmem:[#allocation2] sm:$0xf]
  %v691 = vmul.f32 %v563, %v482
  %v692 = vsub.f32 1.0, %v563
  %v693 = vmul.f32 %v692, %v690
  %v694 = vadd.f32 %v691, %v693
  %695 = vst [vmem:[#allocation3] sm:$0xf] %v694
  %v697 = vrot.slane %v694, 4
  %v699 = vmul.f32 %v692, %v697
  %v700 = vadd.f32 %v691, %v699
  %701 = vst [vmem:[#allocation3] sm:$0xf0] %v700
  %v702 = vmul.f32 %v565, %v483
  %v703 = vsub.f32 1.0, %v565
  %v705 = vrot.slane %v700, 4
  %v707 = vmul.f32 %v703, %v705
  %v708 = vadd.f32 %v702, %v707
  %709 = vst [vmem:[#allocation3 + $0x8] sm:$0xf] %v708
  %v711 = vrot.slane %v708, 4
  %v713 = vmul.f32 %v703, %v711
  %v714 = vadd.f32 %v702, %v713
  %715 = vst [vmem:[#allocation3 + $0x8] sm:$0xf0] %v714
  %v716 = vmul.f32 %v567, %v484
  %v717 = vsub.f32 1.0, %v567
  %v719 = vrot.slane %v714, 4
  %v721 = vmul.f32 %v717, %v719
  %v722 = vadd.f32 %v716, %v721
  %723 = vst [vmem:[#allocation3 + $0x10] sm:$0xf] %v722
  %v725 = vrot.slane %v722, 4
  %v727 = vmul.f32 %v717, %v725
  %v728 = vadd.f32 %v716, %v727
  %729 = vst [vmem:[#allocation3 + $0x10] sm:$0xf0] %v728
  %v730 = vmul.f32 %v569, %v485
  %v731 = vsub.f32 1.0, %v569
  %v733 = vrot.slane %v728, 4
  %v735 = vmul.f32 %v731, %v733
  %v736 = vadd.f32 %v730, %v735
  %737 = vst [vmem:[#allocation3 + $0x18] sm:$0xf] %v736
  %v739 = vrot.slane %v736, 4
  %v741 = vmul.f32 %v731, %v739
  %v742 = vadd.f32 %v730, %v741
  %743 = vst [vmem:[#allocation3 + $0x18] sm:$0xf0] %v742
  %v744 = vmul.f32 %v571, %v486
  %v745 = vsub.f32 1.0, %v571
  %v747 = vrot.slane %v742, 4
  %v749 = vmul.f32 %v745, %v747
  %v750 = vadd.f32 %v744, %v749
  %751 = vst [vmem:[#allocation3 + $0x20] sm:$0xf] %v750
  %v753 = vrot.slane %v750, 4
  %v755 = vmul.f32 %v745, %v753
  %v756 = vadd.f32 %v744, %v755
  %757 = vst [vmem:[#allocation3 + $0x20] sm:$0xf0] %v756
  %v758 = vmul.f32 %v573, %v487
  %v759 = vsub.f32 1.0, %v573
  %v761 = vrot.slane %v756, 4
  %v763 = vmul.f32 %v759, %v761
  %v764 = vadd.f32 %v758, %v763
  %765 = vst [vmem:[#allocation3 + $0x28] sm:$0xf] %v764
  %v767 = vrot.slane %v764, 4
  %v769 = vmul.f32 %v759, %v767
  %v770 = vadd.f32 %v758, %v769
  %771 = vst [vmem:[#allocation3 + $0x28] sm:$0xf0] %v770
  %v772 = vmul.f32 %v575, %v488
  %v773 = vsub.f32 1.0, %v575
  %v775 = vrot.slane %v770, 4
  %v777 = vmul.f32 %v773, %v775
  %v778 = vadd.f32 %v772, %v777
  %779 = vst [vmem:[#allocation3 + $0x30] sm:$0xf] %v778
  %v781 = vrot.slane %v778, 4
  %v783 = vmul.f32 %v773, %v781
  %v784 = vadd.f32 %v772, %v783
  %785 = vst [vmem:[#allocation3 + $0x30] sm:$0xf0] %v784
  %v786 = vmul.f32 %v577, %v489
  %v787 = vsub.f32 1.0, %v577
  %v789 = vrot.slane %v784, 4
  %v791 = vmul.f32 %v787, %v789
  %v792 = vadd.f32 %v786, %v791
  %793 = vst [vmem:[#allocation3 + $0x38] sm:$0xf] %v792
  %v795 = vrot.slane %v792, 4
  %v797 = vmul.f32 %v787, %v795
  %v798 = vadd.f32 %v786, %v797
  %799 = vst [vmem:[#allocation3 + $0x38] sm:$0xf0] %v798
  %v800 = vmul.f32 %v579, %v490
  %v801 = vsub.f32 1.0, %v579
  %v803 = vrot.slane %v798, 4
  %v805 = vmul.f32 %v801, %v803
  %v806 = vadd.f32 %v800, %v805
  %807 = vst [vmem:[#allocation3 + $0x40] sm:$0xf] %v806
  %v809 = vrot.slane %v806, 4
  %v811 = vmul.f32 %v801, %v809
  %v812 = vadd.f32 %v800, %v811
  %813 = vst [vmem:[#allocation3 + $0x40] sm:$0xf0] %v812
  %v814 = vmul.f32 %v581, %v491
  %v815 = vsub.f32 1.0, %v581
  %v817 = vrot.slane %v812, 4
  %v819 = vmul.f32 %v815, %v817
  %v820 = vadd.f32 %v814, %v819
  %821 = vst [vmem:[#allocation3 + $0x48] sm:$0xf] %v820
  %v823 = vrot.slane %v820, 4
  %v825 = vmul.f32 %v815, %v823
  %v826 = vadd.f32 %v814, %v825
  %827 = vst [vmem:[#allocation3 + $0x48] sm:$0xf0] %v826
  %v828 = vmul.f32 %v583, %v492
  %v829 = vsub.f32 1.0, %v583
  %v831 = vrot.slane %v826, 4
  %v833 = vmul.f32 %v829, %v831
  %v834 = vadd.f32 %v828, %v833
  %835 = vst [vmem:[#allocation3 + $0x50] sm:$0xf] %v834
  %v837 = vrot.slane %v834, 4
  %v839 = vmul.f32 %v829, %v837
  %v840 = vadd.f32 %v828, %v839
  %841 = vst [vmem:[#allocation3 + $0x50] sm:$0xf0] %v840
  %v842 = vmul.f32 %v585, %v493
  %v843 = vsub.f32 1.0, %v585
  %v845 = vrot.slane %v840, 4
  %v847 = vmul.f32 %v843, %v845
  %v848 = vadd.f32 %v842, %v847
  %849 = vst [vmem:[#allocation3 + $0x58] sm:$0xf] %v848
  %v851 = vrot.slane %v848, 4
  %v853 = vmul.f32 %v843, %v851
  %v854 = vadd.f32 %v842, %v853
  %855 = vst [vmem:[#allocation3 + $0x58] sm:$0xf0] %v854
  %v856 = vmul.f32 %v587, %v494
  %v857 = vsub.f32 1.0, %v587
  %v859 = vrot.slane %v854, 4
  %v861 = vmul.f32 %v857, %v859
  %v862 = vadd.f32 %v856, %v861
  %863 = vst [vmem:[#allocation3 + $0x60] sm:$0xf] %v862
  %v865 = vrot.slane %v862, 4
  %v867 = vmul.f32 %v857, %v865
  %v868 = vadd.f32 %v856, %v867
  %869 = vst [vmem:[#allocation3 + $0x60] sm:$0xf0] %v868
  %v870 = vmul.f32 %v589, %v495
  %v871 = vsub.f32 1.0, %v589
  %v873 = vrot.slane %v868, 4
  %v875 = vmul.f32 %v871, %v873
  %v876 = vadd.f32 %v870, %v875
  %877 = vst [vmem:[#allocation3 + $0x68] sm:$0xf] %v876
  %v879 = vrot.slane %v876, 4
  %v881 = vmul.f32 %v871, %v879
  %v882 = vadd.f32 %v870, %v881
  %883 = vst [vmem:[#allocation3 + $0x68] sm:$0xf0] %v882
  %v884 = vmul.f32 %v591, %v496
  %v885 = vsub.f32 1.0, %v591
  %v887 = vrot.slane %v882, 4
  %v889 = vmul.f32 %v885, %v887
  %v890 = vadd.f32 %v884, %v889
  %891 = vst [vmem:[#allocation3 + $0x70] sm:$0xf] %v890
  %v893 = vrot.slane %v890, 4
  %v895 = vmul.f32 %v885, %v893
  %v896 = vadd.f32 %v884, %v895
  %897 = vst [vmem:[#allocation3 + $0x70] sm:$0xf0] %v896
  %v898 = vmul.f32 %v593, %v497
  %v899 = vsub.f32 1.0, %v593
  %v901 = vrot.slane %v896, 4
  %v903 = vmul.f32 %v899, %v901
  %v904 = vadd.f32 %v898, %v903
  %905 = vst [vmem:[#allocation3 + $0x78] sm:$0xf] %v904
  %v907 = vrot.slane %v904, 4
  %v909 = vmul.f32 %v899, %v907
  %v910 = vadd.f32 %v898, %v909
  %911 = vst [vmem:[#allocation3 + $0x78] sm:$0xf0] %v910
  %912 = vst [vmem:[#allocation2 - $0x4] sm:$0xf0] %v910
  // Predicated region
  $region30: #{qrnn_projection_forward.5} parent=0 // pred_check
    %p913 = pneg %p26
  $region31: #{qrnn_projection_forward.5} parent=0 // pred_check_branch
    %915 = sbr.rel (%p913) target = $region33
  $region32: #{qrnn_projection_forward.5} parent=0 // pred_region
    %916 = vst [vmem:[%s7 - $0x4] sm:$0xf0] %v910
  $region33: #{qrnn_projection_forward.5} parent=0 // pred_fallthru
    _
  %v917 = vld [vmem:[#allocation3] sm:$0xff]
  %v918 = vld [vmem:[#allocation3 + $0x8] sm:$0xff]
  %v919 = vld [vmem:[#allocation3 + $0x10] sm:$0xff]
  %v920 = vld [vmem:[#allocation3 + $0x18] sm:$0xff]
  %v921 = vld [vmem:[#allocation3 + $0x20] sm:$0xff]
  %v922 = vld [vmem:[#allocation3 + $0x28] sm:$0xff]
  %v923 = vld [vmem:[#allocation3 + $0x30] sm:$0xff]
  %v924 = vld [vmem:[#allocation3 + $0x38] sm:$0xff]
  %v925 = vld [vmem:[#allocation3 + $0x40] sm:$0xff]
  %v926 = vld [vmem:[#allocation3 + $0x48] sm:$0xff]
  %v927 = vld [vmem:[#allocation3 + $0x50] sm:$0xff]
  %v928 = vld [vmem:[#allocation3 + $0x58] sm:$0xff]
  %v929 = vld [vmem:[#allocation3 + $0x60] sm:$0xff]
  %v930 = vld [vmem:[#allocation3 + $0x68] sm:$0xff]
  %v931 = vld [vmem:[#allocation3 + $0x70] sm:$0xff]
  %v932 = vld [vmem:[#allocation3 + $0x78] sm:$0xff]
  %v933 = vmul.f32 %v659, %v917
  %v934 = vmul.f32 %v661, %v918
  %v935 = vmul.f32 %v663, %v919
  %v936 = vmul.f32 %v665, %v920
  %v937 = vmul.f32 %v667, %v921
  %v938 = vmul.f32 %v669, %v922
  %v939 = vmul.f32 %v671, %v923
  %v940 = vmul.f32 %v673, %v924
  %v941 = vmul.f32 %v675, %v925
  %v942 = vmul.f32 %v677, %v926
  %v943 = vmul.f32 %v679, %v927
  %v944 = vmul.f32 %v681, %v928
  %v945 = vmul.f32 %v683, %v929
  %v946 = vmul.f32 %v685, %v930
  %v947 = vmul.f32 %v687, %v931
  %v948 = vmul.f32 %v689, %v932
  %v949 = vmax.f32 %v933, -5.0
  %v950 = vmax.f32 %v934, -5.0
  %v951 = vmax.f32 %v935, -5.0
  %v952 = vmax.f32 %v936, -5.0
  %v953 = vmax.f32 %v937, -5.0
  %v954 = vmax.f32 %v938, -5.0
  %v955 = vmax.f32 %v939, -5.0
  %v956 = vmax.f32 %v940, -5.0
  %v957 = vmax.f32 %v941, -5.0
  %v958 = vmax.f32 %v942, -5.0
  %v959 = vmax.f32 %v943, -5.0
  %v960 = vmax.f32 %v944, -5.0
  %v961 = vmax.f32 %v945, -5.0
  %v962 = vmax.f32 %v946, -5.0
  %v963 = vmax.f32 %v947, -5.0
  %v964 = vmax.f32 %v948, -5.0
  %v965 = vmin.f32 %v949, 5.0
  %v966 = vmin.f32 %v950, 5.0
  %v967 = vmin.f32 %v951, 5.0
  %v968 = vmin.f32 %v952, 5.0
  %v969 = vmin.f32 %v953, 5.0
  %v970 = vmin.f32 %v954, 5.0
  %v971 = vmin.f32 %v955, 5.0
  %v972 = vmin.f32 %v956, 5.0
  %v973 = vmin.f32 %v957, 5.0
  %v974 = vmin.f32 %v958, 5.0
  %v975 = vmin.f32 %v959, 5.0
  %v976 = vmin.f32 %v960, 5.0
  %v977 = vmin.f32 %v961, 5.0
  %v978 = vmin.f32 %v962, 5.0
  %v979 = vmin.f32 %v963, 5.0
  %v980 = vmin.f32 %v964, 5.0
  %v981 = vpack.c.bf16 %v966, %v965
  %v982 = vpack.c.bf16 %v968, %v967
  %v983 = vpack.c.bf16 %v970, %v969
  %v984 = vpack.c.bf16 %v972, %v971
  %v985 = vpack.c.bf16 %v974, %v973
  %v986 = vpack.c.bf16 %v976, %v975
  %v987 = vpack.c.bf16 %v978, %v977
  %v988 = vpack.c.bf16 %v980, %v979
  %v989 = vld [vmem:[%s3] sm:$0xf]
  %v990 = vld [vmem:[%s3 + $0x4] sm:$0xf]
  %v991 = vld [vmem:[%s3 + $0x8] sm:$0xf]
  %v992 = vld [vmem:[%s3 + $0xc] sm:$0xf]
  %v993 = vld [vmem:[%s3 + $0x10] sm:$0xf]
  %v994 = vld [vmem:[%s3 + $0x14] sm:$0xf]
  %v995 = vld [vmem:[%s3 + $0x18] sm:$0xf]
  %v996 = vld [vmem:[%s3 + $0x1c] sm:$0xf]
  %v997 = vld [vmem:[%s3 + $0x20] sm:$0xf]
  %v998 = vld [vmem:[%s3 + $0x24] sm:$0xf]
  %v999 = vld [vmem:[%s3 + $0x28] sm:$0xf]
  %v1000 = vld [vmem:[%s3 + $0x2c] sm:$0xf]
  %v1001 = vld [vmem:[%s3 + $0x30] sm:$0xf]
  %v1002 = vld [vmem:[%s3 + $0x34] sm:$0xf]
  %v1003 = vld [vmem:[%s3 + $0x38] sm:$0xf]
  %v1004 = vld [vmem:[%s3 + $0x3c] sm:$0xf]
  %v1021 = vunpack.c.l.b16 %v989
  %v1022 = vunpack.c.l.b16 %v990
  %v1023 = vunpack.c.l.b16 %v991
  %v1024 = vunpack.c.l.b16 %v992
  %v1025 = vunpack.c.l.b16 %v993
  %v1026 = vunpack.c.l.b16 %v994
  %v1027 = vunpack.c.l.b16 %v995
  %v1028 = vunpack.c.l.b16 %v996
  %v1029 = vunpack.c.l.b16 %v997
  %v1030 = vunpack.c.l.b16 %v998
  %v1031 = vunpack.c.l.b16 %v999
  %v1032 = vunpack.c.l.b16 %v1000
  %v1033 = vunpack.c.l.b16 %v1001
  %v1034 = vunpack.c.l.b16 %v1002
  %v1035 = vunpack.c.l.b16 %v1003
  %v1036 = vunpack.c.l.b16 %v1004
  %v1037 = vpack.c.b16 %v1022, %v1021
  %v1038 = vpack.c.b16 %v1024, %v1023
  %v1039 = vpack.c.b16 %v1026, %v1025
  %v1040 = vpack.c.b16 %v1028, %v1027
  %v1041 = vpack.c.b16 %v1030, %v1029
  %v1042 = vpack.c.b16 %v1032, %v1031
  %v1043 = vpack.c.b16 %v1034, %v1033
  %v1044 = vpack.c.b16 %v1036, %v1035
  %1053 = vmatprep.subr.bf16.mxu0 0
  %1054 = vmatpush1.bf16.msra.mxu0 %v1037
  %1055 = vmatprep.subr.bf16.mxu0 0
  %1056 = vmatpush1.bf16.msra.mxu0 %v1038
  %1057 = vmatprep.subr.bf16.mxu0 0
  %1058 = vmatpush1.bf16.msra.mxu0 %v1039
  %1059 = vmatprep.subr.bf16.mxu0 0
  %1060 = vmatpush1.bf16.msra.mxu0 %v1040
  %1061 = vmatprep.subr.bf16.mxu0 0
  %1062 = vmatpush1.bf16.msra.mxu0 %v1041
  %1063 = vmatprep.subr.bf16.mxu0 0
  %1064 = vmatpush1.bf16.msra.mxu0 %v1042
  %1065 = vmatprep.subr.bf16.mxu0 0
  %1066 = vmatpush1.bf16.msra.mxu0 %v1043
  %1067 = vmatprep.subr.bf16.mxu0 0
  %1068 = vmatpush1.bf16.msra.mxu0 %v1044
  %1069 = vmatprep.subr.bf16.mxu0 0
  %1070 = vmatpush1.bf16.msra.mxu0 0
  %1071 = vmatprep.subr.bf16.mxu0 0
  %1072 = vmatpush1.bf16.msra.mxu0 0
  %1073 = vmatprep.subr.bf16.mxu0 0
  %1074 = vmatpush1.bf16.msra.mxu0 0
  %1075 = vmatprep.subr.bf16.mxu0 0
  %1076 = vmatpush1.bf16.msra.mxu0 0
  %1077 = vmatprep.subr.bf16.mxu0 0
  %1078 = vmatpush1.bf16.msra.mxu0 0
  %1079 = vmatprep.subr.bf16.mxu0 0
  %1080 = vmatpush1.bf16.msra.mxu0 0
  %1081 = vmatprep.subr.bf16.mxu0 0
  %1082 = vmatpush1.bf16.msra.mxu0 0
  %1083 = vmatprep.subr.bf16.mxu0 0
  %1084 = vmatpush1.bf16.msra.mxu0 0
  %1085 = vmatprep.mubr.bf16.mxu0 0
  %1086 = vmatmul.mubr.bf16.gmra.mrb[0].mxu0 %v981
  %v1087 = vpop.f32.mrb[0].mxu0
  %v1088 = vadd.f32 0.0, %v1087
  %v1089 = vpop.f32.mrb[0].mxu0
  %v1090 = vpop.f32.mrb[0].mxu0
  %v1091 = vadd.f32 0.0, %v1090
  %v1092 = vpop.f32.mrb[0].mxu0
  %1093 = vmatprep.mubr.bf16.mxu0 0
  %1094 = vmatmul.mubr.bf16.gmra.mrb[0].mxu0 %v982
  %v1095 = vpop.f32.mrb[0].mxu0
  %v1096 = vadd.f32 0.0, %v1095
  %v1097 = vpop.f32.mrb[0].mxu0
  %v1098 = vpop.f32.mrb[0].mxu0
  %v1099 = vadd.f32 0.0, %v1098
  %v1100 = vpop.f32.mrb[0].mxu0
  %1101 = vmatprep.mubr.bf16.mxu0 0
  %1102 = vmatmul.mubr.bf16.gmra.mrb[0].mxu0 %v983
  %v1103 = vpop.f32.mrb[0].mxu0
  %v1104 = vadd.f32 0.0, %v1103
  %v1105 = vpop.f32.mrb[0].mxu0
  %v1106 = vpop.f32.mrb[0].mxu0
  %v1107 = vadd.f32 0.0, %v1106
  %v1108 = vpop.f32.mrb[0].mxu0
  %1109 = vmatprep.mubr.bf16.mxu0 0
  %1110 = vmatmul.mubr.bf16.gmra.mrb[0].mxu0 %v984
  %v1111 = vpop.f32.mrb[0].mxu0
  %v1112 = vadd.f32 0.0, %v1111
  %v1113 = vpop.f32.mrb[0].mxu0
  %v1114 = vpop.f32.mrb[0].mxu0
  %v1115 = vadd.f32 0.0, %v1114
  %v1116 = vpop.f32.mrb[0].mxu0
  %1117 = vmatprep.mubr.bf16.mxu0 0
  %1118 = vmatmul.mubr.bf16.gmra.mrb[0].mxu0 %v985
  %v1119 = vpop.f32.mrb[0].mxu0
  %v1120 = vadd.f32 0.0, %v1119
  %v1121 = vpop.f32.mrb[0].mxu0
  %v1122 = vpop.f32.mrb[0].mxu0
  %v1123 = vadd.f32 0.0, %v1122
  %v1124 = vpop.f32.mrb[0].mxu0
  %1125 = vmatprep.mubr.bf16.mxu0 0
  %1126 = vmatmul.mubr.bf16.gmra.mrb[0].mxu0 %v986
  %v1127 = vpop.f32.mrb[0].mxu0
  %v1128 = vadd.f32 0.0, %v1127
  %v1129 = vpop.f32.mrb[0].mxu0
  %v1130 = vpop.f32.mrb[0].mxu0
  %v1131 = vadd.f32 0.0, %v1130
  %v1132 = vpop.f32.mrb[0].mxu0
  %1133 = vmatprep.mubr.bf16.mxu0 0
  %1134 = vmatmul.mubr.bf16.gmra.mrb[0].mxu0 %v987
  %v1135 = vpop.f32.mrb[0].mxu0
  %v1136 = vadd.f32 0.0, %v1135
  %v1137 = vpop.f32.mrb[0].mxu0
  %v1138 = vpop.f32.mrb[0].mxu0
  %v1139 = vadd.f32 0.0, %v1138
  %v1140 = vpop.f32.mrb[0].mxu0
  %1141 = vmatprep.mubr.bf16.mxu0 0
  %1142 = vmatmul.mubr.bf16.gmra.mrb[0].mxu0 %v988
  %v1143 = vpop.f32.mrb[0].mxu0
  %v1144 = vadd.f32 0.0, %v1143
  %v1145 = vpop.f32.mrb[0].mxu0
  %v1146 = vpop.f32.mrb[0].mxu0
  %v1147 = vadd.f32 0.0, %v1146
  %v1148 = vpop.f32.mrb[0].mxu0
  %1149 = vdwg.mxu0
  %v1150 = vmax.f32 %v1088, -5.0
  %v1151 = vmax.f32 %v1091, -5.0
  %v1152 = vmax.f32 %v1096, -5.0
  %v1153 = vmax.f32 %v1099, -5.0
  %v1154 = vmax.f32 %v1104, -5.0
  %v1155 = vmax.f32 %v1107, -5.0
  %v1156 = vmax.f32 %v1112, -5.0
  %v1157 = vmax.f32 %v1115, -5.0
  %v1158 = vmax.f32 %v1120, -5.0
  %v1159 = vmax.f32 %v1123, -5.0
  %v1160 = vmax.f32 %v1128, -5.0
  %v1161 = vmax.f32 %v1131, -5.0
  %v1162 = vmax.f32 %v1136, -5.0
  %v1163 = vmax.f32 %v1139, -5.0
  %v1164 = vmax.f32 %v1144, -5.0
  %v1165 = vmax.f32 %v1147, -5.0
  %v1166 = vmin.f32 %v1150, 5.0
  %v1167 = vmin.f32 %v1151, 5.0
  %v1168 = vmin.f32 %v1152, 5.0
  %v1169 = vmin.f32 %v1153, 5.0
  %v1170 = vmin.f32 %v1154, 5.0
  %v1171 = vmin.f32 %v1155, 5.0
  %v1172 = vmin.f32 %v1156, 5.0
  %v1173 = vmin.f32 %v1157, 5.0
  %v1174 = vmin.f32 %v1158, 5.0
  %v1175 = vmin.f32 %v1159, 5.0
  %v1176 = vmin.f32 %v1160, 5.0
  %v1177 = vmin.f32 %v1161, 5.0
  %v1178 = vmin.f32 %v1162, 5.0
  %v1179 = vmin.f32 %v1163, 5.0
  %v1180 = vmin.f32 %v1164, 5.0
  %v1181 = vmin.f32 %v1165, 5.0
  %1182 = vadd.xlane.f32.xlu0 %v1166
  %v1183 = vpop.xlane.xlu0 %1182
  %1184 = vadd.xlane.f32.xlu0 %v1167
  %v1185 = vpop.xlane.xlu0 %1184
  %1186 = vadd.xlane.f32.xlu0 %v1168
  %v1187 = vpop.xlane.xlu0 %1186
  %1188 = vadd.xlane.f32.xlu0 %v1169
  %v1189 = vpop.xlane.xlu0 %1188
  %1190 = vadd.xlane.f32.xlu0 %v1170
  %v1191 = vpop.xlane.xlu0 %1190
  %1192 = vadd.xlane.f32.xlu0 %v1171
  %v1193 = vpop.xlane.xlu0 %1192
  %1194 = vadd.xlane.f32.xlu0 %v1172
  %v1195 = vpop.xlane.xlu0 %1194
  %1196 = vadd.xlane.f32.xlu0 %v1173
  %v1197 = vpop.xlane.xlu0 %1196
  %1198 = vadd.xlane.f32.xlu0 %v1174
  %v1199 = vpop.xlane.xlu0 %1198
  %1200 = vadd.xlane.f32.xlu0 %v1175
  %v1201 = vpop.xlane.xlu0 %1200
  %1202 = vadd.xlane.f32.xlu0 %v1176
  %v1203 = vpop.xlane.xlu0 %1202
  %1204 = vadd.xlane.f32.xlu0 %v1177
  %v1205 = vpop.xlane.xlu0 %1204
  %1206 = vadd.xlane.f32.xlu0 %v1178
  %v1207 = vpop.xlane.xlu0 %1206
  %1208 = vadd.xlane.f32.xlu0 %v1179
  %v1209 = vpop.xlane.xlu0 %1208
  %1210 = vadd.xlane.f32.xlu0 %v1180
  %v1211 = vpop.xlane.xlu0 %1210
  %1212 = vadd.xlane.f32.xlu0 %v1181
  %v1213 = vpop.xlane.xlu0 %1212
  %v1214 = vmul.f32 %v1183, 0.041666668
  %v1215 = vmul.f32 %v1185, 0.041666668
  %v1216 = vmul.f32 %v1187, 0.041666668
  %v1217 = vmul.f32 %v1189, 0.041666668
  %v1218 = vmul.f32 %v1191, 0.041666668
  %v1219 = vmul.f32 %v1193, 0.041666668
  %v1220 = vmul.f32 %v1195, 0.041666668
  %v1221 = vmul.f32 %v1197, 0.041666668
  %v1222 = vmul.f32 %v1199, 0.041666668
  %v1223 = vmul.f32 %v1201, 0.041666668
  %v1224 = vmul.f32 %v1203, 0.041666668
  %v1225 = vmul.f32 %v1205, 0.041666668
  %v1226 = vmul.f32 %v1207, 0.041666668
  %v1227 = vmul.f32 %v1209, 0.041666668
  %v1228 = vmul.f32 %v1211, 0.041666668
  %v1229 = vmul.f32 %v1213, 0.041666668
  %v1230 = vmul.f32 %v1166, %v1166
  %v1231 = vmul.f32 %v1167, %v1167
  %v1232 = vmul.f32 %v1168, %v1168
  %v1233 = vmul.f32 %v1169, %v1169
  %v1234 = vmul.f32 %v1170, %v1170
  %v1235 = vmul.f32 %v1171, %v1171
  %v1236 = vmul.f32 %v1172, %v1172
  %v1237 = vmul.f32 %v1173, %v1173
  %v1238 = vmul.f32 %v1174, %v1174
  %v1239 = vmul.f32 %v1175, %v1175
  %v1240 = vmul.f32 %v1176, %v1176
  %v1241 = vmul.f32 %v1177, %v1177
  %v1242 = vmul.f32 %v1178, %v1178
  %v1243 = vmul.f32 %v1179, %v1179
  %v1244 = vmul.f32 %v1180, %v1180
  %v1245 = vmul.f32 %v1181, %v1181
  %1246 = vadd.xlane.f32.xlu0 %v1230
  %v1247 = vpop.xlane.xlu0 %1246
  %1248 = vadd.xlane.f32.xlu0 %v1231
  %v1249 = vpop.xlane.xlu0 %1248
  %1250 = vadd.xlane.f32.xlu0 %v1232
  %v1251 = vpop.xlane.xlu0 %1250
  %1252 = vadd.xlane.f32.xlu0 %v1233
  %v1253 = vpop.xlane.xlu0 %1252
  %1254 = vadd.xlane.f32.xlu0 %v1234
  %v1255 = vpop.xlane.xlu0 %1254
  %1256 = vadd.xlane.f32.xlu0 %v1235
  %v1257 = vpop.xlane.xlu0 %1256
  %1258 = vadd.xlane.f32.xlu0 %v1236
  %v1259 = vpop.xlane.xlu0 %1258
  %1260 = vadd.xlane.f32.xlu0 %v1237
  %v1261 = vpop.xlane.xlu0 %1260
  %1262 = vadd.xlane.f32.xlu0 %v1238
  %v1263 = vpop.xlane.xlu0 %1262
  %1264 = vadd.xlane.f32.xlu0 %v1239
  %v1265 = vpop.xlane.xlu0 %1264
  %1266 = vadd.xlane.f32.xlu0 %v1240
  %v1267 = vpop.xlane.xlu0 %1266
  %1268 = vadd.xlane.f32.xlu0 %v1241
  %v1269 = vpop.xlane.xlu0 %1268
  %1270 = vadd.xlane.f32.xlu0 %v1242
  %v1271 = vpop.xlane.xlu0 %1270
  %1272 = vadd.xlane.f32.xlu0 %v1243
  %v1273 = vpop.xlane.xlu0 %1272
  %1274 = vadd.xlane.f32.xlu0 %v1244
  %v1275 = vpop.xlane.xlu0 %1274
  %1276 = vadd.xlane.f32.xlu0 %v1245
  %v1277 = vpop.xlane.xlu0 %1276
  %v1278 = vmul.f32 %v1247, 0.041666668
  %v1279 = vmul.f32 %v1249, 0.041666668
  %v1280 = vmul.f32 %v1251, 0.041666668
  %v1281 = vmul.f32 %v1253, 0.041666668
  %v1282 = vmul.f32 %v1255, 0.041666668
  %v1283 = vmul.f32 %v1257, 0.041666668
  %v1284 = vmul.f32 %v1259, 0.041666668
  %v1285 = vmul.f32 %v1261, 0.041666668
  %v1286 = vmul.f32 %v1263, 0.041666668
  %v1287 = vmul.f32 %v1265, 0.041666668
  %v1288 = vmul.f32 %v1267, 0.041666668
  %v1289 = vmul.f32 %v1269, 0.041666668
  %v1290 = vmul.f32 %v1271, 0.041666668
  %v1291 = vmul.f32 %v1273, 0.041666668
  %v1292 = vmul.f32 %v1275, 0.041666668
  %v1293 = vmul.f32 %v1277, 0.041666668
  %v1294 = vmul.f32 %v1214, %v1214
  %v1295 = vmul.f32 %v1215, %v1215
  %v1296 = vmul.f32 %v1216, %v1216
  %v1297 = vmul.f32 %v1217, %v1217
  %v1298 = vmul.f32 %v1218, %v1218
  %v1299 = vmul.f32 %v1219, %v1219
  %v1300 = vmul.f32 %v1220, %v1220
  %v1301 = vmul.f32 %v1221, %v1221
  %v1302 = vmul.f32 %v1222, %v1222
  %v1303 = vmul.f32 %v1223, %v1223
  %v1304 = vmul.f32 %v1224, %v1224
  %v1305 = vmul.f32 %v1225, %v1225
  %v1306 = vmul.f32 %v1226, %v1226
  %v1307 = vmul.f32 %v1227, %v1227
  %v1308 = vmul.f32 %v1228, %v1228
  %v1309 = vmul.f32 %v1229, %v1229
  %v1310 = vsub.f32 %v1278, %v1294
  %v1311 = vsub.f32 %v1279, %v1295
  %v1312 = vsub.f32 %v1280, %v1296
  %v1313 = vsub.f32 %v1281, %v1297
  %v1314 = vsub.f32 %v1282, %v1298
  %v1315 = vsub.f32 %v1283, %v1299
  %v1316 = vsub.f32 %v1284, %v1300
  %v1317 = vsub.f32 %v1285, %v1301
  %v1318 = vsub.f32 %v1286, %v1302
  %v1319 = vsub.f32 %v1287, %v1303
  %v1320 = vsub.f32 %v1288, %v1304
  %v1321 = vsub.f32 %v1289, %v1305
  %v1322 = vsub.f32 %v1290, %v1306
  %v1323 = vsub.f32 %v1291, %v1307
  %v1324 = vsub.f32 %v1292, %v1308
  %v1325 = vsub.f32 %v1293, %v1309
  %v1326 = vld [vmem:[%s4] sm:$0x1]
  %v1327 = vsub.f32 %v1166, %v1214
  %v1328 = vsub.f32 %v1167, %v1215
  %v1329 = vsub.f32 %v1168, %v1216
  %v1330 = vsub.f32 %v1169, %v1217
  %v1331 = vsub.f32 %v1170, %v1218
  %v1332 = vsub.f32 %v1171, %v1219
  %v1333 = vsub.f32 %v1172, %v1220
  %v1334 = vsub.f32 %v1173, %v1221
  %v1335 = vsub.f32 %v1174, %v1222
  %v1336 = vsub.f32 %v1175, %v1223
  %v1337 = vsub.f32 %v1176, %v1224
  %v1338 = vsub.f32 %v1177, %v1225
  %v1339 = vsub.f32 %v1178, %v1226
  %v1340 = vsub.f32 %v1179, %v1227
  %v1341 = vsub.f32 %v1180, %v1228
  %v1342 = vsub.f32 %v1181, %v1229
  %v1344 = vlaneseq
  %v1345 = vshrl.u32 %v1344, 7
  %v1346 = vsub.s32 0, %v1345
  %v1347 = vrot.slane %v1326, %v1346
  %v1349 = vmul.f32 %v1347, %v1327
  %v1350 = vmul.f32 %v1347, %v1328
  %v1351 = vmul.f32 %v1347, %v1329
  %v1352 = vmul.f32 %v1347, %v1330
  %v1353 = vmul.f32 %v1347, %v1331
  %v1354 = vmul.f32 %v1347, %v1332
  %v1355 = vmul.f32 %v1347, %v1333
  %v1356 = vmul.f32 %v1347, %v1334
  %v1357 = vmul.f32 %v1347, %v1335
  %v1358 = vmul.f32 %v1347, %v1336
  %v1359 = vmul.f32 %v1347, %v1337
  %v1360 = vmul.f32 %v1347, %v1338
  %v1361 = vmul.f32 %v1347, %v1339
  %v1362 = vmul.f32 %v1347, %v1340
  %v1363 = vmul.f32 %v1347, %v1341
  %v1364 = vmul.f32 %v1347, %v1342
  %v1365 = vadd.f32 %v1310, 1e-05
  %v1366 = vadd.f32 %v1311, 1e-05
  %v1367 = vadd.f32 %v1312, 1e-05
  %v1368 = vadd.f32 %v1313, 1e-05
  %v1369 = vadd.f32 %v1314, 1e-05
  %v1370 = vadd.f32 %v1315, 1e-05
  %v1371 = vadd.f32 %v1316, 1e-05
  %v1372 = vadd.f32 %v1317, 1e-05
  %v1373 = vadd.f32 %v1318, 1e-05
  %v1374 = vadd.f32 %v1319, 1e-05
  %v1375 = vadd.f32 %v1320, 1e-05
  %v1376 = vadd.f32 %v1321, 1e-05
  %v1377 = vadd.f32 %v1322, 1e-05
  %v1378 = vadd.f32 %v1323, 1e-05
  %v1379 = vadd.f32 %v1324, 1e-05
  %v1380 = vadd.f32 %v1325, 1e-05
  %v1381 = vrsqrt.pop %v1365
  %v1382 = vrsqrt.pop %v1366
  %v1383 = vrsqrt.pop %v1367
  %v1384 = vrsqrt.pop %v1368
  %v1385 = vrsqrt.pop %v1369
  %v1386 = vrsqrt.pop %v1370
  %v1387 = vrsqrt.pop %v1371
  %v1388 = vrsqrt.pop %v1372
  %v1389 = vrsqrt.pop %v1373
  %v1390 = vrsqrt.pop %v1374
  %v1391 = vrsqrt.pop %v1375
  %v1392 = vrsqrt.pop %v1376
  %v1393 = vrsqrt.pop %v1377
  %v1394 = vrsqrt.pop %v1378
  %v1395 = vrsqrt.pop %v1379
  %v1396 = vrsqrt.pop %v1380
  %v1397 = vmul.f32 %v1349, %v1381
  %v1398 = vmul.f32 %v1350, %v1382
  %v1399 = vmul.f32 %v1351, %v1383
  %v1400 = vmul.f32 %v1352, %v1384
  %v1401 = vmul.f32 %v1353, %v1385
  %v1402 = vmul.f32 %v1354, %v1386
  %v1403 = vmul.f32 %v1355, %v1387
  %v1404 = vmul.f32 %v1356, %v1388
  %v1405 = vmul.f32 %v1357, %v1389
  %v1406 = vmul.f32 %v1358, %v1390
  %v1407 = vmul.f32 %v1359, %v1391
  %v1408 = vmul.f32 %v1360, %v1392
  %v1409 = vmul.f32 %v1361, %v1393
  %v1410 = vmul.f32 %v1362, %v1394
  %v1411 = vmul.f32 %v1363, %v1395
  %v1412 = vmul.f32 %v1364, %v1396
  %v1413 = vld [vmem:[%s5] sm:$0x1]
  %v1415 = vlaneseq
  %v1416 = vshrl.u32 %v1415, 7
  %v1417 = vsub.s32 0, %v1416
  %v1418 = vrot.slane %v1413, %v1417
  %v1420 = vadd.f32 %v1397, %v1418
  %v1421 = vadd.f32 %v1398, %v1418
  %v1422 = vadd.f32 %v1399, %v1418
  %v1423 = vadd.f32 %v1400, %v1418
  %v1424 = vadd.f32 %v1401, %v1418
  %v1425 = vadd.f32 %v1402, %v1418
  %v1426 = vadd.f32 %v1403, %v1418
  %v1427 = vadd.f32 %v1404, %v1418
  %v1428 = vadd.f32 %v1405, %v1418
  %v1429 = vadd.f32 %v1406, %v1418
  %v1430 = vadd.f32 %v1407, %v1418
  %v1431 = vadd.f32 %v1408, %v1418
  %v1432 = vadd.f32 %v1409, %v1418
  %v1433 = vadd.f32 %v1410, %v1418
  %v1434 = vadd.f32 %v1411, %v1418
  %v1435 = vadd.f32 %v1412, %v1418
  %1436 = vst [vmem:[%s6] sm:$0xff] %v1420
  %1437 = vst [vmem:[%s6 + $0x8] sm:$0xff] %v1421
  %1438 = vst [vmem:[%s6 + $0x10] sm:$0xff] %v1422
  %1439 = vst [vmem:[%s6 + $0x18] sm:$0xff] %v1423
  %1440 = vst [vmem:[%s6 + $0x20] sm:$0xff] %v1424
  %1441 = vst [vmem:[%s6 + $0x28] sm:$0xff] %v1425
  %1442 = vst [vmem:[%s6 + $0x30] sm:$0xff] %v1426
  %1443 = vst [vmem:[%s6 + $0x38] sm:$0xff] %v1427
  %1444 = vst [vmem:[%s6 + $0x40] sm:$0xff] %v1428
  %1445 = vst [vmem:[%s6 + $0x48] sm:$0xff] %v1429
  %1446 = vst [vmem:[%s6 + $0x50] sm:$0xff] %v1430
  %1447 = vst [vmem:[%s6 + $0x58] sm:$0xff] %v1431
  %1448 = vst [vmem:[%s6 + $0x60] sm:$0xff] %v1432
  %1449 = vst [vmem:[%s6 + $0x68] sm:$0xff] %v1433
  %1450 = vst [vmem:[%s6 + $0x70] sm:$0xff] %v1434
  %1451 = vst [vmem:[%s6 + $0x78] sm:$0xff] %v1435
  // Predicated region
  $region34: #{qrnn_projection_forward.5} parent=0 // pred_check
    _
  $region35: #{qrnn_projection_forward.5} parent=0 // pred_check_branch
    %1453 = sbr.rel (0) target = $region37
  $region36: #{qrnn_projection_forward.5} parent=0 // pred_region
    _
  $region37: #{qrnn_projection_forward.5} parent=0 // pred_fallthru
    _
  // Predicated region
  $region38: #{qrnn_projection_forward.5} parent=0 // pred_check
    _
  $region39: #{qrnn_projection_forward.5} parent=0 // pred_check_branch
    %1455 = sbr.rel (0) target = $region41
  $region40: #{qrnn_projection_forward.5} parent=0 // pred_region
    _
  $region41: #{qrnn_projection_forward.5} parent=0 // pred_fallthru
    _
  // Predicated region
  $region42: #{qrnn_projection_forward.5} parent=0 // pred_check
    _
  $region43: #{qrnn_projection_forward.5} parent=0 // pred_check_branch
    %1457 = sbr.rel (0) target = $region45
  $region44: #{qrnn_projection_forward.5} parent=0 // pred_region
    _
  $region45: #{qrnn_projection_forward.5} parent=0 // pred_fallthru
    _
  // Predicated region
  $region46: #{qrnn_projection_forward.5} parent=0 // pred_check
    _
  $region47: #{qrnn_projection_forward.5} parent=0 // pred_check_branch
    %1459 = sbr.rel (0) target = $region49
  $region48: #{qrnn_projection_forward.5} parent=0 // pred_region
    _
  $region49: #{qrnn_projection_forward.5} parent=0 // pred_fallthru
    _

// kernel: qrnn_projection_forward.4
$region0: #{qrnn_projection_forward.4}
  #allocation0 [shape = 'u32[]', space=smem, size = 0x4, offset = 0x4, fixed_abs, tag = 'smem constant byte address 0x4 - core index']
  #allocation1 [shape = 'u32[144,128]{1,0:T(1,128)}', space=vmem, size = 0x12000, scoped, tag = 'internal scratch']
  #allocation2 [shape = 'f32[4,128]{1,0:T(4,128)}', space=vmem, size = 0x800, scoped, tag = 'scratch operand']
  #allocation3 [shape = 'f32[128,128]{1,0:T(8,128)}', space=vmem, size = 0x10000, scoped, tag = 'scratch operand']
  %s0 = inlined_call_operand.vmem [shape: bf16[128,128], index: 0, kind: input, shape index: {}]
  %s1 = inlined_call_operand.vmem [shape: bf16[128,384], index: 1, kind: input, shape index: {}]
  %s2 = inlined_call_operand.vmem [shape: f32[1,384], index: 2, kind: input, shape index: {}]
  %s3 = inlined_call_operand.vmem [shape: bf16[128,128], index: 3, kind: input, shape index: {}]
  %s4 = inlined_call_operand.vmem [shape: f32[1,128], index: 4, kind: input, shape index: {}]
  %s5 = inlined_call_operand.vmem [shape: f32[1,128], index: 5, kind: input, shape index: {}]
  %s6 = inlined_call_operand.vmem [shape: bf16[128,128], index: 6, kind: output, shape index: {0}]
  %s7 = inlined_call_operand.vmem [shape: f32[4,128], index: 7, kind: output, shape index: {1}]
  %8 = xla_tuple %s6, %s7
  %s9 = sld [smem:[#allocation0]]
  $region50: #{qrnn_projection_forward.4} parent=0
    _
  %s11 = ssub.s32 1, %s9
  %s12 = scalar_select 0, %s11, %s9
  // Predicated region
  $region2: #{qrnn_projection_forward.4} parent=0 // pred_check
    _
  $region3: #{qrnn_projection_forward.4} parent=0 // pred_check_branch
    %14 = sbr.rel (0) target = $region5
  $region4: #{qrnn_projection_forward.4} parent=0 // pred_region
    _
  $region5: #{qrnn_projection_forward.4} parent=0 // pred_fallthru
    _
  // Predicated region
  $region6: #{qrnn_projection_forward.4} parent=0 // pred_check
    _
  $region7: #{qrnn_projection_forward.4} parent=0 // pred_check_branch
    %16 = sbr.rel (0) target = $region9
  $region8: #{qrnn_projection_forward.4} parent=0 // pred_region
    _
  $region9: #{qrnn_projection_forward.4} parent=0 // pred_fallthru
    _
  // Predicated region
  $region10: #{qrnn_projection_forward.4} parent=0 // pred_check
    _
  $region11: #{qrnn_projection_forward.4} parent=0 // pred_check_branch
    %18 = sbr.rel (0) target = $region13
  $region12: #{qrnn_projection_forward.4} parent=0 // pred_region
    _
  $region13: #{qrnn_projection_forward.4} parent=0 // pred_fallthru
    _
  // Predicated region
  $region14: #{qrnn_projection_forward.4} parent=0 // pred_check
    _
  $region15: #{qrnn_projection_forward.4} parent=0 // pred_check_branch
    %20 = sbr.rel (0) target = $region17
  $region16: #{qrnn_projection_forward.4} parent=0 // pred_region
    _
  $region17: #{qrnn_projection_forward.4} parent=0 // pred_fallthru
    _
  // Predicated region
  $region18: #{qrnn_projection_forward.4} parent=0 // pred_check
    _
  $region19: #{qrnn_projection_forward.4} parent=0 // pred_check_branch
    %22 = sbr.rel (0) target = $region21
  $region20: #{qrnn_projection_forward.4} parent=0 // pred_region
    _
  $region21: #{qrnn_projection_forward.4} parent=0 // pred_fallthru
    _
  // Predicated region
  $region22: #{qrnn_projection_forward.4} parent=0 // pred_check
    _
  $region23: #{qrnn_projection_forward.4} parent=0 // pred_check_branch
    %24 = sbr.rel (0) target = $region25
  $region24: #{qrnn_projection_forward.4} parent=0 // pred_region
    _
  $region25: #{qrnn_projection_forward.4} parent=0 // pred_fallthru
    _
  %p26 = scmp.eq.s32.totalorder 0, 0
  // Predicated region
  $region26: #{qrnn_projection_forward.4} parent=0 // pred_check
    %p27 = pneg %p26
  $region27: #{qrnn_projection_forward.4} parent=0 // pred_check_branch
    %29 = sbr.rel (%p27) target = $region29
  $region28: #{qrnn_projection_forward.4} parent=0 // pred_region
    %30 = vst [vmem:[#allocation2] sm:$0xf] 0.0
  $region29: #{qrnn_projection_forward.4} parent=0 // pred_fallthru
    _
  %v31 = vld [vmem:[%s0] sm:$0xf]
  %v32 = vld [vmem:[%s0 + $0x4] sm:$0xf]
  %v33 = vld [vmem:[%s0 + $0x8] sm:$0xf]
  %v34 = vld [vmem:[%s0 + $0xc] sm:$0xf]
  %v35 = vld [vmem:[%s0 + $0x10] sm:$0xf]
  %v36 = vld [vmem:[%s0 + $0x14] sm:$0xf]
  %v37 = vld [vmem:[%s0 + $0x18] sm:$0xf]
  %v38 = vld [vmem:[%s0 + $0x1c] sm:$0xf]
  %v39 = vld [vmem:[%s0 + $0x20] sm:$0xf]
  %v40 = vld [vmem:[%s0 + $0x24] sm:$0xf]
  %v41 = vld [vmem:[%s0 + $0x28] sm:$0xf]
  %v42 = vld [vmem:[%s0 + $0x2c] sm:$0xf]
  %v43 = vld [vmem:[%s0 + $0x30] sm:$0xf]
  %v44 = vld [vmem:[%s0 + $0x34] sm:$0xf]
  %v45 = vld [vmem:[%s0 + $0x38] sm:$0xf]
  %v46 = vld [vmem:[%s0 + $0x3c] sm:$0xf]
  %v47 = vld [vmem:[%s1] sm:$0xff]
  %v48 = vld [vmem:[%s1 + $0x8] sm:$0xf]
  %v49 = vld [vmem:[%s1 + $0xc] sm:$0xff]
  %v50 = vld [vmem:[%s1 + $0x14] sm:$0xf]
  %v51 = vld [vmem:[%s1 + $0x18] sm:$0xff]
  %v52 = vld [vmem:[%s1 + $0x20] sm:$0xf]
  %v53 = vld [vmem:[%s1 + $0x24] sm:$0xff]
  %v54 = vld [vmem:[%s1 + $0x2c] sm:$0xf]
  %v55 = vld [vmem:[%s1 + $0x30] sm:$0xff]
  %v56 = vld [vmem:[%s1 + $0x38] sm:$0xf]
  %v57 = vld [vmem:[%s1 + $0x3c] sm:$0xff]
  %v58 = vld [vmem:[%s1 + $0x44] sm:$0xf]
  %v59 = vld [vmem:[%s1 + $0x48] sm:$0xff]
  %v60 = vld [vmem:[%s1 + $0x50] sm:$0xf]
  %v61 = vld [vmem:[%s1 + $0x54] sm:$0xff]
  %v62 = vld [vmem:[%s1 + $0x5c] sm:$0xf]
  %v63 = vld [vmem:[%s1 + $0x60] sm:$0xff]
  %v64 = vld [vmem:[%s1 + $0x68] sm:$0xf]
  %v65 = vld [vmem:[%s1 + $0x6c] sm:$0xff]
  %v66 = vld [vmem:[%s1 + $0x74] sm:$0xf]
  %v67 = vld [vmem:[%s1 + $0x78] sm:$0xff]
  %v68 = vld [vmem:[%s1 + $0x80] sm:$0xf]
  %v69 = vld [vmem:[%s1 + $0x84] sm:$0xff]
  %v70 = vld [vmem:[%s1 + $0x8c] sm:$0xf]
  %v71 = vld [vmem:[%s1 + $0x90] sm:$0xff]
  %v72 = vld [vmem:[%s1 + $0x98] sm:$0xf]
  %v73 = vld [vmem:[%s1 + $0x9c] sm:$0xff]
  %v74 = vld [vmem:[%s1 + $0xa4] sm:$0xf]
  %v75 = vld [vmem:[%s1 + $0xa8] sm:$0xff]
  %v76 = vld [vmem:[%s1 + $0xb0] sm:$0xf]
  %v77 = vld [vmem:[%s1 + $0xb4] sm:$0xff]
  %v78 = vld [vmem:[%s1 + $0xbc] sm:$0xf]
  %v79 = vld [vmem:[%s2] sm:$0x7]
  %v81 = vlaneseq
  %v82 = vshrl.u32 %v81, 7
  %v83 = vsub.s32 0, %v82
  %v84 = vrot.slane %v79, %v83
  %v85 = vlaneseq
  %v86 = vshrl.u32 %v85, 7
  %v87 = vsub.s32 1, %v86
  %v88 = vrot.slane %v79, %v87
  %v89 = vlaneseq
  %v90 = vshrl.u32 %v89, 7
  %v91 = vsub.s32 2, %v90
  %v92 = vrot.slane %v79, %v91
  %v112 = vunpack.c.l.b16 %v31
  %v113 = vunpack.c.l.b16 %v32
  %v114 = vunpack.c.l.b16 %v33
  %v115 = vunpack.c.l.b16 %v34
  %v116 = vunpack.c.l.b16 %v35
  %v117 = vunpack.c.l.b16 %v36
  %v118 = vunpack.c.l.b16 %v37
  %v119 = vunpack.c.l.b16 %v38
  %v120 = vunpack.c.l.b16 %v39
  %v121 = vunpack.c.l.b16 %v40
  %v122 = vunpack.c.l.b16 %v41
  %v123 = vunpack.c.l.b16 %v42
  %v124 = vunpack.c.l.b16 %v43
  %v125 = vunpack.c.l.b16 %v44
  %v126 = vunpack.c.l.b16 %v45
  %v127 = vunpack.c.l.b16 %v46
  %v128 = vpack.c.b16 %v113, %v112
  %v129 = vpack.c.b16 %v115, %v114
  %v130 = vpack.c.b16 %v117, %v116
  %v131 = vpack.c.b16 %v119, %v118
  %v132 = vpack.c.b16 %v121, %v120
  %v133 = vpack.c.b16 %v123, %v122
  %v134 = vpack.c.b16 %v125, %v124
  %v135 = vpack.c.b16 %v127, %v126
  %v176 = vunpack.c.l.b16 %v47
  %v177 = vunpack.c.h.b16 %v47
  %v178 = vunpack.c.l.b16 %v48
  %v179 = vunpack.c.l.b16 %v49
  %v180 = vunpack.c.h.b16 %v49
  %v181 = vunpack.c.l.b16 %v50
  %v182 = vunpack.c.l.b16 %v51
  %v183 = vunpack.c.h.b16 %v51
  %v184 = vunpack.c.l.b16 %v52
  %v185 = vunpack.c.l.b16 %v53
  %v186 = vunpack.c.h.b16 %v53
  %v187 = vunpack.c.l.b16 %v54
  %v188 = vunpack.c.l.b16 %v55
  %v189 = vunpack.c.h.b16 %v55
  %v190 = vunpack.c.l.b16 %v56
  %v191 = vunpack.c.l.b16 %v57
  %v192 = vunpack.c.h.b16 %v57
  %v193 = vunpack.c.l.b16 %v58
  %v194 = vunpack.c.l.b16 %v59
  %v195 = vunpack.c.h.b16 %v59
  %v196 = vunpack.c.l.b16 %v60
  %v197 = vunpack.c.l.b16 %v61
  %v198 = vunpack.c.h.b16 %v61
  %v199 = vunpack.c.l.b16 %v62
  %v200 = vunpack.c.l.b16 %v63
  %v201 = vunpack.c.h.b16 %v63
  %v202 = vunpack.c.l.b16 %v64
  %v203 = vunpack.c.l.b16 %v65
  %v204 = vunpack.c.h.b16 %v65
  %v205 = vunpack.c.l.b16 %v66
  %v206 = vunpack.c.l.b16 %v67
  %v207 = vunpack.c.h.b16 %v67
  %v208 = vunpack.c.l.b16 %v68
  %v209 = vunpack.c.l.b16 %v69
  %v210 = vunpack.c.h.b16 %v69
  %v211 = vunpack.c.l.b16 %v70
  %v212 = vunpack.c.l.b16 %v71
  %v213 = vunpack.c.h.b16 %v71
  %v214 = vunpack.c.l.b16 %v72
  %v215 = vunpack.c.l.b16 %v73
  %v216 = vunpack.c.h.b16 %v73
  %v217 = vunpack.c.l.b16 %v74
  %v218 = vunpack.c.l.b16 %v75
  %v219 = vunpack.c.h.b16 %v75
  %v220 = vunpack.c.l.b16 %v76
  %v221 = vunpack.c.l.b16 %v77
  %v222 = vunpack.c.h.b16 %v77
  %v223 = vunpack.c.l.b16 %v78
  %v224 = vpack.c.b16 %v179, %v176
  %v225 = vpack.c.b16 %v180, %v177
  %v226 = vpack.c.b16 %v181, %v178
  %v227 = vpack.c.b16 %v185, %v182
  %v228 = vpack.c.b16 %v186, %v183
  %v229 = vpack.c.b16 %v187, %v184
  %v230 = vpack.c.b16 %v191, %v188
  %v231 = vpack.c.b16 %v192, %v189
  %v232 = vpack.c.b16 %v193, %v190
  %v233 = vpack.c.b16 %v197, %v194
  %v234 = vpack.c.b16 %v198, %v195
  %v235 = vpack.c.b16 %v199, %v196
  %v236 = vpack.c.b16 %v203, %v200
  %v237 = vpack.c.b16 %v204, %v201
  %v238 = vpack.c.b16 %v205, %v202
  %v239 = vpack.c.b16 %v209, %v206
  %v240 = vpack.c.b16 %v210, %v207
  %v241 = vpack.c.b16 %v211, %v208
  %v242 = vpack.c.b16 %v215, %v212
  %v243 = vpack.c.b16 %v216, %v213
  %v244 = vpack.c.b16 %v217, %v214
  %v245 = vpack.c.b16 %v221, %v218
  %v246 = vpack.c.b16 %v222, %v219
  %v247 = vpack.c.b16 %v223, %v220
  %272 = vmatprep.subr.bf16.mxu0 %v225
  %273 = vmatpush1.bf16.msra.mxu0 %v224
  %274 = vmatprep.subr.bf16.mxu0 %v228
  %275 = vmatpush1.bf16.msra.mxu0 %v227
  %276 = vmatprep.subr.bf16.mxu0 %v231
  %277 = vmatpush1.bf16.msra.mxu0 %v230
  %278 = vmatprep.subr.bf16.mxu0 %v234
  %279 = vmatpush1.bf16.msra.mxu0 %v233
  %280 = vmatprep.subr.bf16.mxu0 %v237
  %281 = vmatpush1.bf16.msra.mxu0 %v236
  %282 = vmatprep.subr.bf16.mxu0 %v240
  %283 = vmatpush1.bf16.msra.mxu0 %v239
  %284 = vmatprep.subr.bf16.mxu0 %v243
  %285 = vmatpush1.bf16.msra.mxu0 %v242
  %286 = vmatprep.subr.bf16.mxu0 %v246
  %287 = vmatpush1.bf16.msra.mxu0 %v245
  %288 = vmatprep.subr.bf16.mxu0 0
  %289 = vmatpush1.bf16.msra.mxu0 0
  %290 = vmatprep.subr.bf16.mxu0 0
  %291 = vmatpush1.bf16.msra.mxu0 0
  %292 = vmatprep.subr.bf16.mxu0 0
  %293 = vmatpush1.bf16.msra.mxu0 0
  %294 = vmatprep.subr.bf16.mxu0 0
  %295 = vmatpush1.bf16.msra.mxu0 0
  %296 = vmatprep.subr.bf16.mxu0 0
  %297 = vmatpush1.bf16.msra.mxu0 0
  %298 = vmatprep.subr.bf16.mxu0 0
  %299 = vmatpush1.bf16.msra.mxu0 0
  %300 = vmatprep.subr.bf16.mxu0 0
  %301 = vmatpush1.bf16.msra.mxu0 0
  %302 = vmatprep.subr.bf16.mxu0 0
  %303 = vmatpush1.bf16.msra.mxu0 0
  %304 = vmatprep.mubr.bf16.mxu0 0
  %305 = vmatmul.mubr.bf16.gmra.mrb[0].mxu0 %v128
  %v306 = vpop.f32.mrb[0].mxu0
  %v307 = vadd.f32 %v84, %v306
  %v308 = vpop.f32.mrb[0].mxu0
  %v309 = vadd.f32 %v88, %v308
  %v310 = vpop.f32.mrb[0].mxu0
  %v311 = vadd.f32 %v84, %v310
  %v312 = vpop.f32.mrb[0].mxu0
  %v313 = vadd.f32 %v88, %v312
  %314 = vmatprep.mubr.bf16.mxu0 0
  %315 = vmatmul.mubr.bf16.gmra.mrb[0].mxu0 %v129
  %v316 = vpop.f32.mrb[0].mxu0
  %v317 = vadd.f32 %v84, %v316
  %v318 = vpop.f32.mrb[0].mxu0
  %v319 = vadd.f32 %v88, %v318
  %v320 = vpop.f32.mrb[0].mxu0
  %v321 = vadd.f32 %v84, %v320
  %v322 = vpop.f32.mrb[0].mxu0
  %v323 = vadd.f32 %v88, %v322
  %324 = vmatprep.mubr.bf16.mxu0 0
  %325 = vmatmul.mubr.bf16.gmra.mrb[0].mxu0 %v130
  %v326 = vpop.f32.mrb[0].mxu0
  %v327 = vadd.f32 %v84, %v326
  %v328 = vpop.f32.mrb[0].mxu0
  %v329 = vadd.f32 %v88, %v328
  %v330 = vpop.f32.mrb[0].mxu0
  %v331 = vadd.f32 %v84, %v330
  %v332 = vpop.f32.mrb[0].mxu0
  %v333 = vadd.f32 %v88, %v332
  %334 = vmatprep.mubr.bf16.mxu0 0
  %335 = vmatmul.mubr.bf16.gmra.mrb[0].mxu0 %v131
  %v336 = vpop.f32.mrb[0].mxu0
  %v337 = vadd.f32 %v84, %v336
  %v338 = vpop.f32.mrb[0].mxu0
  %v339 = vadd.f32 %v88, %v338
  %v340 = vpop.f32.mrb[0].mxu0
  %v341 = vadd.f32 %v84, %v340
  %v342 = vpop.f32.mrb[0].mxu0
  %v343 = vadd.f32 %v88, %v342
  %344 = vmatprep.mubr.bf16.mxu0 0
  %345 = vmatmul.mubr.bf16.gmra.mrb[0].mxu0 %v132
  %v346 = vpop.f32.mrb[0].mxu0
  %v347 = vadd.f32 %v84, %v346
  %v348 = vpop.f32.mrb[0].mxu0
  %v349 = vadd.f32 %v88, %v348
  %v350 = vpop.f32.mrb[0].mxu0
  %v351 = vadd.f32 %v84, %v350
  %v352 = vpop.f32.mrb[0].mxu0
  %v353 = vadd.f32 %v88, %v352
  %354 = vmatprep.mubr.bf16.mxu0 0
  %355 = vmatmul.mubr.bf16.gmra.mrb[0].mxu0 %v133
  %v356 = vpop.f32.mrb[0].mxu0
  %v357 = vadd.f32 %v84, %v356
  %v358 = vpop.f32.mrb[0].mxu0
  %v359 = vadd.f32 %v88, %v358
  %v360 = vpop.f32.mrb[0].mxu0
  %v361 = vadd.f32 %v84, %v360
  %v362 = vpop.f32.mrb[0].mxu0
  %v363 = vadd.f32 %v88, %v362
  %364 = vmatprep.mubr.bf16.mxu0 0
  %365 = vmatmul.mubr.bf16.gmra.mrb[0].mxu0 %v134
  %v366 = vpop.f32.mrb[0].mxu0
  %v367 = vadd.f32 %v84, %v366
  %v368 = vpop.f32.mrb[0].mxu0
  %v369 = vadd.f32 %v88, %v368
  %v370 = vpop.f32.mrb[0].mxu0
  %v371 = vadd.f32 %v84, %v370
  %v372 = vpop.f32.mrb[0].mxu0
  %v373 = vadd.f32 %v88, %v372
  %374 = vmatprep.mubr.bf16.mxu0 0
  %375 = vmatmul.mubr.bf16.gmra.mrb[0].mxu0 %v135
  %v376 = vpop.f32.mrb[0].mxu0
  %v377 = vadd.f32 %v84, %v376
  %v378 = vpop.f32.mrb[0].mxu0
  %v379 = vadd.f32 %v88, %v378
  %v380 = vpop.f32.mrb[0].mxu0
  %v381 = vadd.f32 %v84, %v380
  %v382 = vpop.f32.mrb[0].mxu0
  %v383 = vadd.f32 %v88, %v382
  %384 = vdwg.mxu0
  %385 = vmatprep.subr.bf16.mxu0 0
  %386 = vmatpush1.bf16.msra.mxu0 %v226
  %387 = vmatprep.subr.bf16.mxu0 0
  %388 = vmatpush1.bf16.msra.mxu0 %v229
  %389 = vmatprep.subr.bf16.mxu0 0
  %390 = vmatpush1.bf16.msra.mxu0 %v232
  %391 = vmatprep.subr.bf16.mxu0 0
  %392 = vmatpush1.bf16.msra.mxu0 %v235
  %393 = vmatprep.subr.bf16.mxu0 0
  %394 = vmatpush1.bf16.msra.mxu0 %v238
  %395 = vmatprep.subr.bf16.mxu0 0
  %396 = vmatpush1.bf16.msra.mxu0 %v241
  %397 = vmatprep.subr.bf16.mxu0 0
  %398 = vmatpush1.bf16.msra.mxu0 %v244
  %399 = vmatprep.subr.bf16.mxu0 0
  %400 = vmatpush1.bf16.msra.mxu0 %v247
  %401 = vmatprep.subr.bf16.mxu0 0
  %402 = vmatpush1.bf16.msra.mxu0 0
  %403 = vmatprep.subr.bf16.mxu0 0
  %404 = vmatpush1.bf16.msra.mxu0 0
  %405 = vmatprep.subr.bf16.mxu0 0
  %406 = vmatpush1.bf16.msra.mxu0 0
  %407 = vmatprep.subr.bf16.mxu0 0
  %408 = vmatpush1.bf16.msra.mxu0 0
  %409 = vmatprep.subr.bf16.mxu0 0
  %410 = vmatpush1.bf16.msra.mxu0 0
  %411 = vmatprep.subr.bf16.mxu0 0
  %412 = vmatpush1.bf16.msra.mxu0 0
  %413 = vmatprep.subr.bf16.mxu0 0
  %414 = vmatpush1.bf16.msra.mxu0 0
  %415 = vmatprep.subr.bf16.mxu0 0
  %416 = vmatpush1.bf16.msra.mxu0 0
  %417 = vmatprep.mubr.bf16.mxu0 0
  %418 = vmatmul.mubr.bf16.gmra.mrb[0].mxu0 %v128
  %v419 = vpop.f32.mrb[0].mxu0
  %v420 = vadd.f32 %v92, %v419
  %v421 = vpop.f32.mrb[0].mxu0
  %v422 = vpop.f32.mrb[0].mxu0
  %v423 = vadd.f32 %v92, %v422
  %v424 = vpop.f32.mrb[0].mxu0
  %425 = vmatprep.mubr.bf16.mxu0 0
  %426 = vmatmul.mubr.bf16.gmra.mrb[0].mxu0 %v129
  %v427 = vpop.f32.mrb[0].mxu0
  %v428 = vadd.f32 %v92, %v427
  %v429 = vpop.f32.mrb[0].mxu0
  %v430 = vpop.f32.mrb[0].mxu0
  %v431 = vadd.f32 %v92, %v430
  %v432 = vpop.f32.mrb[0].mxu0
  %433 = vmatprep.mubr.bf16.mxu0 0
  %434 = vmatmul.mubr.bf16.gmra.mrb[0].mxu0 %v130
  %v435 = vpop.f32.mrb[0].mxu0
  %v436 = vadd.f32 %v92, %v435
  %v437 = vpop.f32.mrb[0].mxu0
  %v438 = vpop.f32.mrb[0].mxu0
  %v439 = vadd.f32 %v92, %v438
  %v440 = vpop.f32.mrb[0].mxu0
  %441 = vmatprep.mubr.bf16.mxu0 0
  %442 = vmatmul.mubr.bf16.gmra.mrb[0].mxu0 %v131
  %v443 = vpop.f32.mrb[0].mxu0
  %v444 = vadd.f32 %v92, %v443
  %v445 = vpop.f32.mrb[0].mxu0
  %v446 = vpop.f32.mrb[0].mxu0
  %v447 = vadd.f32 %v92, %v446
  %v448 = vpop.f32.mrb[0].mxu0
  %449 = vmatprep.mubr.bf16.mxu0 0
  %450 = vmatmul.mubr.bf16.gmra.mrb[0].mxu0 %v132
  %v451 = vpop.f32.mrb[0].mxu0
  %v452 = vadd.f32 %v92, %v451
  %v453 = vpop.f32.mrb[0].mxu0
  %v454 = vpop.f32.mrb[0].mxu0
  %v455 = vadd.f32 %v92, %v454
  %v456 = vpop.f32.mrb[0].mxu0
  %457 = vmatprep.mubr.bf16.mxu0 0
  %458 = vmatmul.mubr.bf16.gmra.mrb[0].mxu0 %v133
  %v459 = vpop.f32.mrb[0].mxu0
  %v460 = vadd.f32 %v92, %v459
  %v461 = vpop.f32.mrb[0].mxu0
  %v462 = vpop.f32.mrb[0].mxu0
  %v463 = vadd.f32 %v92, %v462
  %v464 = vpop.f32.mrb[0].mxu0
  %465 = vmatprep.mubr.bf16.mxu0 0
  %466 = vmatmul.mubr.bf16.gmra.mrb[0].mxu0 %v134
  %v467 = vpop.f32.mrb[0].mxu0
  %v468 = vadd.f32 %v92, %v467
  %v469 = vpop.f32.mrb[0].mxu0
  %v470 = vpop.f32.mrb[0].mxu0
  %v471 = vadd.f32 %v92, %v470
  %v472 = vpop.f32.mrb[0].mxu0
  %473 = vmatprep.mubr.bf16.mxu0 0
  %474 = vmatmul.mubr.bf16.gmra.mrb[0].mxu0 %v135
  %v475 = vpop.f32.mrb[0].mxu0
  %v476 = vadd.f32 %v92, %v475
  %v477 = vpop.f32.mrb[0].mxu0
  %v478 = vpop.f32.mrb[0].mxu0
  %v479 = vadd.f32 %v92, %v478
  %v480 = vpop.f32.mrb[0].mxu0
  %481 = vdwg.mxu0
  %v482 = vtanh.pop %v307
  %v483 = vtanh.pop %v311
  %v484 = vtanh.pop %v317
  %v485 = vtanh.pop %v321
  %v486 = vtanh.pop %v327
  %v487 = vtanh.pop %v331
  %v488 = vtanh.pop %v337
  %v489 = vtanh.pop %v341
  %v490 = vtanh.pop %v347
  %v491 = vtanh.pop %v351
  %v492 = vtanh.pop %v357
  %v493 = vtanh.pop %v361
  %v494 = vtanh.pop %v367
  %v495 = vtanh.pop %v371
  %v496 = vtanh.pop %v377
  %v497 = vtanh.pop %v381
  %v498 = vxor.u32 %v309, 2147483648
  %v499 = vxor.u32 %v313, 2147483648
  %v500 = vxor.u32 %v319, 2147483648
  %v501 = vxor.u32 %v323, 2147483648
  %v502 = vxor.u32 %v329, 2147483648
  %v503 = vxor.u32 %v333, 2147483648
  %v504 = vxor.u32 %v339, 2147483648
  %v505 = vxor.u32 %v343, 2147483648
  %v506 = vxor.u32 %v349, 2147483648
  %v507 = vxor.u32 %v353, 2147483648
  %v508 = vxor.u32 %v359, 2147483648
  %v509 = vxor.u32 %v363, 2147483648
  %v510 = vxor.u32 %v369, 2147483648
  %v511 = vxor.u32 %v373, 2147483648
  %v512 = vxor.u32 %v379, 2147483648
  %v513 = vxor.u32 %v383, 2147483648
  %v514 = vmul.f32 %v498, 1.442695
  %v515 = vpow.pop %v514
  %v516 = vmul.f32 %v499, 1.442695
  %v517 = vpow.pop %v516
  %v518 = vmul.f32 %v500, 1.442695
  %v519 = vpow.pop %v518
  %v520 = vmul.f32 %v501, 1.442695
  %v521 = vpow.pop %v520
  %v522 = vmul.f32 %v502, 1.442695
  %v523 = vpow.pop %v522
  %v524 = vmul.f32 %v503, 1.442695
  %v525 = vpow.pop %v524
  %v526 = vmul.f32 %v504, 1.442695
  %v527 = vpow.pop %v526
  %v528 = vmul.f32 %v505, 1.442695
  %v529 = vpow.pop %v528
  %v530 = vmul.f32 %v506, 1.442695
  %v531 = vpow.pop %v530
  %v532 = vmul.f32 %v507, 1.442695
  %v533 = vpow.pop %v532
  %v534 = vmul.f32 %v508, 1.442695
  %v535 = vpow.pop %v534
  %v536 = vmul.f32 %v509, 1.442695
  %v537 = vpow.pop %v536
  %v538 = vmul.f32 %v510, 1.442695
  %v539 = vpow.pop %v538
  %v540 = vmul.f32 %v511, 1.442695
  %v541 = vpow.pop %v540
  %v542 = vmul.f32 %v512, 1.442695
  %v543 = vpow.pop %v542
  %v544 = vmul.f32 %v513, 1.442695
  %v545 = vpow.pop %v544
  %v546 = vadd.f32 %v515, 1.0
  %v547 = vadd.f32 %v517, 1.0
  %v548 = vadd.f32 %v519, 1.0
  %v549 = vadd.f32 %v521, 1.0
  %v550 = vadd.f32 %v523, 1.0
  %v551 = vadd.f32 %v525, 1.0
  %v552 = vadd.f32 %v527, 1.0
  %v553 = vadd.f32 %v529, 1.0
  %v554 = vadd.f32 %v531, 1.0
  %v555 = vadd.f32 %v533, 1.0
  %v556 = vadd.f32 %v535, 1.0
  %v557 = vadd.f32 %v537, 1.0
  %v558 = vadd.f32 %v539, 1.0
  %v559 = vadd.f32 %v541, 1.0
  %v560 = vadd.f32 %v543, 1.0
  %v561 = vadd.f32 %v545, 1.0
  %v562 = vrcp.pop %v546
  %v563 = vmul.f32 1.0, %v562
  %v564 = vrcp.pop %v547
  %v565 = vmul.f32 1.0, %v564
  %v566 = vrcp.pop %v548
  %v567 = vmul.f32 1.0, %v566
  %v568 = vrcp.pop %v549
  %v569 = vmul.f32 1.0, %v568
  %v570 = vrcp.pop %v550
  %v571 = vmul.f32 1.0, %v570
  %v572 = vrcp.pop %v551
  %v573 = vmul.f32 1.0, %v572
  %v574 = vrcp.pop %v552
  %v575 = vmul.f32 1.0, %v574
  %v576 = vrcp.pop %v553
  %v577 = vmul.f32 1.0, %v576
  %v578 = vrcp.pop %v554
  %v579 = vmul.f32 1.0, %v578
  %v580 = vrcp.pop %v555
  %v581 = vmul.f32 1.0, %v580
  %v582 = vrcp.pop %v556
  %v583 = vmul.f32 1.0, %v582
  %v584 = vrcp.pop %v557
  %v585 = vmul.f32 1.0, %v584
  %v586 = vrcp.pop %v558
  %v587 = vmul.f32 1.0, %v586
  %v588 = vrcp.pop %v559
  %v589 = vmul.f32 1.0, %v588
  %v590 = vrcp.pop %v560
  %v591 = vmul.f32 1.0, %v590
  %v592 = vrcp.pop %v561
  %v593 = vmul.f32 1.0, %v592
  %v594 = vxor.u32 %v420, 2147483648
  %v595 = vxor.u32 %v423, 2147483648
  %v596 = vxor.u32 %v428, 2147483648
  %v597 = vxor.u32 %v431, 2147483648
  %v598 = vxor.u32 %v436, 2147483648
  %v599 = vxor.u32 %v439, 2147483648
  %v600 = vxor.u32 %v444, 2147483648
  %v601 = vxor.u32 %v447, 2147483648
  %v602 = vxor.u32 %v452, 2147483648
  %v603 = vxor.u32 %v455, 2147483648
  %v604 = vxor.u32 %v460, 2147483648
  %v605 = vxor.u32 %v463, 2147483648
  %v606 = vxor.u32 %v468, 2147483648
  %v607 = vxor.u32 %v471, 2147483648
  %v608 = vxor.u32 %v476, 2147483648
  %v609 = vxor.u32 %v479, 2147483648
  %v610 = vmul.f32 %v594, 1.442695
  %v611 = vpow.pop %v610
  %v612 = vmul.f32 %v595, 1.442695
  %v613 = vpow.pop %v612
  %v614 = vmul.f32 %v596, 1.442695
  %v615 = vpow.pop %v614
  %v616 = vmul.f32 %v597, 1.442695
  %v617 = vpow.pop %v616
  %v618 = vmul.f32 %v598, 1.442695
  %v619 = vpow.pop %v618
  %v620 = vmul.f32 %v599, 1.442695
  %v621 = vpow.pop %v620
  %v622 = vmul.f32 %v600, 1.442695
  %v623 = vpow.pop %v622
  %v624 = vmul.f32 %v601, 1.442695
  %v625 = vpow.pop %v624
  %v626 = vmul.f32 %v602, 1.442695
  %v627 = vpow.pop %v626
  %v628 = vmul.f32 %v603, 1.442695
  %v629 = vpow.pop %v628
  %v630 = vmul.f32 %v604, 1.442695
  %v631 = vpow.pop %v630
  %v632 = vmul.f32 %v605, 1.442695
  %v633 = vpow.pop %v632
  %v634 = vmul.f32 %v606, 1.442695
  %v635 = vpow.pop %v634
  %v636 = vmul.f32 %v607, 1.442695
  %v637 = vpow.pop %v636
  %v638 = vmul.f32 %v608, 1.442695
  %v639 = vpow.pop %v638
  %v640 = vmul.f32 %v609, 1.442695
  %v641 = vpow.pop %v640
  %v642 = vadd.f32 %v611, 1.0
  %v643 = vadd.f32 %v613, 1.0
  %v644 = vadd.f32 %v615, 1.0
  %v645 = vadd.f32 %v617, 1.0
  %v646 = vadd.f32 %v619, 1.0
  %v647 = vadd.f32 %v621, 1.0
  %v648 = vadd.f32 %v623, 1.0
  %v649 = vadd.f32 %v625, 1.0
  %v650 = vadd.f32 %v627, 1.0
  %v651 = vadd.f32 %v629, 1.0
  %v652 = vadd.f32 %v631, 1.0
  %v653 = vadd.f32 %v633, 1.0
  %v654 = vadd.f32 %v635, 1.0
  %v655 = vadd.f32 %v637, 1.0
  %v656 = vadd.f32 %v639, 1.0
  %v657 = vadd.f32 %v641, 1.0
  %v658 = vrcp.pop %v642
  %v659 = vmul.f32 1.0, %v658
  %v660 = vrcp.pop %v643
  %v661 = vmul.f32 1.0, %v660
  %v662 = vrcp.pop %v644
  %v663 = vmul.f32 1.0, %v662
  %v664 = vrcp.pop %v645
  %v665 = vmul.f32 1.0, %v664
  %v666 = vrcp.pop %v646
  %v667 = vmul.f32 1.0, %v666
  %v668 = vrcp.pop %v647
  %v669 = vmul.f32 1.0, %v668
  %v670 = vrcp.pop %v648
  %v671 = vmul.f32 1.0, %v670
  %v672 = vrcp.pop %v649
  %v673 = vmul.f32 1.0, %v672
  %v674 = vrcp.pop %v650
  %v675 = vmul.f32 1.0, %v674
  %v676 = vrcp.pop %v651
  %v677 = vmul.f32 1.0, %v676
  %v678 = vrcp.pop %v652
  %v679 = vmul.f32 1.0, %v678
  %v680 = vrcp.pop %v653
  %v681 = vmul.f32 1.0, %v680
  %v682 = vrcp.pop %v654
  %v683 = vmul.f32 1.0, %v682
  %v684 = vrcp.pop %v655
  %v685 = vmul.f32 1.0, %v684
  %v686 = vrcp.pop %v656
  %v687 = vmul.f32 1.0, %v686
  %v688 = vrcp.pop %v657
  %v689 = vmul.f32 1.0, %v688
  %v690 = vld [vmem:[#allocation2] sm:$0xf]
  %v691 = vmul.f32 %v563, %v482
  %v692 = vsub.f32 1.0, %v563
  %v693 = vmul.f32 %v692, %v690
  %v694 = vadd.f32 %v691, %v693
  %695 = vst [vmem:[#allocation3] sm:$0xf] %v694
  %v697 = vrot.slane %v694, 4
  %v699 = vmul.f32 %v692, %v697
  %v700 = vadd.f32 %v691, %v699
  %701 = vst [vmem:[#allocation3] sm:$0xf0] %v700
  %v702 = vmul.f32 %v565, %v483
  %v703 = vsub.f32 1.0, %v565
  %v705 = vrot.slane %v700, 4
  %v707 = vmul.f32 %v703, %v705
  %v708 = vadd.f32 %v702, %v707
  %709 = vst [vmem:[#allocation3 + $0x8] sm:$0xf] %v708
  %v711 = vrot.slane %v708, 4
  %v713 = vmul.f32 %v703, %v711
  %v714 = vadd.f32 %v702, %v713
  %715 = vst [vmem:[#allocation3 + $0x8] sm:$0xf0] %v714
  %v716 = vmul.f32 %v567, %v484
  %v717 = vsub.f32 1.0, %v567
  %v719 = vrot.slane %v714, 4
  %v721 = vmul.f32 %v717, %v719
  %v722 = vadd.f32 %v716, %v721
  %723 = vst [vmem:[#allocation3 + $0x10] sm:$0xf] %v722
  %v725 = vrot.slane %v722, 4
  %v727 = vmul.f32 %v717, %v725
  %v728 = vadd.f32 %v716, %v727
  %729 = vst [vmem:[#allocation3 + $0x10] sm:$0xf0] %v728
  %v730 = vmul.f32 %v569, %v485
  %v731 = vsub.f32 1.0, %v569
  %v733 = vrot.slane %v728, 4
  %v735 = vmul.f32 %v731, %v733
  %v736 = vadd.f32 %v730, %v735
  %737 = vst [vmem:[#allocation3 + $0x18] sm:$0xf] %v736
  %v739 = vrot.slane %v736, 4
  %v741 = vmul.f32 %v731, %v739
  %v742 = vadd.f32 %v730, %v741
  %743 = vst [vmem:[#allocation3 + $0x18] sm:$0xf0] %v742
  %v744 = vmul.f32 %v571, %v486
  %v745 = vsub.f32 1.0, %v571
  %v747 = vrot.slane %v742, 4
  %v749 = vmul.f32 %v745, %v747
  %v750 = vadd.f32 %v744, %v749
  %751 = vst [vmem:[#allocation3 + $0x20] sm:$0xf] %v750
  %v753 = vrot.slane %v750, 4
  %v755 = vmul.f32 %v745, %v753
  %v756 = vadd.f32 %v744, %v755
  %757 = vst [vmem:[#allocation3 + $0x20] sm:$0xf0] %v756
  %v758 = vmul.f32 %v573, %v487
  %v759 = vsub.f32 1.0, %v573
  %v761 = vrot.slane %v756, 4
  %v763 = vmul.f32 %v759, %v761
  %v764 = vadd.f32 %v758, %v763
  %765 = vst [vmem:[#allocation3 + $0x28] sm:$0xf] %v764
  %v767 = vrot.slane %v764, 4
  %v769 = vmul.f32 %v759, %v767
  %v770 = vadd.f32 %v758, %v769
  %771 = vst [vmem:[#allocation3 + $0x28] sm:$0xf0] %v770
  %v772 = vmul.f32 %v575, %v488
  %v773 = vsub.f32 1.0, %v575
  %v775 = vrot.slane %v770, 4
  %v777 = vmul.f32 %v773, %v775
  %v778 = vadd.f32 %v772, %v777
  %779 = vst [vmem:[#allocation3 + $0x30] sm:$0xf] %v778
  %v781 = vrot.slane %v778, 4
  %v783 = vmul.f32 %v773, %v781
  %v784 = vadd.f32 %v772, %v783
  %785 = vst [vmem:[#allocation3 + $0x30] sm:$0xf0] %v784
  %v786 = vmul.f32 %v577, %v489
  %v787 = vsub.f32 1.0, %v577
  %v789 = vrot.slane %v784, 4
  %v791 = vmul.f32 %v787, %v789
  %v792 = vadd.f32 %v786, %v791
  %793 = vst [vmem:[#allocation3 + $0x38] sm:$0xf] %v792
  %v795 = vrot.slane %v792, 4
  %v797 = vmul.f32 %v787, %v795
  %v798 = vadd.f32 %v786, %v797
  %799 = vst [vmem:[#allocation3 + $0x38] sm:$0xf0] %v798
  %v800 = vmul.f32 %v579, %v490
  %v801 = vsub.f32 1.0, %v579
  %v803 = vrot.slane %v798, 4
  %v805 = vmul.f32 %v801, %v803
  %v806 = vadd.f32 %v800, %v805
  %807 = vst [vmem:[#allocation3 + $0x40] sm:$0xf] %v806
  %v809 = vrot.slane %v806, 4
  %v811 = vmul.f32 %v801, %v809
  %v812 = vadd.f32 %v800, %v811
  %813 = vst [vmem:[#allocation3 + $0x40] sm:$0xf0] %v812
  %v814 = vmul.f32 %v581, %v491
  %v815 = vsub.f32 1.0, %v581
  %v817 = vrot.slane %v812, 4
  %v819 = vmul.f32 %v815, %v817
  %v820 = vadd.f32 %v814, %v819
  %821 = vst [vmem:[#allocation3 + $0x48] sm:$0xf] %v820
  %v823 = vrot.slane %v820, 4
  %v825 = vmul.f32 %v815, %v823
  %v826 = vadd.f32 %v814, %v825
  %827 = vst [vmem:[#allocation3 + $0x48] sm:$0xf0] %v826
  %v828 = vmul.f32 %v583, %v492
  %v829 = vsub.f32 1.0, %v583
  %v831 = vrot.slane %v826, 4
  %v833 = vmul.f32 %v829, %v831
  %v834 = vadd.f32 %v828, %v833
  %835 = vst [vmem:[#allocation3 + $0x50] sm:$0xf] %v834
  %v837 = vrot.slane %v834, 4
  %v839 = vmul.f32 %v829, %v837
  %v840 = vadd.f32 %v828, %v839
  %841 = vst [vmem:[#allocation3 + $0x50] sm:$0xf0] %v840
  %v842 = vmul.f32 %v585, %v493
  %v843 = vsub.f32 1.0, %v585
  %v845 = vrot.slane %v840, 4
  %v847 = vmul.f32 %v843, %v845
  %v848 = vadd.f32 %v842, %v847
  %849 = vst [vmem:[#allocation3 + $0x58] sm:$0xf] %v848
  %v851 = vrot.slane %v848, 4
  %v853 = vmul.f32 %v843, %v851
  %v854 = vadd.f32 %v842, %v853
  %855 = vst [vmem:[#allocation3 + $0x58] sm:$0xf0] %v854
  %v856 = vmul.f32 %v587, %v494
  %v857 = vsub.f32 1.0, %v587
  %v859 = vrot.slane %v854, 4
  %v861 = vmul.f32 %v857, %v859
  %v862 = vadd.f32 %v856, %v861
  %863 = vst [vmem:[#allocation3 + $0x60] sm:$0xf] %v862
  %v865 = vrot.slane %v862, 4
  %v867 = vmul.f32 %v857, %v865
  %v868 = vadd.f32 %v856, %v867
  %869 = vst [vmem:[#allocation3 + $0x60] sm:$0xf0] %v868
  %v870 = vmul.f32 %v589, %v495
  %v871 = vsub.f32 1.0, %v589
  %v873 = vrot.slane %v868, 4
  %v875 = vmul.f32 %v871, %v873
  %v876 = vadd.f32 %v870, %v875
  %877 = vst [vmem:[#allocation3 + $0x68] sm:$0xf] %v876
  %v879 = vrot.slane %v876, 4
  %v881 = vmul.f32 %v871, %v879
  %v882 = vadd.f32 %v870, %v881
  %883 = vst [vmem:[#allocation3 + $0x68] sm:$0xf0] %v882
  %v884 = vmul.f32 %v591, %v496
  %v885 = vsub.f32 1.0, %v591
  %v887 = vrot.slane %v882, 4
  %v889 = vmul.f32 %v885, %v887
  %v890 = vadd.f32 %v884, %v889
  %891 = vst [vmem:[#allocation3 + $0x70] sm:$0xf] %v890
  %v893 = vrot.slane %v890, 4
  %v895 = vmul.f32 %v885, %v893
  %v896 = vadd.f32 %v884, %v895
  %897 = vst [vmem:[#allocation3 + $0x70] sm:$0xf0] %v896
  %v898 = vmul.f32 %v593, %v497
  %v899 = vsub.f32 1.0, %v593
  %v901 = vrot.slane %v896, 4
  %v903 = vmul.f32 %v899, %v901
  %v904 = vadd.f32 %v898, %v903
  %905 = vst [vmem:[#allocation3 + $0x78] sm:$0xf] %v904
  %v907 = vrot.slane %v904, 4
  %v909 = vmul.f32 %v899, %v907
  %v910 = vadd.f32 %v898, %v909
  %911 = vst [vmem:[#allocation3 + $0x78] sm:$0xf0] %v910
  %912 = vst [vmem:[#allocation2 - $0x4] sm:$0xf0] %v910
  // Predicated region
  $region30: #{qrnn_projection_forward.4} parent=0 // pred_check
    %p913 = pneg %p26
  $region31: #{qrnn_projection_forward.4} parent=0 // pred_check_branch
    %915 = sbr.rel (%p913) target = $region33
  $region32: #{qrnn_projection_forward.4} parent=0 // pred_region
    %916 = vst [vmem:[%s7 - $0x4] sm:$0xf0] %v910
  $region33: #{qrnn_projection_forward.4} parent=0 // pred_fallthru
    _
  %v917 = vld [vmem:[#allocation3] sm:$0xff]
  %v918 = vld [vmem:[#allocation3 + $0x8] sm:$0xff]
  %v919 = vld [vmem:[#allocation3 + $0x10] sm:$0xff]
  %v920 = vld [vmem:[#allocation3 + $0x18] sm:$0xff]
  %v921 = vld [vmem:[#allocation3 + $0x20] sm:$0xff]
  %v922 = vld [vmem:[#allocation3 + $0x28] sm:$0xff]
  %v923 = vld [vmem:[#allocation3 + $0x30] sm:$0xff]
  %v924 = vld [vmem:[#allocation3 + $0x38] sm:$0xff]
  %v925 = vld [vmem:[#allocation3 + $0x40] sm:$0xff]
  %v926 = vld [vmem:[#allocation3 + $0x48] sm:$0xff]
  %v927 = vld [vmem:[#allocation3 + $0x50] sm:$0xff]
  %v928 = vld [vmem:[#allocation3 + $0x58] sm:$0xff]
  %v929 = vld [vmem:[#allocation3 + $0x60] sm:$0xff]
  %v930 = vld [vmem:[#allocation3 + $0x68] sm:$0xff]
  %v931 = vld [vmem:[#allocation3 + $0x70] sm:$0xff]
  %v932 = vld [vmem:[#allocation3 + $0x78] sm:$0xff]
  %v933 = vmul.f32 %v659, %v917
  %v934 = vmul.f32 %v661, %v918
  %v935 = vmul.f32 %v663, %v919
  %v936 = vmul.f32 %v665, %v920
  %v937 = vmul.f32 %v667, %v921
  %v938 = vmul.f32 %v669, %v922
  %v939 = vmul.f32 %v671, %v923
  %v940 = vmul.f32 %v673, %v924
  %v941 = vmul.f32 %v675, %v925
  %v942 = vmul.f32 %v677, %v926
  %v943 = vmul.f32 %v679, %v927
  %v944 = vmul.f32 %v681, %v928
  %v945 = vmul.f32 %v683, %v929
  %v946 = vmul.f32 %v685, %v930
  %v947 = vmul.f32 %v687, %v931
  %v948 = vmul.f32 %v689, %v932
  %v949 = vmax.f32 %v933, -5.0
  %v950 = vmax.f32 %v934, -5.0
  %v951 = vmax.f32 %v935, -5.0
  %v952 = vmax.f32 %v936, -5.0
  %v953 = vmax.f32 %v937, -5.0
  %v954 = vmax.f32 %v938, -5.0
  %v955 = vmax.f32 %v939, -5.0
  %v956 = vmax.f32 %v940, -5.0
  %v957 = vmax.f32 %v941, -5.0
  %v958 = vmax.f32 %v942, -5.0
  %v959 = vmax.f32 %v943, -5.0
  %v960 = vmax.f32 %v944, -5.0
  %v961 = vmax.f32 %v945, -5.0
  %v962 = vmax.f32 %v946, -5.0
  %v963 = vmax.f32 %v947, -5.0
  %v964 = vmax.f32 %v948, -5.0
  %v965 = vmin.f32 %v949, 5.0
  %v966 = vmin.f32 %v950, 5.0
  %v967 = vmin.f32 %v951, 5.0
  %v968 = vmin.f32 %v952, 5.0
  %v969 = vmin.f32 %v953, 5.0
  %v970 = vmin.f32 %v954, 5.0
  %v971 = vmin.f32 %v955, 5.0
  %v972 = vmin.f32 %v956, 5.0
  %v973 = vmin.f32 %v957, 5.0
  %v974 = vmin.f32 %v958, 5.0
  %v975 = vmin.f32 %v959, 5.0
  %v976 = vmin.f32 %v960, 5.0
  %v977 = vmin.f32 %v961, 5.0
  %v978 = vmin.f32 %v962, 5.0
  %v979 = vmin.f32 %v963, 5.0
  %v980 = vmin.f32 %v964, 5.0
  %v981 = vpack.c.bf16 %v966, %v965
  %v982 = vpack.c.bf16 %v968, %v967
  %v983 = vpack.c.bf16 %v970, %v969
  %v984 = vpack.c.bf16 %v972, %v971
  %v985 = vpack.c.bf16 %v974, %v973
  %v986 = vpack.c.bf16 %v976, %v975
  %v987 = vpack.c.bf16 %v978, %v977
  %v988 = vpack.c.bf16 %v980, %v979
  %v989 = vld [vmem:[%s3] sm:$0xf]
  %v990 = vld [vmem:[%s3 + $0x4] sm:$0xf]
  %v991 = vld [vmem:[%s3 + $0x8] sm:$0xf]
  %v992 = vld [vmem:[%s3 + $0xc] sm:$0xf]
  %v993 = vld [vmem:[%s3 + $0x10] sm:$0xf]
  %v994 = vld [vmem:[%s3 + $0x14] sm:$0xf]
  %v995 = vld [vmem:[%s3 + $0x18] sm:$0xf]
  %v996 = vld [vmem:[%s3 + $0x1c] sm:$0xf]
  %v997 = vld [vmem:[%s3 + $0x20] sm:$0xf]
  %v998 = vld [vmem:[%s3 + $0x24] sm:$0xf]
  %v999 = vld [vmem:[%s3 + $0x28] sm:$0xf]
  %v1000 = vld [vmem:[%s3 + $0x2c] sm:$0xf]
  %v1001 = vld [vmem:[%s3 + $0x30] sm:$0xf]
  %v1002 = vld [vmem:[%s3 + $0x34] sm:$0xf]
  %v1003 = vld [vmem:[%s3 + $0x38] sm:$0xf]
  %v1004 = vld [vmem:[%s3 + $0x3c] sm:$0xf]
  %v1021 = vunpack.c.l.b16 %v989
  %v1022 = vunpack.c.l.b16 %v990
  %v1023 = vunpack.c.l.b16 %v991
  %v1024 = vunpack.c.l.b16 %v992
  %v1025 = vunpack.c.l.b16 %v993
  %v1026 = vunpack.c.l.b16 %v994
  %v1027 = vunpack.c.l.b16 %v995
  %v1028 = vunpack.c.l.b16 %v996
  %v1029 = vunpack.c.l.b16 %v997
  %v1030 = vunpack.c.l.b16 %v998
  %v1031 = vunpack.c.l.b16 %v999
  %v1032 = vunpack.c.l.b16 %v1000
  %v1033 = vunpack.c.l.b16 %v1001
  %v1034 = vunpack.c.l.b16 %v1002
  %v1035 = vunpack.c.l.b16 %v1003
  %v1036 = vunpack.c.l.b16 %v1004
  %v1037 = vpack.c.b16 %v1022, %v1021
  %v1038 = vpack.c.b16 %v1024, %v1023
  %v1039 = vpack.c.b16 %v1026, %v1025
  %v1040 = vpack.c.b16 %v1028, %v1027
  %v1041 = vpack.c.b16 %v1030, %v1029
  %v1042 = vpack.c.b16 %v1032, %v1031
  %v1043 = vpack.c.b16 %v1034, %v1033
  %v1044 = vpack.c.b16 %v1036, %v1035
  %1053 = vmatprep.subr.bf16.mxu0 0
  %1054 = vmatpush1.bf16.msra.mxu0 %v1037
  %1055 = vmatprep.subr.bf16.mxu0 0
  %1056 = vmatpush1.bf16.msra.mxu0 %v1038
  %1057 = vmatprep.subr.bf16.mxu0 0
  %1058 = vmatpush1.bf16.msra.mxu0 %v1039
  %1059 = vmatprep.subr.bf16.mxu0 0
  %1060 = vmatpush1.bf16.msra.mxu0 %v1040
  %1061 = vmatprep.subr.bf16.mxu0 0
  %1062 = vmatpush1.bf16.msra.mxu0 %v1041
  %1063 = vmatprep.subr.bf16.mxu0 0
  %1064 = vmatpush1.bf16.msra.mxu0 %v1042
  %1065 = vmatprep.subr.bf16.mxu0 0
  %1066 = vmatpush1.bf16.msra.mxu0 %v1043
  %1067 = vmatprep.subr.bf16.mxu0 0
  %1068 = vmatpush1.bf16.msra.mxu0 %v1044
  %1069 = vmatprep.subr.bf16.mxu0 0
  %1070 = vmatpush1.bf16.msra.mxu0 0
  %1071 = vmatprep.subr.bf16.mxu0 0
  %1072 = vmatpush1.bf16.msra.mxu0 0
  %1073 = vmatprep.subr.bf16.mxu0 0
  %1074 = vmatpush1.bf16.msra.mxu0 0
  %1075 = vmatprep.subr.bf16.mxu0 0
  %1076 = vmatpush1.bf16.msra.mxu0 0
  %1077 = vmatprep.subr.bf16.mxu0 0
  %1078 = vmatpush1.bf16.msra.mxu0 0
  %1079 = vmatprep.subr.bf16.mxu0 0
  %1080 = vmatpush1.bf16.msra.mxu0 0
  %1081 = vmatprep.subr.bf16.mxu0 0
  %1082 = vmatpush1.bf16.msra.mxu0 0
  %1083 = vmatprep.subr.bf16.mxu0 0
  %1084 = vmatpush1.bf16.msra.mxu0 0
  %1085 = vmatprep.mubr.bf16.mxu0 0
  %1086 = vmatmul.mubr.bf16.gmra.mrb[0].mxu0 %v981
  %v1087 = vpop.f32.mrb[0].mxu0
  %v1088 = vadd.f32 0.0, %v1087
  %v1089 = vpop.f32.mrb[0].mxu0
  %v1090 = vpop.f32.mrb[0].mxu0
  %v1091 = vadd.f32 0.0, %v1090
  %v1092 = vpop.f32.mrb[0].mxu0
  %1093 = vmatprep.mubr.bf16.mxu0 0
  %1094 = vmatmul.mubr.bf16.gmra.mrb[0].mxu0 %v982
  %v1095 = vpop.f32.mrb[0].mxu0
  %v1096 = vadd.f32 0.0, %v1095
  %v1097 = vpop.f32.mrb[0].mxu0
  %v1098 = vpop.f32.mrb[0].mxu0
  %v1099 = vadd.f32 0.0, %v1098
  %v1100 = vpop.f32.mrb[0].mxu0
  %1101 = vmatprep.mubr.bf16.mxu0 0
  %1102 = vmatmul.mubr.bf16.gmra.mrb[0].mxu0 %v983
  %v1103 = vpop.f32.mrb[0].mxu0
  %v1104 = vadd.f32 0.0, %v1103
  %v1105 = vpop.f32.mrb[0].mxu0
  %v1106 = vpop.f32.mrb[0].mxu0
  %v1107 = vadd.f32 0.0, %v1106
  %v1108 = vpop.f32.mrb[0].mxu0
  %1109 = vmatprep.mubr.bf16.mxu0 0
  %1110 = vmatmul.mubr.bf16.gmra.mrb[0].mxu0 %v984
  %v1111 = vpop.f32.mrb[0].mxu0
  %v1112 = vadd.f32 0.0, %v1111
  %v1113 = vpop.f32.mrb[0].mxu0
  %v1114 = vpop.f32.mrb[0].mxu0
  %v1115 = vadd.f32 0.0, %v1114
  %v1116 = vpop.f32.mrb[0].mxu0
  %1117 = vmatprep.mubr.bf16.mxu0 0
  %1118 = vmatmul.mubr.bf16.gmra.mrb[0].mxu0 %v985
  %v1119 = vpop.f32.mrb[0].mxu0
  %v1120 = vadd.f32 0.0, %v1119
  %v1121 = vpop.f32.mrb[0].mxu0
  %v1122 = vpop.f32.mrb[0].mxu0
  %v1123 = vadd.f32 0.0, %v1122
  %v1124 = vpop.f32.mrb[0].mxu0
  %1125 = vmatprep.mubr.bf16.mxu0 0
  %1126 = vmatmul.mubr.bf16.gmra.mrb[0].mxu0 %v986
  %v1127 = vpop.f32.mrb[0].mxu0
  %v1128 = vadd.f32 0.0, %v1127
  %v1129 = vpop.f32.mrb[0].mxu0
  %v1130 = vpop.f32.mrb[0].mxu0
  %v1131 = vadd.f32 0.0, %v1130
  %v1132 = vpop.f32.mrb[0].mxu0
  %1133 = vmatprep.mubr.bf16.mxu0 0
  %1134 = vmatmul.mubr.bf16.gmra.mrb[0].mxu0 %v987
  %v1135 = vpop.f32.mrb[0].mxu0
  %v1136 = vadd.f32 0.0, %v1135
  %v1137 = vpop.f32.mrb[0].mxu0
  %v1138 = vpop.f32.mrb[0].mxu0
  %v1139 = vadd.f32 0.0, %v1138
  %v1140 = vpop.f32.mrb[0].mxu0
  %1141 = vmatprep.mubr.bf16.mxu0 0
  %1142 = vmatmul.mubr.bf16.gmra.mrb[0].mxu0 %v988
  %v1143 = vpop.f32.mrb[0].mxu0
  %v1144 = vadd.f32 0.0, %v1143
  %v1145 = vpop.f32.mrb[0].mxu0
  %v1146 = vpop.f32.mrb[0].mxu0
  %v1147 = vadd.f32 0.0, %v1146
  %v1148 = vpop.f32.mrb[0].mxu0
  %1149 = vdwg.mxu0
  %v1150 = vmax.f32 %v1088, -5.0
  %v1151 = vmax.f32 %v1091, -5.0
  %v1152 = vmax.f32 %v1096, -5.0
  %v1153 = vmax.f32 %v1099, -5.0
  %v1154 = vmax.f32 %v1104, -5.0
  %v1155 = vmax.f32 %v1107, -5.0
  %v1156 = vmax.f32 %v1112, -5.0
  %v1157 = vmax.f32 %v1115, -5.0
  %v1158 = vmax.f32 %v1120, -5.0
  %v1159 = vmax.f32 %v1123, -5.0
  %v1160 = vmax.f32 %v1128, -5.0
  %v1161 = vmax.f32 %v1131, -5.0
  %v1162 = vmax.f32 %v1136, -5.0
  %v1163 = vmax.f32 %v1139, -5.0
  %v1164 = vmax.f32 %v1144, -5.0
  %v1165 = vmax.f32 %v1147, -5.0
  %v1166 = vmin.f32 %v1150, 5.0
  %v1167 = vmin.f32 %v1151, 5.0
  %v1168 = vmin.f32 %v1152, 5.0
  %v1169 = vmin.f32 %v1153, 5.0
  %v1170 = vmin.f32 %v1154, 5.0
  %v1171 = vmin.f32 %v1155, 5.0
  %v1172 = vmin.f32 %v1156, 5.0
  %v1173 = vmin.f32 %v1157, 5.0
  %v1174 = vmin.f32 %v1158, 5.0
  %v1175 = vmin.f32 %v1159, 5.0
  %v1176 = vmin.f32 %v1160, 5.0
  %v1177 = vmin.f32 %v1161, 5.0
  %v1178 = vmin.f32 %v1162, 5.0
  %v1179 = vmin.f32 %v1163, 5.0
  %v1180 = vmin.f32 %v1164, 5.0
  %v1181 = vmin.f32 %v1165, 5.0
  %1182 = vadd.xlane.f32.xlu0 %v1166
  %v1183 = vpop.xlane.xlu0 %1182
  %1184 = vadd.xlane.f32.xlu0 %v1167
  %v1185 = vpop.xlane.xlu0 %1184
  %1186 = vadd.xlane.f32.xlu0 %v1168
  %v1187 = vpop.xlane.xlu0 %1186
  %1188 = vadd.xlane.f32.xlu0 %v1169
  %v1189 = vpop.xlane.xlu0 %1188
  %1190 = vadd.xlane.f32.xlu0 %v1170
  %v1191 = vpop.xlane.xlu0 %1190
  %1192 = vadd.xlane.f32.xlu0 %v1171
  %v1193 = vpop.xlane.xlu0 %1192
  %1194 = vadd.xlane.f32.xlu0 %v1172
  %v1195 = vpop.xlane.xlu0 %1194
  %1196 = vadd.xlane.f32.xlu0 %v1173
  %v1197 = vpop.xlane.xlu0 %1196
  %1198 = vadd.xlane.f32.xlu0 %v1174
  %v1199 = vpop.xlane.xlu0 %1198
  %1200 = vadd.xlane.f32.xlu0 %v1175
  %v1201 = vpop.xlane.xlu0 %1200
  %1202 = vadd.xlane.f32.xlu0 %v1176
  %v1203 = vpop.xlane.xlu0 %1202
  %1204 = vadd.xlane.f32.xlu0 %v1177
  %v1205 = vpop.xlane.xlu0 %1204
  %1206 = vadd.xlane.f32.xlu0 %v1178
  %v1207 = vpop.xlane.xlu0 %1206
  %1208 = vadd.xlane.f32.xlu0 %v1179
  %v1209 = vpop.xlane.xlu0 %1208
  %1210 = vadd.xlane.f32.xlu0 %v1180
  %v1211 = vpop.xlane.xlu0 %1210
  %1212 = vadd.xlane.f32.xlu0 %v1181
  %v1213 = vpop.xlane.xlu0 %1212
  %v1214 = vmul.f32 %v1183, 0.041666668
  %v1215 = vmul.f32 %v1185, 0.041666668
  %v1216 = vmul.f32 %v1187, 0.041666668
  %v1217 = vmul.f32 %v1189, 0.041666668
  %v1218 = vmul.f32 %v1191, 0.041666668
  %v1219 = vmul.f32 %v1193, 0.041666668
  %v1220 = vmul.f32 %v1195, 0.041666668
  %v1221 = vmul.f32 %v1197, 0.041666668
  %v1222 = vmul.f32 %v1199, 0.041666668
  %v1223 = vmul.f32 %v1201, 0.041666668
  %v1224 = vmul.f32 %v1203, 0.041666668
  %v1225 = vmul.f32 %v1205, 0.041666668
  %v1226 = vmul.f32 %v1207, 0.041666668
  %v1227 = vmul.f32 %v1209, 0.041666668
  %v1228 = vmul.f32 %v1211, 0.041666668
  %v1229 = vmul.f32 %v1213, 0.041666668
  %v1230 = vmul.f32 %v1166, %v1166
  %v1231 = vmul.f32 %v1167, %v1167
  %v1232 = vmul.f32 %v1168, %v1168
  %v1233 = vmul.f32 %v1169, %v1169
  %v1234 = vmul.f32 %v1170, %v1170
  %v1235 = vmul.f32 %v1171, %v1171
  %v1236 = vmul.f32 %v1172, %v1172
  %v1237 = vmul.f32 %v1173, %v1173
  %v1238 = vmul.f32 %v1174, %v1174
  %v1239 = vmul.f32 %v1175, %v1175
  %v1240 = vmul.f32 %v1176, %v1176
  %v1241 = vmul.f32 %v1177, %v1177
  %v1242 = vmul.f32 %v1178, %v1178
  %v1243 = vmul.f32 %v1179, %v1179
  %v1244 = vmul.f32 %v1180, %v1180
  %v1245 = vmul.f32 %v1181, %v1181
  %1246 = vadd.xlane.f32.xlu0 %v1230
  %v1247 = vpop.xlane.xlu0 %1246
  %1248 = vadd.xlane.f32.xlu0 %v1231
  %v1249 = vpop.xlane.xlu0 %1248
  %1250 = vadd.xlane.f32.xlu0 %v1232
  %v1251 = vpop.xlane.xlu0 %1250
  %1252 = vadd.xlane.f32.xlu0 %v1233
  %v1253 = vpop.xlane.xlu0 %1252
  %1254 = vadd.xlane.f32.xlu0 %v1234
  %v1255 = vpop.xlane.xlu0 %1254
  %1256 = vadd.xlane.f32.xlu0 %v1235
  %v1257 = vpop.xlane.xlu0 %1256
  %1258 = vadd.xlane.f32.xlu0 %v1236
  %v1259 = vpop.xlane.xlu0 %1258
  %1260 = vadd.xlane.f32.xlu0 %v1237
  %v1261 = vpop.xlane.xlu0 %1260
  %1262 = vadd.xlane.f32.xlu0 %v1238
  %v1263 = vpop.xlane.xlu0 %1262
  %1264 = vadd.xlane.f32.xlu0 %v1239
  %v1265 = vpop.xlane.xlu0 %1264
  %1266 = vadd.xlane.f32.xlu0 %v1240
  %v1267 = vpop.xlane.xlu0 %1266
  %1268 = vadd.xlane.f32.xlu0 %v1241
  %v1269 = vpop.xlane.xlu0 %1268
  %1270 = vadd.xlane.f32.xlu0 %v1242
  %v1271 = vpop.xlane.xlu0 %1270
  %1272 = vadd.xlane.f32.xlu0 %v1243
  %v1273 = vpop.xlane.xlu0 %1272
  %1274 = vadd.xlane.f32.xlu0 %v1244
  %v1275 = vpop.xlane.xlu0 %1274
  %1276 = vadd.xlane.f32.xlu0 %v1245
  %v1277 = vpop.xlane.xlu0 %1276
  %v1278 = vmul.f32 %v1247, 0.041666668
  %v1279 = vmul.f32 %v1249, 0.041666668
  %v1280 = vmul.f32 %v1251, 0.041666668
  %v1281 = vmul.f32 %v1253, 0.041666668
  %v1282 = vmul.f32 %v1255, 0.041666668
  %v1283 = vmul.f32 %v1257, 0.041666668
  %v1284 = vmul.f32 %v1259, 0.041666668
  %v1285 = vmul.f32 %v1261, 0.041666668
  %v1286 = vmul.f32 %v1263, 0.041666668
  %v1287 = vmul.f32 %v1265, 0.041666668
  %v1288 = vmul.f32 %v1267, 0.041666668
  %v1289 = vmul.f32 %v1269, 0.041666668
  %v1290 = vmul.f32 %v1271, 0.041666668
  %v1291 = vmul.f32 %v1273, 0.041666668
  %v1292 = vmul.f32 %v1275, 0.041666668
  %v1293 = vmul.f32 %v1277, 0.041666668
  %v1294 = vmul.f32 %v1214, %v1214
  %v1295 = vmul.f32 %v1215, %v1215
  %v1296 = vmul.f32 %v1216, %v1216
  %v1297 = vmul.f32 %v1217, %v1217
  %v1298 = vmul.f32 %v1218, %v1218
  %v1299 = vmul.f32 %v1219, %v1219
  %v1300 = vmul.f32 %v1220, %v1220
  %v1301 = vmul.f32 %v1221, %v1221
  %v1302 = vmul.f32 %v1222, %v1222
  %v1303 = vmul.f32 %v1223, %v1223
  %v1304 = vmul.f32 %v1224, %v1224
  %v1305 = vmul.f32 %v1225, %v1225
  %v1306 = vmul.f32 %v1226, %v1226
  %v1307 = vmul.f32 %v1227, %v1227
  %v1308 = vmul.f32 %v1228, %v1228
  %v1309 = vmul.f32 %v1229, %v1229
  %v1310 = vsub.f32 %v1278, %v1294
  %v1311 = vsub.f32 %v1279, %v1295
  %v1312 = vsub.f32 %v1280, %v1296
  %v1313 = vsub.f32 %v1281, %v1297
  %v1314 = vsub.f32 %v1282, %v1298
  %v1315 = vsub.f32 %v1283, %v1299
  %v1316 = vsub.f32 %v1284, %v1300
  %v1317 = vsub.f32 %v1285, %v1301
  %v1318 = vsub.f32 %v1286, %v1302
  %v1319 = vsub.f32 %v1287, %v1303
  %v1320 = vsub.f32 %v1288, %v1304
  %v1321 = vsub.f32 %v1289, %v1305
  %v1322 = vsub.f32 %v1290, %v1306
  %v1323 = vsub.f32 %v1291, %v1307
  %v1324 = vsub.f32 %v1292, %v1308
  %v1325 = vsub.f32 %v1293, %v1309
  %v1326 = vld [vmem:[%s4] sm:$0x1]
  %v1327 = vsub.f32 %v1166, %v1214
  %v1328 = vsub.f32 %v1167, %v1215
  %v1329 = vsub.f32 %v1168, %v1216
  %v1330 = vsub.f32 %v1169, %v1217
  %v1331 = vsub.f32 %v1170, %v1218
  %v1332 = vsub.f32 %v1171, %v1219
  %v1333 = vsub.f32 %v1172, %v1220
  %v1334 = vsub.f32 %v1173, %v1221
  %v1335 = vsub.f32 %v1174, %v1222
  %v1336 = vsub.f32 %v1175, %v1223
  %v1337 = vsub.f32 %v1176, %v1224
  %v1338 = vsub.f32 %v1177, %v1225
  %v1339 = vsub.f32 %v1178, %v1226
  %v1340 = vsub.f32 %v1179, %v1227
  %v1341 = vsub.f32 %v1180, %v1228
  %v1342 = vsub.f32 %v1181, %v1229
  %v1344 = vlaneseq
  %v1345 = vshrl.u32 %v1344, 7
  %v1346 = vsub.s32 0, %v1345
  %v1347 = vrot.slane %v1326, %v1346
  %v1349 = vmul.f32 %v1347, %v1327
  %v1350 = vmul.f32 %v1347, %v1328
  %v1351 = vmul.f32 %v1347, %v1329
  %v1352 = vmul.f32 %v1347, %v1330
  %v1353 = vmul.f32 %v1347, %v1331
  %v1354 = vmul.f32 %v1347, %v1332
  %v1355 = vmul.f32 %v1347, %v1333
  %v1356 = vmul.f32 %v1347, %v1334
  %v1357 = vmul.f32 %v1347, %v1335
  %v1358 = vmul.f32 %v1347, %v1336
  %v1359 = vmul.f32 %v1347, %v1337
  %v1360 = vmul.f32 %v1347, %v1338
  %v1361 = vmul.f32 %v1347, %v1339
  %v1362 = vmul.f32 %v1347, %v1340
  %v1363 = vmul.f32 %v1347, %v1341
  %v1364 = vmul.f32 %v1347, %v1342
  %v1365 = vadd.f32 %v1310, 1e-05
  %v1366 = vadd.f32 %v1311, 1e-05
  %v1367 = vadd.f32 %v1312, 1e-05
  %v1368 = vadd.f32 %v1313, 1e-05
  %v1369 = vadd.f32 %v1314, 1e-05
  %v1370 = vadd.f32 %v1315, 1e-05
  %v1371 = vadd.f32 %v1316, 1e-05
  %v1372 = vadd.f32 %v1317, 1e-05
  %v1373 = vadd.f32 %v1318, 1e-05
  %v1374 = vadd.f32 %v1319, 1e-05
  %v1375 = vadd.f32 %v1320, 1e-05
  %v1376 = vadd.f32 %v1321, 1e-05
  %v1377 = vadd.f32 %v1322, 1e-05
  %v1378 = vadd.f32 %v1323, 1e-05
  %v1379 = vadd.f32 %v1324, 1e-05
  %v1380 = vadd.f32 %v1325, 1e-05
  %v1381 = vrsqrt.pop %v1365
  %v1382 = vrsqrt.pop %v1366
  %v1383 = vrsqrt.pop %v1367
  %v1384 = vrsqrt.pop %v1368
  %v1385 = vrsqrt.pop %v1369
  %v1386 = vrsqrt.pop %v1370
  %v1387 = vrsqrt.pop %v1371
  %v1388 = vrsqrt.pop %v1372
  %v1389 = vrsqrt.pop %v1373
  %v1390 = vrsqrt.pop %v1374
  %v1391 = vrsqrt.pop %v1375
  %v1392 = vrsqrt.pop %v1376
  %v1393 = vrsqrt.pop %v1377
  %v1394 = vrsqrt.pop %v1378
  %v1395 = vrsqrt.pop %v1379
  %v1396 = vrsqrt.pop %v1380
  %v1397 = vmul.f32 %v1349, %v1381
  %v1398 = vmul.f32 %v1350, %v1382
  %v1399 = vmul.f32 %v1351, %v1383
  %v1400 = vmul.f32 %v1352, %v1384
  %v1401 = vmul.f32 %v1353, %v1385
  %v1402 = vmul.f32 %v1354, %v1386
  %v1403 = vmul.f32 %v1355, %v1387
  %v1404 = vmul.f32 %v1356, %v1388
  %v1405 = vmul.f32 %v1357, %v1389
  %v1406 = vmul.f32 %v1358, %v1390
  %v1407 = vmul.f32 %v1359, %v1391
  %v1408 = vmul.f32 %v1360, %v1392
  %v1409 = vmul.f32 %v1361, %v1393
  %v1410 = vmul.f32 %v1362, %v1394
  %v1411 = vmul.f32 %v1363, %v1395
  %v1412 = vmul.f32 %v1364, %v1396
  %v1413 = vld [vmem:[%s5] sm:$0x1]
  %v1415 = vlaneseq
  %v1416 = vshrl.u32 %v1415, 7
  %v1417 = vsub.s32 0, %v1416
  %v1418 = vrot.slane %v1413, %v1417
  %v1420 = vadd.f32 %v1397, %v1418
  %v1421 = vadd.f32 %v1398, %v1418
  %v1422 = vadd.f32 %v1399, %v1418
  %v1423 = vadd.f32 %v1400, %v1418
  %v1424 = vadd.f32 %v1401, %v1418
  %v1425 = vadd.f32 %v1402, %v1418
  %v1426 = vadd.f32 %v1403, %v1418
  %v1427 = vadd.f32 %v1404, %v1418
  %v1428 = vadd.f32 %v1405, %v1418
  %v1429 = vadd.f32 %v1406, %v1418
  %v1430 = vadd.f32 %v1407, %v1418
  %v1431 = vadd.f32 %v1408, %v1418
  %v1432 = vadd.f32 %v1409, %v1418
  %v1433 = vadd.f32 %v1410, %v1418
  %v1434 = vadd.f32 %v1411, %v1418
  %v1435 = vadd.f32 %v1412, %v1418
  %v1436 = vpack.c.bf16 %v1421, %v1420
  %v1437 = vpack.c.bf16 %v1423, %v1422
  %v1438 = vpack.c.bf16 %v1425, %v1424
  %v1439 = vpack.c.bf16 %v1427, %v1426
  %v1440 = vpack.c.bf16 %v1429, %v1428
  %v1441 = vpack.c.bf16 %v1431, %v1430
  %v1442 = vpack.c.bf16 %v1433, %v1432
  %v1443 = vpack.c.bf16 %v1435, %v1434
  %v1452 = vunpack.c.l.b16 %v1436
  %v1453 = vunpack.c.h.b16 %v1436
  %v1454 = vunpack.c.l.b16 %v1437
  %v1455 = vunpack.c.h.b16 %v1437
  %v1456 = vunpack.c.l.b16 %v1438
  %v1457 = vunpack.c.h.b16 %v1438
  %v1458 = vunpack.c.l.b16 %v1439
  %v1459 = vunpack.c.h.b16 %v1439
  %v1460 = vunpack.c.l.b16 %v1440
  %v1461 = vunpack.c.h.b16 %v1440
  %v1462 = vunpack.c.l.b16 %v1441
  %v1463 = vunpack.c.h.b16 %v1441
  %v1464 = vunpack.c.l.b16 %v1442
  %v1465 = vunpack.c.h.b16 %v1442
  %v1466 = vunpack.c.l.b16 %v1443
  %v1467 = vunpack.c.h.b16 %v1443
  %v1468 = vpack.c.b16 %v1452, %v1452
  %v1469 = vpack.c.b16 %v1453, %v1453
  %v1470 = vpack.c.b16 %v1454, %v1454
  %v1471 = vpack.c.b16 %v1455, %v1455
  %v1472 = vpack.c.b16 %v1456, %v1456
  %v1473 = vpack.c.b16 %v1457, %v1457
  %v1474 = vpack.c.b16 %v1458, %v1458
  %v1475 = vpack.c.b16 %v1459, %v1459
  %v1476 = vpack.c.b16 %v1460, %v1460
  %v1477 = vpack.c.b16 %v1461, %v1461
  %v1478 = vpack.c.b16 %v1462, %v1462
  %v1479 = vpack.c.b16 %v1463, %v1463
  %v1480 = vpack.c.b16 %v1464, %v1464
  %v1481 = vpack.c.b16 %v1465, %v1465
  %v1482 = vpack.c.b16 %v1466, %v1466
  %v1483 = vpack.c.b16 %v1467, %v1467
  %1500 = vst [vmem:[%s6] sm:$0xf] %v1468
  %1501 = vst [vmem:[%s6 + $0x4] sm:$0xf] %v1469
  %1502 = vst [vmem:[%s6 + $0x8] sm:$0xf] %v1470
  %1503 = vst [vmem:[%s6 + $0xc] sm:$0xf] %v1471
  %1504 = vst [vmem:[%s6 + $0x10] sm:$0xf] %v1472
  %1505 = vst [vmem:[%s6 + $0x14] sm:$0xf] %v1473
  %1506 = vst [vmem:[%s6 + $0x18] sm:$0xf] %v1474
  %1507 = vst [vmem:[%s6 + $0x1c] sm:$0xf] %v1475
  %1508 = vst [vmem:[%s6 + $0x20] sm:$0xf] %v1476
  %1509 = vst [vmem:[%s6 + $0x24] sm:$0xf] %v1477
  %1510 = vst [vmem:[%s6 + $0x28] sm:$0xf] %v1478
  %1511 = vst [vmem:[%s6 + $0x2c] sm:$0xf] %v1479
  %1512 = vst [vmem:[%s6 + $0x30] sm:$0xf] %v1480
  %1513 = vst [vmem:[%s6 + $0x34] sm:$0xf] %v1481
  %1514 = vst [vmem:[%s6 + $0x38] sm:$0xf] %v1482
  %1515 = vst [vmem:[%s6 + $0x3c] sm:$0xf] %v1483
  // Predicated region
  $region34: #{qrnn_projection_forward.4} parent=0 // pred_check
    _
  $region35: #{qrnn_projection_forward.4} parent=0 // pred_check_branch
    %1517 = sbr.rel (0) target = $region37
  $region36: #{qrnn_projection_forward.4} parent=0 // pred_region
    _
  $region37: #{qrnn_projection_forward.4} parent=0 // pred_fallthru
    _
  // Predicated region
  $region38: #{qrnn_projection_forward.4} parent=0 // pred_check
    _
  $region39: #{qrnn_projection_forward.4} parent=0 // pred_check_branch
    %1519 = sbr.rel (0) target = $region41
  $region40: #{qrnn_projection_forward.4} parent=0 // pred_region
    _
  $region41: #{qrnn_projection_forward.4} parent=0 // pred_fallthru
    _
  // Predicated region
  $region42: #{qrnn_projection_forward.4} parent=0 // pred_check
    _
  $region43: #{qrnn_projection_forward.4} parent=0 // pred_check_branch
    %1521 = sbr.rel (0) target = $region45
  $region44: #{qrnn_projection_forward.4} parent=0 // pred_region
    _
  $region45: #{qrnn_projection_forward.4} parent=0 // pred_fallthru
    _
  // Predicated region
  $region46: #{qrnn_projection_forward.4} parent=0 // pred_check
    _
  $region47: #{qrnn_projection_forward.4} parent=0 // pred_check_branch
    %1523 = sbr.rel (0) target = $region49
  $region48: #{qrnn_projection_forward.4} parent=0 // pred_region
    _
  $region49: #{qrnn_projection_forward.4} parent=0 // pred_fallthru
    _

</llo_original>
